<compile_context>
chip_gen: v5e
topology: v5e:2x2
jax: 0.10.0
libtpu: 0.0.40
codegen_flags: <defaults>
</compile_context>

<pallas_src>
import functools

import jax
import jax.numpy as jnp
from jax.experimental import pallas as pl
from jax.experimental.pallas import tpu as pltpu


NUM_ANCHORS = 3
NUM_CLASSES = 80
NUM_OUTPUTS = 4 + 1 + NUM_CLASSES  # 85
STRIDES = (8, 16, 32)
# anchors: 3 levels x 3 anchors x (w, h)
ANCHORS = (
    ((10.0, 13.0), (16.0, 30.0), (33.0, 23.0)),
    ((30.0, 61.0), (62.0, 45.0), (59.0, 119.0)),
    ((116.0, 90.0), (156.0, 198.0), (373.0, 326.0)),
)


@functools.lru_cache(maxsize=None)
def _vmem_limit_bytes():
    """Generation-aware scoped VMEM limit (half of physical, capped at 64 MiB)."""
    phys = 64 << 20
    try:
        phys = int(getattr(pltpu.get_tpu_info(), "vmem_capacity_bytes", phys) or phys)
    except Exception:
        pass
    return max(32 << 20, min(phys // 2, 64 << 20))


def _choose_block_n(n, hw):
    """Batch elements per block: big DMAs, but fits double-buffers + temps in VMEM."""
    per_sample = NUM_ANCHORS * NUM_OUTPUTS * hw * 4  # bytes (input == output size)
    # 2x input bufs + 2x output bufs + ~3-4x in-kernel temporaries -> budget /8.
    cap = max(1, _vmem_limit_bytes() // (8 * per_sample))
    # Keep a handful of grid steps when the batch allows it, so the DMA of block
    # i+1 overlaps compute/writeback of block i (and megacore has work to split).
    want = -(-n // min(n, 4))
    return max(1, min(n, cap, want))


def _decode_kernel_fused(grid_ref, anchors_ref, x_ref, o_ref, *, stride):
    """Decode one batch-block (all 3 anchors) of one pyramid level, permute fused.

    grid_ref:    (HW, 2) f32   -- lane 0: x (column) coord, lane 1: y (row) coord
    anchors_ref: (1, A, 1, 2) f32 anchor (w, h)
    x_ref:       (Bn, A, NO, HW) raw network outputs
    o_ref:       (Bn, A, HW, NO) decoded boxes/scores (lane dim = NO)
    """
    # One XLU transpose of the raw block (last two dims); this replaces a full
    # external XLA permute pass over the whole tensor in HBM.
    xt = jnp.swapaxes(x_ref[...], -1, -2)                      # (Bn, A, HW, NO)
    g = grid_ref[...]                                          # (HW, 2)

    # Channels 0:2 -> (sigmoid + grid) * stride
    o_ref[:, :, :, 0:2] = (
        (jax.nn.sigmoid(xt[:, :, :, 0:2]) + g) * stride).astype(o_ref.dtype)
    # Channels 2:4 -> exp * anchor (w, h)   (wh_mode == 'v3'), single fused slab
    o_ref[:, :, :, 2:4] = (
        jnp.exp(xt[:, :, :, 2:4]) * anchors_ref[...]).astype(o_ref.dtype)
    # Channels 4:  -> sigmoid (objectness + classes)
    o_ref[:, :, :, 4:] = jax.nn.sigmoid(xt[:, :, :, 4:]).astype(o_ref.dtype)


def _decode_kernel_unfused(grid_ref, anchors_ref, x_ref, o_ref, *, stride):
    """Fallback: decode in the raw (NO, HW) layout; XLA does the final permute.

    grid_ref:    (2, HW) f32;  anchors_ref: (1, A, 2, 1);  x/o: (Bn, A, NO, HW).
    """
    g = grid_ref[...]
    o_ref[:, :, 0:2, :] = (
        (jax.nn.sigmoid(x_ref[:, :, 0:2, :]) + g) * stride).astype(o_ref.dtype)
    o_ref[:, :, 2:4, :] = (
        jnp.exp(x_ref[:, :, 2:4, :]) * anchors_ref[...]).astype(o_ref.dtype)
    o_ref[:, :, 4:, :] = jax.nn.sigmoid(x_ref[:, :, 4:, :]).astype(o_ref.dtype)


def _decode_level(pred_nchw, level, fused=True):
    """pred_nchw: (N, A*NO, H, W) -> (N, A*H*W, NO) decoded, matching PyTorch."""
    n, c, h, w = pred_nchw.shape
    assert c == NUM_ANCHORS * NUM_OUTPUTS
    hw = h * w
    dt = pred_nchw.dtype
    x = pred_nchw.reshape(n, NUM_ANCHORS, NUM_OUTPUTS, hw)     # pure view

    gy, gx = jnp.meshgrid(jnp.arange(h, dtype=dt), jnp.arange(w, dtype=dt),
                          indexing="ij")
    anchors = jnp.asarray(ANCHORS[level], dtype=dt)            # (A, 2)
    stride = float(STRIDES[level])

    block_n = _choose_block_n(n, hw)
    grid = (pl.cdiv(n, block_n),)

    n_elems = n * NUM_ANCHORS * NUM_OUTPUTS * hw
    cost = pl.CostEstimate(flops=3 * n_elems, transcendentals=n_elems,
                           bytes_accessed=2 * n_elems * 4)

    if fused:
        grid_xy = jnp.stack([gx.reshape(-1), gy.reshape(-1)], axis=1)   # (hw, 2)
        anchors_in = anchors.reshape(1, NUM_ANCHORS, 1, 2)
        kernel = functools.partial(_decode_kernel_fused, stride=stride)
        in_specs = [
            pl.BlockSpec((hw, 2), lambda i: (0, 0)),
            pl.BlockSpec((1, NUM_ANCHORS, 1, 2), lambda i: (0, 0, 0, 0)),
            pl.BlockSpec((block_n, NUM_ANCHORS, NUM_OUTPUTS, hw),
                         lambda i: (i, 0, 0, 0)),
        ]
        out_spec = pl.BlockSpec((block_n, NUM_ANCHORS, hw, NUM_OUTPUTS),
                                lambda i: (i, 0, 0, 0))
        out_shape = jax.ShapeDtypeStruct((n, NUM_ANCHORS, hw, NUM_OUTPUTS), dt)
    else:
        grid_xy = jnp.stack([gx.reshape(-1), gy.reshape(-1)], axis=0)   # (2, hw)
        anchors_in = anchors.reshape(1, NUM_ANCHORS, 2, 1)
        kernel = functools.partial(_decode_kernel_unfused, stride=stride)
        in_specs = [
            pl.BlockSpec((2, hw), lambda i: (0, 0)),
            pl.BlockSpec((1, NUM_ANCHORS, 2, 1), lambda i: (0, 0, 0, 0)),
            pl.BlockSpec((block_n, NUM_ANCHORS, NUM_OUTPUTS, hw),
                         lambda i: (i, 0, 0, 0)),
        ]
        out_spec = pl.BlockSpec((block_n, NUM_ANCHORS, NUM_OUTPUTS, hw),
                                lambda i: (i, 0, 0, 0))
        out_shape = jax.ShapeDtypeStruct((n, NUM_ANCHORS, NUM_OUTPUTS, hw), dt)

    out = pl.pallas_call(
        kernel,
        out_shape=out_shape,
        grid=grid,
        in_specs=in_specs,
        out_specs=out_spec,
        compiler_params=pltpu.CompilerParams(
            dimension_semantics=("parallel",),
            vmem_limit_bytes=_vmem_limit_bytes()),
        cost_estimate=cost,
    )(grid_xy, anchors_in, x)

    if fused:
        # (n, A, hw, NO) -> (n, A*hw, NO): contiguous reshape, pure view.
        return out.reshape(n, NUM_ANCHORS * hw, NUM_OUTPUTS)
    # Fallback layout: torch-matching permute done by XLA.
    return jnp.transpose(out, (0, 1, 3, 2)).reshape(n, NUM_ANCHORS * hw, NUM_OUTPUTS)


_FUSED_OK = None  # lazily decided: does the in-kernel transpose lower on this TPU?


def yolov3_target_forward(preds):
    """Inference forward of YOLOV3Target (targets=None). preds: tuple of NCHW."""
    global _FUSED_OK
    if not isinstance(preds, (tuple, list)):
        preds = (preds,)
    if _FUSED_OK is not False:
        try:
            outs = [_decode_level(p, i, fused=True) for i, p in enumerate(preds)]
            out = jnp.concatenate(outs, axis=1)
            if _FUSED_OK is None:
                out = jax.block_until_ready(out)  # force compile/run once
                _FUSED_OK = True
            return out
        except Exception:
            _FUSED_OK = False  # fall back to the unfused (proven) layout
    outs = [_decode_level(p, i, fused=False) for i, p in enumerate(preds)]
    return jnp.concatenate(outs, axis=1)


# ---------------- pure-JAX reference (for correctness check) ----------------
def _ref_decode_level(pred_nchw, level):
    n, c, h, w = pred_nchw.shape
    p = pred_nchw.reshape(n, NUM_ANCHORS, NUM_OUTPUTS, h, w)
    p = jnp.transpose(p, (0, 1, 3, 4, 2))  # (n, A, h, w, NO)
    gy, gx = jnp.meshgrid(jnp.arange(h), jnp.arange(w), indexing="ij")
    grid = jnp.stack([gx, gy], axis=-1).astype(pred_nchw.dtype)  # (h, w, 2)
    anchors = jnp.asarray(ANCHORS[level], dtype=pred_nchw.dtype)  # (A, 2)
    xy = (jax.nn.sigmoid(p[..., 0:2]) + grid) * STRIDES[level]
    wh = jnp.exp(p[..., 2:4]) * anchors.reshape(1, NUM_ANCHORS, 1, 1, 2)
    rest = jax.nn.sigmoid(p[..., 4:])
    out = jnp.concatenate([xy, wh, rest], axis=-1)
    return out.reshape(n, -1, NUM_OUTPUTS)


def _ref_forward(preds):
    return jnp.concatenate(
        [_ref_decode_level(p, i) for i, p in enumerate(preds)], axis=1)


if __name__ == "__main__":
    key = jax.random.PRNGKey(0)
    batch = 2
    c = NUM_ANCHORS * NUM_OUTPUTS  # 255
    spatials = (16, 8, 4)          # one per pyramid level (strides 8/16/32)

    preds = []
    for s in spatials:
        key, sub = jax.random.split(key)
        preds.append(jax.random.normal(sub, (batch, c, s, s), dtype=jnp.float32))
    preds = tuple(preds)

    out = jax.block_until_ready(yolov3_target_forward(preds))
    ref = jax.block_until_ready(_ref_forward(preds))

    expected_rows = sum(NUM_ANCHORS * s * s for s in spatials)
    assert out.shape == (batch, expected_rows, NUM_OUTPUTS), out.shape
    assert jnp.allclose(out, ref, atol=1e-4, rtol=1e-4), float(
        jnp.max(jnp.abs(out - ref)))

    print("KERNEL_OK")
</pallas_src>

<mosaic_0001>
module attributes {stable_mosaic.version = 11 : i64} {
  func.func @_decode_kernel_fused(%arg0: i32, %arg1: memref<256x2xf32, #tpu.memory_space<vmem>>, %arg2: memref<1x3x1x2xf32, #tpu.memory_space<vmem>>, %arg3: memref<1x3x85x256xf32, #tpu.memory_space<vmem>>, %arg4: memref<1x3x256x85xf32, #tpu.memory_space<vmem>>) attributes {dimension_semantics = [#tpu.dimension_semantics<parallel>], iteration_bounds = array<i64: 2>, scalar_prefetch = 0 : i64, scratch_operands = 0 : i64, tpu.core_type = #tpu.core_type<tc>, window_params = [{pipeline_mode = #tpu.pipeline_mode<synchronous>, transform_indices = @transform_0, window_bounds = array<i64: 256, 2>}, {pipeline_mode = #tpu.pipeline_mode<synchronous>, transform_indices = @transform_1, window_bounds = array<i64: 1, 3, 1, 2>}, {transform_indices = @transform_2, window_bounds = array<i64: 1, 3, 85, 256>}, {transform_indices = @transform_3, window_bounds = array<i64: 1, 3, 256, 85>}]} {
    %c0 = arith.constant 0 : index
    %c0_0 = arith.constant 0 : index
    %c0_1 = arith.constant 0 : index
    %c0_2 = arith.constant 0 : index
    %0 = vector.load %arg3[%c0, %c0_0, %c0_1, %c0_2] : memref<1x3x85x256xf32, #tpu.memory_space<vmem>>, vector<1x3x85x256xf32>
    %1 = tpu.transpose %0, [0, 1, 3, 2] : vector<1x3x85x256xf32> -> vector<1x3x256x85xf32>
    %c0_3 = arith.constant 0 : index
    %c0_4 = arith.constant 0 : index
    %2 = vector.load %arg1[%c0_3, %c0_4] : memref<256x2xf32, #tpu.memory_space<vmem>>, vector<256x2xf32>
    %3 = vector.extract_strided_slice %1 {offsets = [0, 0, 0, 0], sizes = [1, 3, 256, 2], strides = [1, 1, 1, 1]} : vector<1x3x256x85xf32> to vector<1x3x256x2xf32>
    %4 = arith.negf %3 : vector<1x3x256x2xf32>
    %5 = math.exp %4 : vector<1x3x256x2xf32>
    %cst = arith.constant 1.000000e+00 : f32
    %6 = vector.broadcast %cst : f32 to vector<1x3x256x2xf32>
    %7 = arith.addf %6, %5 : vector<1x3x256x2xf32>
    %8 = arith.divf %6, %7 : vector<1x3x256x2xf32>
    %9 = vector.shape_cast %2 : vector<256x2xf32> to vector<1x1x256x2xf32>
    %10 = vector.broadcast %9 : vector<1x1x256x2xf32> to vector<1x3x256x2xf32>
    %11 = arith.addf %8, %10 : vector<1x3x256x2xf32>
    %cst_5 = arith.constant 8.000000e+00 : f32
    %12 = vector.broadcast %cst_5 : f32 to vector<1x3x256x2xf32>
    %13 = arith.mulf %11, %12 : vector<1x3x256x2xf32>
    %c0_6 = arith.constant 0 : index
    %c0_7 = arith.constant 0 : index
    %c0_8 = arith.constant 0 : index
    %c0_9 = arith.constant 0 : index
    %14 = vector.load %arg4[%c0_6, %c0_7, %c0_8, %c0_9] : memref<1x3x256x85xf32, #tpu.memory_space<vmem>>, vector<1x3x256x2xf32>
    tpu.vector_store %arg4[%c0_6, %c0_7, %c0_8, %c0_9], %13 {strides = array<i32>} : memref<1x3x256x85xf32, #tpu.memory_space<vmem>>, vector<1x3x256x2xf32>,
    %15 = vector.extract_strided_slice %1 {offsets = [0, 0, 0, 2], sizes = [1, 3, 256, 2], strides = [1, 1, 1, 1]} : vector<1x3x256x85xf32> to vector<1x3x256x2xf32>
    %16 = math.exp %15 : vector<1x3x256x2xf32>
    %c0_10 = arith.constant 0 : index
    %c0_11 = arith.constant 0 : index
    %c0_12 = arith.constant 0 : index
    %c0_13 = arith.constant 0 : index
    %17 = vector.load %arg2[%c0_10, %c0_11, %c0_12, %c0_13] : memref<1x3x1x2xf32, #tpu.memory_space<vmem>>, vector<1x3x1x2xf32>
    %18 = vector.broadcast %17 : vector<1x3x1x2xf32> to vector<1x3x256x2xf32>
    %19 = arith.mulf %16, %18 : vector<1x3x256x2xf32>
    %c0_14 = arith.constant 0 : index
    %c0_15 = arith.constant 0 : index
    %c0_16 = arith.constant 0 : index
    %c2 = arith.constant 2 : index
    %20 = vector.load %arg4[%c0_14, %c0_15, %c0_16, %c2] : memref<1x3x256x85xf32, #tpu.memory_space<vmem>>, vector<1x3x256x2xf32>
    tpu.vector_store %arg4[%c0_14, %c0_15, %c0_16, %c2], %19 {strides = array<i32>} : memref<1x3x256x85xf32, #tpu.memory_space<vmem>>, vector<1x3x256x2xf32>,
    %21 = vector.extract_strided_slice %1 {offsets = [0, 0, 0, 4], sizes = [1, 3, 256, 81], strides = [1, 1, 1, 1]} : vector<1x3x256x85xf32> to vector<1x3x256x81xf32>
    %22 = arith.negf %21 : vector<1x3x256x81xf32>
    %23 = math.exp %22 : vector<1x3x256x81xf32>
    %cst_17 = arith.constant 1.000000e+00 : f32
    %24 = vector.broadcast %cst_17 : f32 to vector<1x3x256x81xf32>
    %25 = arith.addf %24, %23 : vector<1x3x256x81xf32>
    %26 = arith.divf %24, %25 : vector<1x3x256x81xf32>
    %c0_18 = arith.constant 0 : index
    %c0_19 = arith.constant 0 : index
    %c0_20 = arith.constant 0 : index
    %c4 = arith.constant 4 : index
    %27 = vector.load %arg4[%c0_18, %c0_19, %c0_20, %c4] : memref<1x3x256x85xf32, #tpu.memory_space<vmem>>, vector<1x3x256x81xf32>
    tpu.vector_store %arg4[%c0_18, %c0_19, %c0_20, %c4], %26 {strides = array<i32>} : memref<1x3x256x85xf32, #tpu.memory_space<vmem>>, vector<1x3x256x81xf32>,
    return
  }
  func.func @transform_0(%arg0: i32) -> (i32, i32) {
    %c0_i32 = arith.constant 0 : i32
    %c0_i32_0 = arith.constant 0 : i32
    %c0_i32_1 = arith.constant 0 : i32
    return %c0_i32, %c0_i32_0 : i32, i32
  }
  func.func @transform_1(%arg0: i32) -> (i32, i32, i32, i32) {
    %c0_i32 = arith.constant 0 : i32
    %c0_i32_0 = arith.constant 0 : i32
    %c0_i32_1 = arith.constant 0 : i32
    %c0_i32_2 = arith.constant 0 : i32
    %c0_i32_3 = arith.constant 0 : i32
    return %c0_i32, %c0_i32_0, %c0_i32_1, %c0_i32_2 : i32, i32, i32, i32
  }
  func.func @transform_2(%arg0: i32) -> (i32, i32, i32, i32) {
    %c0_i32 = arith.constant 0 : i32
    %c0_i32_0 = arith.constant 0 : i32
    %c0_i32_1 = arith.constant 0 : i32
    %c0_i32_2 = arith.constant 0 : i32
    return %arg0, %c0_i32, %c0_i32_0, %c0_i32_1 : i32, i32, i32, i32
  }
  func.func @transform_3(%arg0: i32) -> (i32, i32, i32, i32) {
    %c0_i32 = arith.constant 0 : i32
    %c0_i32_0 = arith.constant 0 : i32
    %c0_i32_1 = arith.constant 0 : i32
    %c0_i32_2 = arith.constant 0 : i32
    return %arg0, %c0_i32, %c0_i32_0, %c0_i32_1 : i32, i32, i32, i32
  }
}

module attributes {stable_mosaic.version = 11 : i64} {
  func.func @_decode_kernel_unfused(%arg0: i32, %arg1: memref<2x256xf32, #tpu.memory_space<vmem>>, %arg2: memref<1x3x2x1xf32, #tpu.memory_space<vmem>>, %arg3: memref<1x3x85x256xf32, #tpu.memory_space<vmem>>, %arg4: memref<1x3x85x256xf32, #tpu.memory_space<vmem>>) attributes {dimension_semantics = [#tpu.dimension_semantics<parallel>], iteration_bounds = array<i64: 2>, scalar_prefetch = 0 : i64, scratch_operands = 0 : i64, tpu.core_type = #tpu.core_type<tc>, window_params = [{pipeline_mode = #tpu.pipeline_mode<synchronous>, transform_indices = @transform_0, window_bounds = array<i64: 2, 256>}, {pipeline_mode = #tpu.pipeline_mode<synchronous>, transform_indices = @transform_1, window_bounds = array<i64: 1, 3, 2, 1>}, {transform_indices = @transform_2, window_bounds = array<i64: 1, 3, 85, 256>}, {transform_indices = @transform_3, window_bounds = array<i64: 1, 3, 85, 256>}]} {
    %c0 = arith.constant 0 : index
    %c0_0 = arith.constant 0 : index
    %0 = vector.load %arg1[%c0, %c0_0] : memref<2x256xf32, #tpu.memory_space<vmem>>, vector<2x256xf32>
    %c0_1 = arith.constant 0 : index
    %c0_2 = arith.constant 0 : index
    %c0_3 = arith.constant 0 : index
    %c0_4 = arith.constant 0 : index
    %1 = vector.load %arg3[%c0_1, %c0_2, %c0_3, %c0_4] : memref<1x3x85x256xf32, #tpu.memory_space<vmem>>, vector<1x3x2x256xf32>
    %2 = arith.negf %1 : vector<1x3x2x256xf32>
    %3 = math.exp %2 : vector<1x3x2x256xf32>
    %cst = arith.constant 1.000000e+00 : f32
    %4 = vector.broadcast %cst : f32 to vector<1x3x2x256xf32>
    %5 = arith.addf %4, %3 : vector<1x3x2x256xf32>
    %6 = arith.divf %4, %5 : vector<1x3x2x256xf32>
    %7 = vector.shape_cast %0 : vector<2x256xf32> to vector<1x1x2x256xf32>
    %8 = vector.broadcast %7 : vector<1x1x2x256xf32> to vector<1x3x2x256xf32>
    %9 = arith.addf %6, %8 : vector<1x3x2x256xf32>
    %cst_5 = arith.constant 8.000000e+00 : f32
    %10 = vector.broadcast %cst_5 : f32 to vector<1x3x2x256xf32>
    %11 = arith.mulf %9, %10 : vector<1x3x2x256xf32>
    %c0_6 = arith.constant 0 : index
    %c0_7 = arith.constant 0 : index
    %c0_8 = arith.constant 0 : index
    %c0_9 = arith.constant 0 : index
    %12 = vector.load %arg4[%c0_6, %c0_7, %c0_8, %c0_9] : memref<1x3x85x256xf32, #tpu.memory_space<vmem>>, vector<1x3x2x256xf32>
    tpu.vector_store %arg4[%c0_6, %c0_7, %c0_8, %c0_9], %11 {strides = array<i32>} : memref<1x3x85x256xf32, #tpu.memory_space<vmem>>, vector<1x3x2x256xf32>,
    %c0_10 = arith.constant 0 : index
    %c0_11 = arith.constant 0 : index
    %c2 = arith.constant 2 : index
    %c0_12 = arith.constant 0 : index
    %13 = vector.load %arg3[%c0_10, %c0_11, %c2, %c0_12] : memref<1x3x85x256xf32, #tpu.memory_space<vmem>>, vector<1x3x2x256xf32>
    %14 = math.exp %13 : vector<1x3x2x256xf32>
    %c0_13 = arith.constant 0 : index
    %c0_14 = arith.constant 0 : index
    %c0_15 = arith.constant 0 : index
    %c0_16 = arith.constant 0 : index
    %15 = vector.load %arg2[%c0_13, %c0_14, %c0_15, %c0_16] : memref<1x3x2x1xf32, #tpu.memory_space<vmem>>, vector<1x3x2x1xf32>
    %16 = vector.broadcast %15 : vector<1x3x2x1xf32> to vector<1x3x2x256xf32>
    %17 = arith.mulf %14, %16 : vector<1x3x2x256xf32>
    %c0_17 = arith.constant 0 : index
    %c0_18 = arith.constant 0 : index
    %c2_19 = arith.constant 2 : index
    %c0_20 = arith.constant 0 : index
    %18 = vector.load %arg4[%c0_17, %c0_18, %c2_19, %c0_20] : memref<1x3x85x256xf32, #tpu.memory_space<vmem>>, vector<1x3x2x256xf32>
    tpu.vector_store %arg4[%c0_17, %c0_18, %c2_19, %c0_20], %17 {strides = array<i32>} : memref<1x3x85x256xf32, #tpu.memory_space<vmem>>, vector<1x3x2x256xf32>,
    %c0_21 = arith.constant 0 : index
    %c0_22 = arith.constant 0 : index
    %c4 = arith.constant 4 : index
    %c0_23 = arith.constant 0 : index
    %19 = vector.load %arg3[%c0_21, %c0_22, %c4, %c0_23] : memref<1x3x85x256xf32, #tpu.memory_space<vmem>>, vector<1x3x81x256xf32>
    %20 = arith.negf %19 : vector<1x3x81x256xf32>
    %21 = math.exp %20 : vector<1x3x81x256xf32>
    %cst_24 = arith.constant 1.000000e+00 : f32
    %22 = vector.broadcast %cst_24 : f32 to vector<1x3x81x256xf32>
    %23 = arith.addf %22, %21 : vector<1x3x81x256xf32>
    %24 = arith.divf %22, %23 : vector<1x3x81x256xf32>
    %c0_25 = arith.constant 0 : index
    %c0_26 = arith.constant 0 : index
    %c4_27 = arith.constant 4 : index
    %c0_28 = arith.constant 0 : index
    %25 = vector.load %arg4[%c0_25, %c0_26, %c4_27, %c0_28] : memref<1x3x85x256xf32, #tpu.memory_space<vmem>>, vector<1x3x81x256xf32>
    tpu.vector_store %arg4[%c0_25, %c0_26, %c4_27, %c0_28], %24 {strides = array<i32>} : memref<1x3x85x256xf32, #tpu.memory_space<vmem>>, vector<1x3x81x256xf32>,
    return
  }
  func.func @transform_0(%arg0: i32) -> (i32, i32) {
    %c0_i32 = arith.constant 0 : i32
    %c0_i32_0 = arith.constant 0 : i32
    %c0_i32_1 = arith.constant 0 : i32
    return %c0_i32, %c0_i32_0 : i32, i32
  }
  func.func @transform_1(%arg0: i32) -> (i32, i32, i32, i32) {
    %c0_i32 = arith.constant 0 : i32
    %c0_i32_0 = arith.constant 0 : i32
    %c0_i32_1 = arith.constant 0 : i32
    %c0_i32_2 = arith.constant 0 : i32
    %c0_i32_3 = arith.constant 0 : i32
    return %c0_i32, %c0_i32_0, %c0_i32_1, %c0_i32_2 : i32, i32, i32, i32
  }
  func.func @transform_2(%arg0: i32) -> (i32, i32, i32, i32) {
    %c0_i32 = arith.constant 0 : i32
    %c0_i32_0 = arith.constant 0 : i32
    %c0_i32_1 = arith.constant 0 : i32
    %c0_i32_2 = arith.constant 0 : i32
    return %arg0, %c0_i32, %c0_i32_0, %c0_i32_1 : i32, i32, i32, i32
  }
  func.func @transform_3(%arg0: i32) -> (i32, i32, i32, i32) {
    %c0_i32 = arith.constant 0 : i32
    %c0_i32_0 = arith.constant 0 : i32
    %c0_i32_1 = arith.constant 0 : i32
    %c0_i32_2 = arith.constant 0 : i32
    return %arg0, %c0_i32, %c0_i32_0, %c0_i32_1 : i32, i32, i32, i32
  }
}

</mosaic_0001>

<llo_original>
// kernel: tpu_custom_call.1
$region0: #{tpu_custom_call.1}
  #allocation0 [shape = 'u32[]', space=smem, size = 0x4, offset = 0x4, fixed_abs, tag = 'smem constant byte address 0x4 - core index']
  #allocation1 [shape = 'u32[72,128]{1,0:T(1,128)}', space=vmem, size = 0x9000, scoped, tag = 'internal scratch']
  %s0 = inlined_call_operand.vmem [shape: f32[256,2], index: 0, kind: input, shape index: {}]
  %s1 = inlined_call_operand.vmem [shape: f32[1,3,1,2], index: 1, kind: input, shape index: {}]
  %s2 = inlined_call_operand.vmem [shape: f32[2,3,85,256], index: 2, kind: input, shape index: {}]
  %s3 = inlined_call_operand.vmem [shape: f32[2,3,256,85], index: 3, kind: output, shape index: {}]
  %s4 = sld [smem:[#allocation0]]
  $region45: #{tpu_custom_call.1} parent=0
    _
  %s6 = ssub.s32 1, %s4
  %s7 = scalar_select 0, %s6, %s4
  loop: start=0, step=1, limit=4
  $region2: #{tpu_custom_call.1} parent=0 // loop_pre_header
    _
  $region3: #{tpu_custom_call.1} parent=0 // loop_header
    %s9 = sphi 0, %s13
    %p10 = scmp.ge.s32.totalorder %s9, 4
    %s17 = sphi 0, %s17
    %s19 = sphi 0, %s17
    %s20 = sphi 0, %s19
    %s34 = sphi 0, %s20
    %s38 = sphi 0, %s38
    %s40 = sphi 0, %s38
    %s41 = sphi 0, %s40
    %s55 = sphi 0, %s41
    %s61 = sphi 0, %s63
    %s64 = sphi 0, %s61
    %s65 = sphi 0, %s64
    %s81 = sphi 0, %s65
    %s87 = sphi 0, %s89
    %s90 = sphi 0, %s87
    %s91 = sphi 0, %s90
    %s107 = sphi 0, %s91
  $region4: #{tpu_custom_call.1} parent=0 // loop_header_branch
    %12 = sbr.rel (%p10) target = $region8
  $region5: #{tpu_custom_call.1} parent=0 // loop_body
    %s14 = ssub.s32 %s9, 1
    %s15 = ssub.s32 %s9, 2
    %s16 = sadd.s32 %s9, 1
    %s18 = sadd.s32 %s17, 1
    %p21 = scmp.eq.s32.totalorder %s9, 1
    %p22 = scmp.ne.s32.totalorder %s17, %s19
    %p23 = scmp.eq.s32.totalorder %s9, 0
    %p24 = por %p22, %p23
    %p25 = scmp.ne.s32.totalorder %s17, %s19
    %p26 = scmp.eq.s32.totalorder %s14, 1
    %p27 = por %p25, %p26
    %p28 = scmp.ne.s32.totalorder %s19, %s20
    %p29 = scmp.eq.s32.totalorder %s14, 0
    %p30 = por %p28, %p29
    %p31 = scmp.ne.s32.totalorder %s19, %s20
    %p32 = scmp.eq.s32.totalorder %s15, 1
    %p33 = por %p31, %p32
    %p35 = scmp.ne.s32.totalorder %s20, %s34
    %p36 = scmp.eq.s32.totalorder %s15, 0
    %p37 = por %p35, %p36
    %s39 = sadd.s32 %s38, 1
    %p42 = scmp.eq.s32.totalorder %s9, 1
    %p43 = scmp.ne.s32.totalorder %s38, %s40
    %p44 = scmp.eq.s32.totalorder %s9, 0
    %p45 = por %p43, %p44
    %p46 = scmp.ne.s32.totalorder %s38, %s40
    %p47 = scmp.eq.s32.totalorder %s14, 1
    %p48 = por %p46, %p47
    %p49 = scmp.ne.s32.totalorder %s40, %s41
    %p50 = scmp.eq.s32.totalorder %s14, 0
    %p51 = por %p49, %p50
    %p52 = scmp.ne.s32.totalorder %s40, %s41
    %p53 = scmp.eq.s32.totalorder %s15, 1
    %p54 = por %p52, %p53
    %p56 = scmp.ne.s32.totalorder %s41, %s55
    %p57 = scmp.eq.s32.totalorder %s15, 0
    %p58 = por %p56, %p57
    %s59 = ssub.s32 %s9, %s16
    %p60 = scmp.eq.s32.totalorder %s59, 0
    %s62 = sadd.s32 %s61, 1
    %s63 = scalar_select %p60, %s61, %s62
    %p66 = pneg %p60
    %p67 = scmp.eq.s32.totalorder %s9, 1
    %p68 = por %p66, %p67
    %p69 = scmp.ne.s32.totalorder %s61, %s64
    %p70 = scmp.eq.s32.totalorder %s9, 0
    %p71 = por %p69, %p70
    %p72 = scmp.ne.s32.totalorder %s61, %s64
    %p73 = scmp.eq.s32.totalorder %s14, 1
    %p74 = por %p72, %p73
    %p75 = scmp.ne.s32.totalorder %s64, %s65
    %p76 = scmp.eq.s32.totalorder %s14, 0
    %p77 = por %p75, %p76
    %p78 = scmp.ne.s32.totalorder %s64, %s65
    %p79 = scmp.eq.s32.totalorder %s15, 1
    %p80 = por %p78, %p79
    %p82 = scmp.ne.s32.totalorder %s65, %s81
    %p83 = scmp.eq.s32.totalorder %s15, 0
    %p84 = por %p82, %p83
    %s85 = ssub.s32 %s9, %s16
    %p86 = scmp.eq.s32.totalorder %s85, 0
    %s88 = sadd.s32 %s87, 1
    %s89 = scalar_select %p86, %s87, %s88
    %p92 = pneg %p86
    %p93 = scmp.eq.s32.totalorder %s9, 1
    %p94 = por %p92, %p93
    %p95 = scmp.ne.s32.totalorder %s87, %s90
    %p96 = scmp.eq.s32.totalorder %s9, 0
    %p97 = por %p95, %p96
    %p98 = scmp.ne.s32.totalorder %s87, %s90
    %p99 = scmp.eq.s32.totalorder %s14, 1
    %p100 = por %p98, %p99
    %p101 = scmp.ne.s32.totalorder %s90, %s91
    %p102 = scmp.eq.s32.totalorder %s14, 0
    %p103 = por %p101, %p102
    %p104 = scmp.ne.s32.totalorder %s90, %s91
    %p105 = scmp.eq.s32.totalorder %s15, 1
    %p106 = por %p104, %p105
    %p108 = scmp.ne.s32.totalorder %s91, %s107
    %p109 = scmp.eq.s32.totalorder %s15, 0
    %p110 = por %p108, %p109
    %p111 = scmp.le.s32.totalorder 1, %s9
    %p112 = scmp.lt.s32.totalorder %s9, 3
    %p113 = pnand %p111, %p112
    %p114 = pneg %p113
    // Predicated region
    $region9: #{tpu_custom_call.1} parent=5 // pred_check
      _
    $region10: #{tpu_custom_call.1} parent=5 // pred_check_branch
      %116 = sbr.rel (%p113) target = $region12
    $region11: #{tpu_custom_call.1} parent=5 // pred_region
      %s117 = ssub.s32 %s9, 1
      // Predicated region
      $region13: #{tpu_custom_call.1} parent=11 // pred_check
        %p118 = pneg %p30
      $region14: #{tpu_custom_call.1} parent=11 // pred_check_branch
        %120 = sbr.rel (%p118) target = $region16
      $region15: #{tpu_custom_call.1} parent=11 // pred_region
        _
      $region16: #{tpu_custom_call.1} parent=11 // pred_fallthru
        _
      // Predicated region
      $region17: #{tpu_custom_call.1} parent=11 // pred_check
        %p121 = pneg %p51
      $region18: #{tpu_custom_call.1} parent=11 // pred_check_branch
        %123 = sbr.rel (%p121) target = $region20
      $region19: #{tpu_custom_call.1} parent=11 // pred_region
        _
      $region20: #{tpu_custom_call.1} parent=11 // pred_fallthru
        _
    $region12: #{tpu_custom_call.1} parent=5 // pred_fallthru
      _
    %p124 = scmp.lt.s32.totalorder %s9, 2
    // Predicated region
    $region21: #{tpu_custom_call.1} parent=5 // pred_check
      %p125 = pneg %p124
    $region22: #{tpu_custom_call.1} parent=5 // pred_check_branch
      %127 = sbr.rel (%p125) target = $region24
    $region23: #{tpu_custom_call.1} parent=5 // pred_region
      // Predicated region
      $region25: #{tpu_custom_call.1} parent=23 // pred_check
        %p128 = pneg %p71
      $region26: #{tpu_custom_call.1} parent=23 // pred_check_branch
        %130 = sbr.rel (%p128) target = $region28
      $region27: #{tpu_custom_call.1} parent=23 // pred_region
        %p131 = scmp.lt.s32.totalorder %s9, 1
        %s132 = scalar_select %p131, %s9, 1
        %s133 = smul.addr %s132, 66
        %s134 = smul.addr %s133, 8
        %s135 = scalar_lea.vmem %s2, %s134
      $region28: #{tpu_custom_call.1} parent=23 // pred_fallthru
        _
    $region24: #{tpu_custom_call.1} parent=5 // pred_fallthru
      _
    %p136 = scmp.le.s32.totalorder 1, %s9
    %p137 = scmp.lt.s32.totalorder %s9, 3
    %p138 = pnand %p136, %p137
    %p139 = pneg %p138
    // Predicated region
    $region29: #{tpu_custom_call.1} parent=5 // pred_check
      _
    $region30: #{tpu_custom_call.1} parent=5 // pred_check_branch
      %141 = sbr.rel (%p138) target = $region32
    $region31: #{tpu_custom_call.1} parent=5 // pred_region
      %s142 = ssub.s32 %s9, 1
      %p143 = pneg %p30
      %p144 = pneg %p27
      %p145 = pneg %p51
      %p146 = pneg %p48
      %p147 = scmp.lt.s32.totalorder %s14, 1
      %s148 = scalar_select %p147, %s14, 1
      %s149 = smul.addr %s148, 66
      %s150 = smul.addr %s149, 8
      %s151 = scalar_lea.vmem %s2, %s150
      %p152 = pneg %p77
      %p153 = pneg %p74
      %p154 = pneg %p103
      %p155 = pneg %p100
      %p156 = scmp.lt.s32.totalorder %s14, 1
      %s157 = scalar_select %p156, %s14, 1
      %s158 = smul.addr %s157, 96
      %s159 = smul.addr %s158, 8
      %s160 = scalar_lea.vmem %s3, %s159
      %p161 = scmp.lt.s32.totalorder %s14, 1
      %s162 = scalar_select %p161, %s14, 1
      %s163 = smul.addr %s162, 66
      %s164 = smul.addr %s163, 8
      %s165 = scalar_lea.vmem %s2, %s164
      %p166 = scmp.lt.s32.totalorder %s14, 1
      %s167 = scalar_select %p166, %s14, 1
      %s168 = smul.addr %s167, 96
      %s169 = smul.addr %s168, 8
      %s170 = scalar_lea.vmem %s3, %s169
      %v171 = vld [vmem:[%s165] sm:$0xff]
      %v172 = vld [vmem:[%s165 + $0x8] sm:$0xff]
      %v173 = vld [vmem:[%s165 + $0x10] sm:$0xff]
      %v174 = vld [vmem:[%s165 + $0x18] sm:$0xff]
      %v175 = vld [vmem:[%s165 + $0x20] sm:$0xff]
      %v176 = vld [vmem:[%s165 + $0x28] sm:$0xff]
      %v177 = vld [vmem:[%s165 + $0x30] sm:$0xff]
      %v178 = vld [vmem:[%s165 + $0x38] sm:$0xff]
      %v179 = vld [vmem:[%s165 + $0x40] sm:$0xff]
      %v180 = vld [vmem:[%s165 + $0x48] sm:$0xff]
      %v181 = vld [vmem:[%s165 + $0x50] sm:$0xff]
      %v182 = vld [vmem:[%s165 + $0x58] sm:$0xff]
      %v183 = vld [vmem:[%s165 + $0x60] sm:$0xff]
      %v184 = vld [vmem:[%s165 + $0x68] sm:$0xff]
      %v185 = vld [vmem:[%s165 + $0x70] sm:$0xff]
      %v186 = vld [vmem:[%s165 + $0x78] sm:$0xff]
      %v187 = vld [vmem:[%s165 + $0x80] sm:$0xff]
      %v188 = vld [vmem:[%s165 + $0x88] sm:$0xff]
      %v189 = vld [vmem:[%s165 + $0x90] sm:$0xff]
      %v190 = vld [vmem:[%s165 + $0x98] sm:$0xff]
      %v191 = vld [vmem:[%s165 + $0xa0] sm:$0x1f]
      %v192 = vld [vmem:[%s165 + $0xa8] sm:$0x1f]
      %v193 = vld [vmem:[%s165 + $0xb0] sm:$0xff]
      %v194 = vld [vmem:[%s165 + $0xb8] sm:$0xff]
      %v195 = vld [vmem:[%s165 + $0xc0] sm:$0xff]
      %v196 = vld [vmem:[%s165 + $0xc8] sm:$0xff]
      %v197 = vld [vmem:[%s165 + $0xd0] sm:$0xff]
      %v198 = vld [vmem:[%s165 + $0xd8] sm:$0xff]
      %v199 = vld [vmem:[%s165 + $0xe0] sm:$0xff]
      %v200 = vld [vmem:[%s165 + $0xe8] sm:$0xff]
      %v201 = vld [vmem:[%s165 + $0xf0] sm:$0xff]
      %v202 = vld [vmem:[%s165 + $0xf8] sm:$0xff]
      %v203 = vld [vmem:[%s165 + $0x100] sm:$0xff]
      %v204 = vld [vmem:[%s165 + $0x108] sm:$0xff]
      %v205 = vld [vmem:[%s165 + $0x110] sm:$0xff]
      %v206 = vld [vmem:[%s165 + $0x118] sm:$0xff]
      %v207 = vld [vmem:[%s165 + $0x120] sm:$0xff]
      %v208 = vld [vmem:[%s165 + $0x128] sm:$0xff]
      %v209 = vld [vmem:[%s165 + $0x130] sm:$0xff]
      %v210 = vld [vmem:[%s165 + $0x138] sm:$0xff]
      %v211 = vld [vmem:[%s165 + $0x140] sm:$0xff]
      %v212 = vld [vmem:[%s165 + $0x148] sm:$0xff]
      %v213 = vld [vmem:[%s165 + $0x150] sm:$0x1f]
      %v214 = vld [vmem:[%s165 + $0x158] sm:$0x1f]
      %v215 = vld [vmem:[%s165 + $0x160] sm:$0xff]
      %v216 = vld [vmem:[%s165 + $0x168] sm:$0xff]
      %v217 = vld [vmem:[%s165 + $0x170] sm:$0xff]
      %v218 = vld [vmem:[%s165 + $0x178] sm:$0xff]
      %v219 = vld [vmem:[%s165 + $0x180] sm:$0xff]
      %v220 = vld [vmem:[%s165 + $0x188] sm:$0xff]
      %v221 = vld [vmem:[%s165 + $0x190] sm:$0xff]
      %v222 = vld [vmem:[%s165 + $0x198] sm:$0xff]
      %v223 = vld [vmem:[%s165 + $0x1a0] sm:$0xff]
      %v224 = vld [vmem:[%s165 + $0x1a8] sm:$0xff]
      %v225 = vld [vmem:[%s165 + $0x1b0] sm:$0xff]
      %v226 = vld [vmem:[%s165 + $0x1b8] sm:$0xff]
      %v227 = vld [vmem:[%s165 + $0x1c0] sm:$0xff]
      %v228 = vld [vmem:[%s165 + $0x1c8] sm:$0xff]
      %v229 = vld [vmem:[%s165 + $0x1d0] sm:$0xff]
      %v230 = vld [vmem:[%s165 + $0x1d8] sm:$0xff]
      %v231 = vld [vmem:[%s165 + $0x1e0] sm:$0xff]
      %v232 = vld [vmem:[%s165 + $0x1e8] sm:$0xff]
      %v233 = vld [vmem:[%s165 + $0x1f0] sm:$0xff]
      %v234 = vld [vmem:[%s165 + $0x1f8] sm:$0xff]
      %v235 = vld [vmem:[%s165 + $0x200] sm:$0x1f]
      %v236 = vld [vmem:[%s165 + $0x208] sm:$0x1f]
      %237 = vxpose.xlu0.b32.start [1/16] %v171, 128
      %238 = vxpose.xlu0.b32.cont [2/16] %v173, 128
      %239 = vxpose.xlu0.b32.cont [3/16] %v175, 128
      %240 = vxpose.xlu0.b32.cont [4/16] %v177, 128
      %241 = vxpose.xlu0.b32.cont [5/16] %v179, 128
      %242 = vxpose.xlu0.b32.cont [6/16] %v181, 128
      %243 = vxpose.xlu0.b32.cont [7/16] %v183, 128
      %244 = vxpose.xlu0.b32.cont [8/16] %v185, 128
      %245 = vxpose.xlu0.b32.cont [9/16] %v187, 128
      %246 = vxpose.xlu0.b32.cont [10/16] %v189, 128
      %247 = vxpose.xlu0.b32.cont [11/16] %v191, 128
      %248 = vxpose.xlu0.b32.cont [12/16] 0.0, 128
      %249 = vxpose.xlu0.b32.cont [13/16] 0.0, 128
      %250 = vxpose.xlu0.b32.cont [14/16] 0.0, 128
      %251 = vxpose.xlu0.b32.cont [15/16] 0.0, 128
      %252 = vxpose.xlu0.b32.end [16/16] 0.0, 128
      %v253 = vpop.trf.xlu0
      %v254 = vpop.trf.xlu0
      %v255 = vpop.trf.xlu0
      %v256 = vpop.trf.xlu0
      %v257 = vpop.trf.xlu0
      %v258 = vpop.trf.xlu0
      %v259 = vpop.trf.xlu0
      %v260 = vpop.trf.xlu0
      %v261 = vpop.trf.xlu0
      %v262 = vpop.trf.xlu0
      %v263 = vpop.trf.xlu0
      %v264 = vpop.trf.xlu0
      %v265 = vpop.trf.xlu0
      %v266 = vpop.trf.xlu0
      %v267 = vpop.trf.xlu0
      %v268 = vpop.trf.xlu0
      %269 = vxpose.xlu0.b32.start [1/16] %v172, 128
      %270 = vxpose.xlu0.b32.cont [2/16] %v174, 128
      %271 = vxpose.xlu0.b32.cont [3/16] %v176, 128
      %272 = vxpose.xlu0.b32.cont [4/16] %v178, 128
      %273 = vxpose.xlu0.b32.cont [5/16] %v180, 128
      %274 = vxpose.xlu0.b32.cont [6/16] %v182, 128
      %275 = vxpose.xlu0.b32.cont [7/16] %v184, 128
      %276 = vxpose.xlu0.b32.cont [8/16] %v186, 128
      %277 = vxpose.xlu0.b32.cont [9/16] %v188, 128
      %278 = vxpose.xlu0.b32.cont [10/16] %v190, 128
      %279 = vxpose.xlu0.b32.cont [11/16] %v192, 128
      %280 = vxpose.xlu0.b32.cont [12/16] 0.0, 128
      %281 = vxpose.xlu0.b32.cont [13/16] 0.0, 128
      %282 = vxpose.xlu0.b32.cont [14/16] 0.0, 128
      %283 = vxpose.xlu0.b32.cont [15/16] 0.0, 128
      %284 = vxpose.xlu0.b32.end [16/16] 0.0, 128
      %v285 = vpop.trf.xlu0
      %v286 = vpop.trf.xlu0
      %v287 = vpop.trf.xlu0
      %v288 = vpop.trf.xlu0
      %v289 = vpop.trf.xlu0
      %v290 = vpop.trf.xlu0
      %v291 = vpop.trf.xlu0
      %v292 = vpop.trf.xlu0
      %v293 = vpop.trf.xlu0
      %v294 = vpop.trf.xlu0
      %v295 = vpop.trf.xlu0
      %v296 = vpop.trf.xlu0
      %v297 = vpop.trf.xlu0
      %v298 = vpop.trf.xlu0
      %v299 = vpop.trf.xlu0
      %v300 = vpop.trf.xlu0
      %301 = vxpose.xlu0.b32.start [1/16] %v193, 128
      %302 = vxpose.xlu0.b32.cont [2/16] %v195, 128
      %303 = vxpose.xlu0.b32.cont [3/16] %v197, 128
      %304 = vxpose.xlu0.b32.cont [4/16] %v199, 128
      %305 = vxpose.xlu0.b32.cont [5/16] %v201, 128
      %306 = vxpose.xlu0.b32.cont [6/16] %v203, 128
      %307 = vxpose.xlu0.b32.cont [7/16] %v205, 128
      %308 = vxpose.xlu0.b32.cont [8/16] %v207, 128
      %309 = vxpose.xlu0.b32.cont [9/16] %v209, 128
      %310 = vxpose.xlu0.b32.cont [10/16] %v211, 128
      %311 = vxpose.xlu0.b32.cont [11/16] %v213, 128
      %312 = vxpose.xlu0.b32.cont [12/16] 0.0, 128
      %313 = vxpose.xlu0.b32.cont [13/16] 0.0, 128
      %314 = vxpose.xlu0.b32.cont [14/16] 0.0, 128
      %315 = vxpose.xlu0.b32.cont [15/16] 0.0, 128
      %316 = vxpose.xlu0.b32.end [16/16] 0.0, 128
      %v317 = vpop.trf.xlu0
      %v318 = vpop.trf.xlu0
      %v319 = vpop.trf.xlu0
      %v320 = vpop.trf.xlu0
      %v321 = vpop.trf.xlu0
      %v322 = vpop.trf.xlu0
      %v323 = vpop.trf.xlu0
      %v324 = vpop.trf.xlu0
      %v325 = vpop.trf.xlu0
      %v326 = vpop.trf.xlu0
      %v327 = vpop.trf.xlu0
      %v328 = vpop.trf.xlu0
      %v329 = vpop.trf.xlu0
      %v330 = vpop.trf.xlu0
      %v331 = vpop.trf.xlu0
      %v332 = vpop.trf.xlu0
      %333 = vxpose.xlu0.b32.start [1/16] %v194, 128
      %334 = vxpose.xlu0.b32.cont [2/16] %v196, 128
      %335 = vxpose.xlu0.b32.cont [3/16] %v198, 128
      %336 = vxpose.xlu0.b32.cont [4/16] %v200, 128
      %337 = vxpose.xlu0.b32.cont [5/16] %v202, 128
      %338 = vxpose.xlu0.b32.cont [6/16] %v204, 128
      %339 = vxpose.xlu0.b32.cont [7/16] %v206, 128
      %340 = vxpose.xlu0.b32.cont [8/16] %v208, 128
      %341 = vxpose.xlu0.b32.cont [9/16] %v210, 128
      %342 = vxpose.xlu0.b32.cont [10/16] %v212, 128
      %343 = vxpose.xlu0.b32.cont [11/16] %v214, 128
      %344 = vxpose.xlu0.b32.cont [12/16] 0.0, 128
      %345 = vxpose.xlu0.b32.cont [13/16] 0.0, 128
      %346 = vxpose.xlu0.b32.cont [14/16] 0.0, 128
      %347 = vxpose.xlu0.b32.cont [15/16] 0.0, 128
      %348 = vxpose.xlu0.b32.end [16/16] 0.0, 128
      %v349 = vpop.trf.xlu0
      %v350 = vpop.trf.xlu0
      %v351 = vpop.trf.xlu0
      %v352 = vpop.trf.xlu0
      %v353 = vpop.trf.xlu0
      %v354 = vpop.trf.xlu0
      %v355 = vpop.trf.xlu0
      %v356 = vpop.trf.xlu0
      %v357 = vpop.trf.xlu0
      %v358 = vpop.trf.xlu0
      %v359 = vpop.trf.xlu0
      %v360 = vpop.trf.xlu0
      %v361 = vpop.trf.xlu0
      %v362 = vpop.trf.xlu0
      %v363 = vpop.trf.xlu0
      %v364 = vpop.trf.xlu0
      %365 = vxpose.xlu0.b32.start [1/16] %v215, 128
      %366 = vxpose.xlu0.b32.cont [2/16] %v217, 128
      %367 = vxpose.xlu0.b32.cont [3/16] %v219, 128
      %368 = vxpose.xlu0.b32.cont [4/16] %v221, 128
      %369 = vxpose.xlu0.b32.cont [5/16] %v223, 128
      %370 = vxpose.xlu0.b32.cont [6/16] %v225, 128
      %371 = vxpose.xlu0.b32.cont [7/16] %v227, 128
      %372 = vxpose.xlu0.b32.cont [8/16] %v229, 128
      %373 = vxpose.xlu0.b32.cont [9/16] %v231, 128
      %374 = vxpose.xlu0.b32.cont [10/16] %v233, 128
      %375 = vxpose.xlu0.b32.cont [11/16] %v235, 128
      %376 = vxpose.xlu0.b32.cont [12/16] 0.0, 128
      %377 = vxpose.xlu0.b32.cont [13/16] 0.0, 128
      %378 = vxpose.xlu0.b32.cont [14/16] 0.0, 128
      %379 = vxpose.xlu0.b32.cont [15/16] 0.0, 128
      %380 = vxpose.xlu0.b32.end [16/16] 0.0, 128
      %v381 = vpop.trf.xlu0
      %v382 = vpop.trf.xlu0
      %v383 = vpop.trf.xlu0
      %v384 = vpop.trf.xlu0
      %v385 = vpop.trf.xlu0
      %v386 = vpop.trf.xlu0
      %v387 = vpop.trf.xlu0
      %v388 = vpop.trf.xlu0
      %v389 = vpop.trf.xlu0
      %v390 = vpop.trf.xlu0
      %v391 = vpop.trf.xlu0
      %v392 = vpop.trf.xlu0
      %v393 = vpop.trf.xlu0
      %v394 = vpop.trf.xlu0
      %v395 = vpop.trf.xlu0
      %v396 = vpop.trf.xlu0
      %397 = vxpose.xlu0.b32.start [1/16] %v216, 128
      %398 = vxpose.xlu0.b32.cont [2/16] %v218, 128
      %399 = vxpose.xlu0.b32.cont [3/16] %v220, 128
      %400 = vxpose.xlu0.b32.cont [4/16] %v222, 128
      %401 = vxpose.xlu0.b32.cont [5/16] %v224, 128
      %402 = vxpose.xlu0.b32.cont [6/16] %v226, 128
      %403 = vxpose.xlu0.b32.cont [7/16] %v228, 128
      %404 = vxpose.xlu0.b32.cont [8/16] %v230, 128
      %405 = vxpose.xlu0.b32.cont [9/16] %v232, 128
      %406 = vxpose.xlu0.b32.cont [10/16] %v234, 128
      %407 = vxpose.xlu0.b32.cont [11/16] %v236, 128
      %408 = vxpose.xlu0.b32.cont [12/16] 0.0, 128
      %409 = vxpose.xlu0.b32.cont [13/16] 0.0, 128
      %410 = vxpose.xlu0.b32.cont [14/16] 0.0, 128
      %411 = vxpose.xlu0.b32.cont [15/16] 0.0, 128
      %412 = vxpose.xlu0.b32.end [16/16] 0.0, 128
      %v413 = vpop.trf.xlu0
      %v414 = vpop.trf.xlu0
      %v415 = vpop.trf.xlu0
      %v416 = vpop.trf.xlu0
      %v417 = vpop.trf.xlu0
      %v418 = vpop.trf.xlu0
      %v419 = vpop.trf.xlu0
      %v420 = vpop.trf.xlu0
      %v421 = vpop.trf.xlu0
      %v422 = vpop.trf.xlu0
      %v423 = vpop.trf.xlu0
      %v424 = vpop.trf.xlu0
      %v425 = vpop.trf.xlu0
      %v426 = vpop.trf.xlu0
      %v427 = vpop.trf.xlu0
      %v428 = vpop.trf.xlu0
      %v429 = vld [vmem:[%s0] sm:$0xff]
      %v430 = vld [vmem:[%s0 + $0x8] sm:$0xff]
      %v431 = vld [vmem:[%s0 + $0x10] sm:$0xff]
      %v432 = vld [vmem:[%s0 + $0x18] sm:$0xff]
      %v433 = vld [vmem:[%s0 + $0x20] sm:$0xff]
      %v434 = vld [vmem:[%s0 + $0x28] sm:$0xff]
      %v435 = vld [vmem:[%s0 + $0x30] sm:$0xff]
      %v436 = vld [vmem:[%s0 + $0x38] sm:$0xff]
      %v437 = vld [vmem:[%s0 + $0x40] sm:$0xff]
      %v438 = vld [vmem:[%s0 + $0x48] sm:$0xff]
      %v439 = vld [vmem:[%s0 + $0x50] sm:$0xff]
      %v440 = vld [vmem:[%s0 + $0x58] sm:$0xff]
      %v441 = vld [vmem:[%s0 + $0x60] sm:$0xff]
      %v442 = vld [vmem:[%s0 + $0x68] sm:$0xff]
      %v443 = vld [vmem:[%s0 + $0x70] sm:$0xff]
      %v444 = vld [vmem:[%s0 + $0x78] sm:$0xff]
      %v445 = vld [vmem:[%s0 + $0x80] sm:$0xff]
      %v446 = vld [vmem:[%s0 + $0x88] sm:$0xff]
      %v447 = vld [vmem:[%s0 + $0x90] sm:$0xff]
      %v448 = vld [vmem:[%s0 + $0x98] sm:$0xff]
      %v449 = vld [vmem:[%s0 + $0xa0] sm:$0xff]
      %v450 = vld [vmem:[%s0 + $0xa8] sm:$0xff]
      %v451 = vld [vmem:[%s0 + $0xb0] sm:$0xff]
      %v452 = vld [vmem:[%s0 + $0xb8] sm:$0xff]
      %v453 = vld [vmem:[%s0 + $0xc0] sm:$0xff]
      %v454 = vld [vmem:[%s0 + $0xc8] sm:$0xff]
      %v455 = vld [vmem:[%s0 + $0xd0] sm:$0xff]
      %v456 = vld [vmem:[%s0 + $0xd8] sm:$0xff]
      %v457 = vld [vmem:[%s0 + $0xe0] sm:$0xff]
      %v458 = vld [vmem:[%s0 + $0xe8] sm:$0xff]
      %v459 = vld [vmem:[%s0 + $0xf0] sm:$0xff]
      %v460 = vld [vmem:[%s0 + $0xf8] sm:$0xff]
      %v461 = vxor.u32 %v253, 2147483648
      %v462 = vxor.u32 %v254, 2147483648
      %v463 = vxor.u32 %v255, 2147483648
      %v464 = vxor.u32 %v256, 2147483648
      %v465 = vxor.u32 %v257, 2147483648
      %v466 = vxor.u32 %v258, 2147483648
      %v467 = vxor.u32 %v259, 2147483648
      %v468 = vxor.u32 %v260, 2147483648
      %v469 = vxor.u32 %v261, 2147483648
      %v470 = vxor.u32 %v262, 2147483648
      %v471 = vxor.u32 %v263, 2147483648
      %v472 = vxor.u32 %v264, 2147483648
      %v473 = vxor.u32 %v265, 2147483648
      %v474 = vxor.u32 %v266, 2147483648
      %v475 = vxor.u32 %v267, 2147483648
      %v476 = vxor.u32 %v268, 2147483648
      %v477 = vxor.u32 %v285, 2147483648
      %v478 = vxor.u32 %v286, 2147483648
      %v479 = vxor.u32 %v287, 2147483648
      %v480 = vxor.u32 %v288, 2147483648
      %v481 = vxor.u32 %v289, 2147483648
      %v482 = vxor.u32 %v290, 2147483648
      %v483 = vxor.u32 %v291, 2147483648
      %v484 = vxor.u32 %v292, 2147483648
      %v485 = vxor.u32 %v293, 2147483648
      %v486 = vxor.u32 %v294, 2147483648
      %v487 = vxor.u32 %v295, 2147483648
      %v488 = vxor.u32 %v296, 2147483648
      %v489 = vxor.u32 %v297, 2147483648
      %v490 = vxor.u32 %v298, 2147483648
      %v491 = vxor.u32 %v299, 2147483648
      %v492 = vxor.u32 %v300, 2147483648
      %v493 = vxor.u32 %v317, 2147483648
      %v494 = vxor.u32 %v318, 2147483648
      %v495 = vxor.u32 %v319, 2147483648
      %v496 = vxor.u32 %v320, 2147483648
      %v497 = vxor.u32 %v321, 2147483648
      %v498 = vxor.u32 %v322, 2147483648
      %v499 = vxor.u32 %v323, 2147483648
      %v500 = vxor.u32 %v324, 2147483648
      %v501 = vxor.u32 %v325, 2147483648
      %v502 = vxor.u32 %v326, 2147483648
      %v503 = vxor.u32 %v327, 2147483648
      %v504 = vxor.u32 %v328, 2147483648
      %v505 = vxor.u32 %v329, 2147483648
      %v506 = vxor.u32 %v330, 2147483648
      %v507 = vxor.u32 %v331, 2147483648
      %v508 = vxor.u32 %v332, 2147483648
      %v509 = vxor.u32 %v349, 2147483648
      %v510 = vxor.u32 %v350, 2147483648
      %v511 = vxor.u32 %v351, 2147483648
      %v512 = vxor.u32 %v352, 2147483648
      %v513 = vxor.u32 %v353, 2147483648
      %v514 = vxor.u32 %v354, 2147483648
      %v515 = vxor.u32 %v355, 2147483648
      %v516 = vxor.u32 %v356, 2147483648
      %v517 = vxor.u32 %v357, 2147483648
      %v518 = vxor.u32 %v358, 2147483648
      %v519 = vxor.u32 %v359, 2147483648
      %v520 = vxor.u32 %v360, 2147483648
      %v521 = vxor.u32 %v361, 2147483648
      %v522 = vxor.u32 %v362, 2147483648
      %v523 = vxor.u32 %v363, 2147483648
      %v524 = vxor.u32 %v364, 2147483648
      %v525 = vxor.u32 %v381, 2147483648
      %v526 = vxor.u32 %v382, 2147483648
      %v527 = vxor.u32 %v383, 2147483648
      %v528 = vxor.u32 %v384, 2147483648
      %v529 = vxor.u32 %v385, 2147483648
      %v530 = vxor.u32 %v386, 2147483648
      %v531 = vxor.u32 %v387, 2147483648
      %v532 = vxor.u32 %v388, 2147483648
      %v533 = vxor.u32 %v389, 2147483648
      %v534 = vxor.u32 %v390, 2147483648
      %v535 = vxor.u32 %v391, 2147483648
      %v536 = vxor.u32 %v392, 2147483648
      %v537 = vxor.u32 %v393, 2147483648
      %v538 = vxor.u32 %v394, 2147483648
      %v539 = vxor.u32 %v395, 2147483648
      %v540 = vxor.u32 %v396, 2147483648
      %v541 = vxor.u32 %v413, 2147483648
      %v542 = vxor.u32 %v414, 2147483648
      %v543 = vxor.u32 %v415, 2147483648
      %v544 = vxor.u32 %v416, 2147483648
      %v545 = vxor.u32 %v417, 2147483648
      %v546 = vxor.u32 %v418, 2147483648
      %v547 = vxor.u32 %v419, 2147483648
      %v548 = vxor.u32 %v420, 2147483648
      %v549 = vxor.u32 %v421, 2147483648
      %v550 = vxor.u32 %v422, 2147483648
      %v551 = vxor.u32 %v423, 2147483648
      %v552 = vxor.u32 %v424, 2147483648
      %v553 = vxor.u32 %v425, 2147483648
      %v554 = vxor.u32 %v426, 2147483648
      %v555 = vxor.u32 %v427, 2147483648
      %v556 = vxor.u32 %v428, 2147483648
      %v557 = vmul.f32 %v461, 1.442695
      %v558 = vpow.pop %v557
      %v559 = vmul.f32 %v462, 1.442695
      %v560 = vpow.pop %v559
      %v561 = vmul.f32 %v463, 1.442695
      %v562 = vpow.pop %v561
      %v563 = vmul.f32 %v464, 1.442695
      %v564 = vpow.pop %v563
      %v565 = vmul.f32 %v465, 1.442695
      %v566 = vpow.pop %v565
      %v567 = vmul.f32 %v466, 1.442695
      %v568 = vpow.pop %v567
      %v569 = vmul.f32 %v467, 1.442695
      %v570 = vpow.pop %v569
      %v571 = vmul.f32 %v468, 1.442695
      %v572 = vpow.pop %v571
      %v573 = vmul.f32 %v469, 1.442695
      %v574 = vpow.pop %v573
      %v575 = vmul.f32 %v470, 1.442695
      %v576 = vpow.pop %v575
      %v577 = vmul.f32 %v471, 1.442695
      %v578 = vpow.pop %v577
      %v579 = vmul.f32 %v472, 1.442695
      %v580 = vpow.pop %v579
      %v581 = vmul.f32 %v473, 1.442695
      %v582 = vpow.pop %v581
      %v583 = vmul.f32 %v474, 1.442695
      %v584 = vpow.pop %v583
      %v585 = vmul.f32 %v475, 1.442695
      %v586 = vpow.pop %v585
      %v587 = vmul.f32 %v476, 1.442695
      %v588 = vpow.pop %v587
      %v589 = vmul.f32 %v477, 1.442695
      %v590 = vpow.pop %v589
      %v591 = vmul.f32 %v478, 1.442695
      %v592 = vpow.pop %v591
      %v593 = vmul.f32 %v479, 1.442695
      %v594 = vpow.pop %v593
      %v595 = vmul.f32 %v480, 1.442695
      %v596 = vpow.pop %v595
      %v597 = vmul.f32 %v481, 1.442695
      %v598 = vpow.pop %v597
      %v599 = vmul.f32 %v482, 1.442695
      %v600 = vpow.pop %v599
      %v601 = vmul.f32 %v483, 1.442695
      %v602 = vpow.pop %v601
      %v603 = vmul.f32 %v484, 1.442695
      %v604 = vpow.pop %v603
      %v605 = vmul.f32 %v485, 1.442695
      %v606 = vpow.pop %v605
      %v607 = vmul.f32 %v486, 1.442695
      %v608 = vpow.pop %v607
      %v609 = vmul.f32 %v487, 1.442695
      %v610 = vpow.pop %v609
      %v611 = vmul.f32 %v488, 1.442695
      %v612 = vpow.pop %v611
      %v613 = vmul.f32 %v489, 1.442695
      %v614 = vpow.pop %v613
      %v615 = vmul.f32 %v490, 1.442695
      %v616 = vpow.pop %v615
      %v617 = vmul.f32 %v491, 1.442695
      %v618 = vpow.pop %v617
      %v619 = vmul.f32 %v492, 1.442695
      %v620 = vpow.pop %v619
      %v621 = vmul.f32 %v493, 1.442695
      %v622 = vpow.pop %v621
      %v623 = vmul.f32 %v494, 1.442695
      %v624 = vpow.pop %v623
      %v625 = vmul.f32 %v495, 1.442695
      %v626 = vpow.pop %v625
      %v627 = vmul.f32 %v496, 1.442695
      %v628 = vpow.pop %v627
      %v629 = vmul.f32 %v497, 1.442695
      %v630 = vpow.pop %v629
      %v631 = vmul.f32 %v498, 1.442695
      %v632 = vpow.pop %v631
      %v633 = vmul.f32 %v499, 1.442695
      %v634 = vpow.pop %v633
      %v635 = vmul.f32 %v500, 1.442695
      %v636 = vpow.pop %v635
      %v637 = vmul.f32 %v501, 1.442695
      %v638 = vpow.pop %v637
      %v639 = vmul.f32 %v502, 1.442695
      %v640 = vpow.pop %v639
      %v641 = vmul.f32 %v503, 1.442695
      %v642 = vpow.pop %v641
      %v643 = vmul.f32 %v504, 1.442695
      %v644 = vpow.pop %v643
      %v645 = vmul.f32 %v505, 1.442695
      %v646 = vpow.pop %v645
      %v647 = vmul.f32 %v506, 1.442695
      %v648 = vpow.pop %v647
      %v649 = vmul.f32 %v507, 1.442695
      %v650 = vpow.pop %v649
      %v651 = vmul.f32 %v508, 1.442695
      %v652 = vpow.pop %v651
      %v653 = vmul.f32 %v509, 1.442695
      %v654 = vpow.pop %v653
      %v655 = vmul.f32 %v510, 1.442695
      %v656 = vpow.pop %v655
      %v657 = vmul.f32 %v511, 1.442695
      %v658 = vpow.pop %v657
      %v659 = vmul.f32 %v512, 1.442695
      %v660 = vpow.pop %v659
      %v661 = vmul.f32 %v513, 1.442695
      %v662 = vpow.pop %v661
      %v663 = vmul.f32 %v514, 1.442695
      %v664 = vpow.pop %v663
      %v665 = vmul.f32 %v515, 1.442695
      %v666 = vpow.pop %v665
      %v667 = vmul.f32 %v516, 1.442695
      %v668 = vpow.pop %v667
      %v669 = vmul.f32 %v517, 1.442695
      %v670 = vpow.pop %v669
      %v671 = vmul.f32 %v518, 1.442695
      %v672 = vpow.pop %v671
      %v673 = vmul.f32 %v519, 1.442695
      %v674 = vpow.pop %v673
      %v675 = vmul.f32 %v520, 1.442695
      %v676 = vpow.pop %v675
      %v677 = vmul.f32 %v521, 1.442695
      %v678 = vpow.pop %v677
      %v679 = vmul.f32 %v522, 1.442695
      %v680 = vpow.pop %v679
      %v681 = vmul.f32 %v523, 1.442695
      %v682 = vpow.pop %v681
      %v683 = vmul.f32 %v524, 1.442695
      %v684 = vpow.pop %v683
      %v685 = vmul.f32 %v525, 1.442695
      %v686 = vpow.pop %v685
      %v687 = vmul.f32 %v526, 1.442695
      %v688 = vpow.pop %v687
      %v689 = vmul.f32 %v527, 1.442695
      %v690 = vpow.pop %v689
      %v691 = vmul.f32 %v528, 1.442695
      %v692 = vpow.pop %v691
      %v693 = vmul.f32 %v529, 1.442695
      %v694 = vpow.pop %v693
      %v695 = vmul.f32 %v530, 1.442695
      %v696 = vpow.pop %v695
      %v697 = vmul.f32 %v531, 1.442695
      %v698 = vpow.pop %v697
      %v699 = vmul.f32 %v532, 1.442695
      %v700 = vpow.pop %v699
      %v701 = vmul.f32 %v533, 1.442695
      %v702 = vpow.pop %v701
      %v703 = vmul.f32 %v534, 1.442695
      %v704 = vpow.pop %v703
      %v705 = vmul.f32 %v535, 1.442695
      %v706 = vpow.pop %v705
      %v707 = vmul.f32 %v536, 1.442695
      %v708 = vpow.pop %v707
      %v709 = vmul.f32 %v537, 1.442695
      %v710 = vpow.pop %v709
      %v711 = vmul.f32 %v538, 1.442695
      %v712 = vpow.pop %v711
      %v713 = vmul.f32 %v539, 1.442695
      %v714 = vpow.pop %v713
      %v715 = vmul.f32 %v540, 1.442695
      %v716 = vpow.pop %v715
      %v717 = vmul.f32 %v541, 1.442695
      %v718 = vpow.pop %v717
      %v719 = vmul.f32 %v542, 1.442695
      %v720 = vpow.pop %v719
      %v721 = vmul.f32 %v543, 1.442695
      %v722 = vpow.pop %v721
      %v723 = vmul.f32 %v544, 1.442695
      %v724 = vpow.pop %v723
      %v725 = vmul.f32 %v545, 1.442695
      %v726 = vpow.pop %v725
      %v727 = vmul.f32 %v546, 1.442695
      %v728 = vpow.pop %v727
      %v729 = vmul.f32 %v547, 1.442695
      %v730 = vpow.pop %v729
      %v731 = vmul.f32 %v548, 1.442695
      %v732 = vpow.pop %v731
      %v733 = vmul.f32 %v549, 1.442695
      %v734 = vpow.pop %v733
      %v735 = vmul.f32 %v550, 1.442695
      %v736 = vpow.pop %v735
      %v737 = vmul.f32 %v551, 1.442695
      %v738 = vpow.pop %v737
      %v739 = vmul.f32 %v552, 1.442695
      %v740 = vpow.pop %v739
      %v741 = vmul.f32 %v553, 1.442695
      %v742 = vpow.pop %v741
      %v743 = vmul.f32 %v554, 1.442695
      %v744 = vpow.pop %v743
      %v745 = vmul.f32 %v555, 1.442695
      %v746 = vpow.pop %v745
      %v747 = vmul.f32 %v556, 1.442695
      %v748 = vpow.pop %v747
      %v749 = vadd.f32 %v558, 1.0
      %v750 = vadd.f32 %v560, 1.0
      %v751 = vadd.f32 %v562, 1.0
      %v752 = vadd.f32 %v564, 1.0
      %v753 = vadd.f32 %v566, 1.0
      %v754 = vadd.f32 %v568, 1.0
      %v755 = vadd.f32 %v570, 1.0
      %v756 = vadd.f32 %v572, 1.0
      %v757 = vadd.f32 %v574, 1.0
      %v758 = vadd.f32 %v576, 1.0
      %v759 = vadd.f32 %v578, 1.0
      %v760 = vadd.f32 %v580, 1.0
      %v761 = vadd.f32 %v582, 1.0
      %v762 = vadd.f32 %v584, 1.0
      %v763 = vadd.f32 %v586, 1.0
      %v764 = vadd.f32 %v588, 1.0
      %v765 = vadd.f32 %v590, 1.0
      %v766 = vadd.f32 %v592, 1.0
      %v767 = vadd.f32 %v594, 1.0
      %v768 = vadd.f32 %v596, 1.0
      %v769 = vadd.f32 %v598, 1.0
      %v770 = vadd.f32 %v600, 1.0
      %v771 = vadd.f32 %v602, 1.0
      %v772 = vadd.f32 %v604, 1.0
      %v773 = vadd.f32 %v606, 1.0
      %v774 = vadd.f32 %v608, 1.0
      %v775 = vadd.f32 %v610, 1.0
      %v776 = vadd.f32 %v612, 1.0
      %v777 = vadd.f32 %v614, 1.0
      %v778 = vadd.f32 %v616, 1.0
      %v779 = vadd.f32 %v618, 1.0
      %v780 = vadd.f32 %v620, 1.0
      %v781 = vadd.f32 %v622, 1.0
      %v782 = vadd.f32 %v624, 1.0
      %v783 = vadd.f32 %v626, 1.0
      %v784 = vadd.f32 %v628, 1.0
      %v785 = vadd.f32 %v630, 1.0
      %v786 = vadd.f32 %v632, 1.0
      %v787 = vadd.f32 %v634, 1.0
      %v788 = vadd.f32 %v636, 1.0
      %v789 = vadd.f32 %v638, 1.0
      %v790 = vadd.f32 %v640, 1.0
      %v791 = vadd.f32 %v642, 1.0
      %v792 = vadd.f32 %v644, 1.0
      %v793 = vadd.f32 %v646, 1.0
      %v794 = vadd.f32 %v648, 1.0
      %v795 = vadd.f32 %v650, 1.0
      %v796 = vadd.f32 %v652, 1.0
      %v797 = vadd.f32 %v654, 1.0
      %v798 = vadd.f32 %v656, 1.0
      %v799 = vadd.f32 %v658, 1.0
      %v800 = vadd.f32 %v660, 1.0
      %v801 = vadd.f32 %v662, 1.0
      %v802 = vadd.f32 %v664, 1.0
      %v803 = vadd.f32 %v666, 1.0
      %v804 = vadd.f32 %v668, 1.0
      %v805 = vadd.f32 %v670, 1.0
      %v806 = vadd.f32 %v672, 1.0
      %v807 = vadd.f32 %v674, 1.0
      %v808 = vadd.f32 %v676, 1.0
      %v809 = vadd.f32 %v678, 1.0
      %v810 = vadd.f32 %v680, 1.0
      %v811 = vadd.f32 %v682, 1.0
      %v812 = vadd.f32 %v684, 1.0
      %v813 = vadd.f32 %v686, 1.0
      %v814 = vadd.f32 %v688, 1.0
      %v815 = vadd.f32 %v690, 1.0
      %v816 = vadd.f32 %v692, 1.0
      %v817 = vadd.f32 %v694, 1.0
      %v818 = vadd.f32 %v696, 1.0
      %v819 = vadd.f32 %v698, 1.0
      %v820 = vadd.f32 %v700, 1.0
      %v821 = vadd.f32 %v702, 1.0
      %v822 = vadd.f32 %v704, 1.0
      %v823 = vadd.f32 %v706, 1.0
      %v824 = vadd.f32 %v708, 1.0
      %v825 = vadd.f32 %v710, 1.0
      %v826 = vadd.f32 %v712, 1.0
      %v827 = vadd.f32 %v714, 1.0
      %v828 = vadd.f32 %v716, 1.0
      %v829 = vadd.f32 %v718, 1.0
      %v830 = vadd.f32 %v720, 1.0
      %v831 = vadd.f32 %v722, 1.0
      %v832 = vadd.f32 %v724, 1.0
      %v833 = vadd.f32 %v726, 1.0
      %v834 = vadd.f32 %v728, 1.0
      %v835 = vadd.f32 %v730, 1.0
      %v836 = vadd.f32 %v732, 1.0
      %v837 = vadd.f32 %v734, 1.0
      %v838 = vadd.f32 %v736, 1.0
      %v839 = vadd.f32 %v738, 1.0
      %v840 = vadd.f32 %v740, 1.0
      %v841 = vadd.f32 %v742, 1.0
      %v842 = vadd.f32 %v744, 1.0
      %v843 = vadd.f32 %v746, 1.0
      %v844 = vadd.f32 %v748, 1.0
      %v845 = vrcp.pop %v749
      %v846 = vmul.f32 %v749, %v845
      %v847 = vsub.f32 1.0, %v846
      %v848 = vmul.f32 %v845, %v847
      %v849 = vadd.f32 %v845, %v848
      %vm850 = vweird.f32 %v749
      %vm851 = vweird.f32 %v845
      %vm852 = vmor %vm850, %vm851
      %v853 = vsel %vm852, %v845, %v849
      %v854 = vand.u32 2147483647, %v749
      %vm855 = vcmp.eq.f32.partialorder %v854, 8.507059e+37
      %v856 = vand.u32 %v749, 2147483648
      %v857 = vor.u32 1.1754944e-38, %v856
      %v858 = vsel %vm855, %v857, %v853
      %v859 = vmul.f32 1.0, %v858
      %v860 = vrcp.pop %v750
      %v861 = vmul.f32 %v750, %v860
      %v862 = vsub.f32 1.0, %v861
      %v863 = vmul.f32 %v860, %v862
      %v864 = vadd.f32 %v860, %v863
      %vm865 = vweird.f32 %v750
      %vm866 = vweird.f32 %v860
      %vm867 = vmor %vm865, %vm866
      %v868 = vsel %vm867, %v860, %v864
      %v869 = vand.u32 2147483647, %v750
      %vm870 = vcmp.eq.f32.partialorder %v869, 8.507059e+37
      %v871 = vand.u32 %v750, 2147483648
      %v872 = vor.u32 1.1754944e-38, %v871
      %v873 = vsel %vm870, %v872, %v868
      %v874 = vmul.f32 1.0, %v873
      %v875 = vrcp.pop %v751
      %v876 = vmul.f32 %v751, %v875
      %v877 = vsub.f32 1.0, %v876
      %v878 = vmul.f32 %v875, %v877
      %v879 = vadd.f32 %v875, %v878
      %vm880 = vweird.f32 %v751
      %vm881 = vweird.f32 %v875
      %vm882 = vmor %vm880, %vm881
      %v883 = vsel %vm882, %v875, %v879
      %v884 = vand.u32 2147483647, %v751
      %vm885 = vcmp.eq.f32.partialorder %v884, 8.507059e+37
      %v886 = vand.u32 %v751, 2147483648
      %v887 = vor.u32 1.1754944e-38, %v886
      %v888 = vsel %vm885, %v887, %v883
      %v889 = vmul.f32 1.0, %v888
      %v890 = vrcp.pop %v752
      %v891 = vmul.f32 %v752, %v890
      %v892 = vsub.f32 1.0, %v891
      %v893 = vmul.f32 %v890, %v892
      %v894 = vadd.f32 %v890, %v893
      %vm895 = vweird.f32 %v752
      %vm896 = vweird.f32 %v890
      %vm897 = vmor %vm895, %vm896
      %v898 = vsel %vm897, %v890, %v894
      %v899 = vand.u32 2147483647, %v752
      %vm900 = vcmp.eq.f32.partialorder %v899, 8.507059e+37
      %v901 = vand.u32 %v752, 2147483648
      %v902 = vor.u32 1.1754944e-38, %v901
      %v903 = vsel %vm900, %v902, %v898
      %v904 = vmul.f32 1.0, %v903
      %v905 = vrcp.pop %v753
      %v906 = vmul.f32 %v753, %v905
      %v907 = vsub.f32 1.0, %v906
      %v908 = vmul.f32 %v905, %v907
      %v909 = vadd.f32 %v905, %v908
      %vm910 = vweird.f32 %v753
      %vm911 = vweird.f32 %v905
      %vm912 = vmor %vm910, %vm911
      %v913 = vsel %vm912, %v905, %v909
      %v914 = vand.u32 2147483647, %v753
      %vm915 = vcmp.eq.f32.partialorder %v914, 8.507059e+37
      %v916 = vand.u32 %v753, 2147483648
      %v917 = vor.u32 1.1754944e-38, %v916
      %v918 = vsel %vm915, %v917, %v913
      %v919 = vmul.f32 1.0, %v918
      %v920 = vrcp.pop %v754
      %v921 = vmul.f32 %v754, %v920
      %v922 = vsub.f32 1.0, %v921
      %v923 = vmul.f32 %v920, %v922
      %v924 = vadd.f32 %v920, %v923
      %vm925 = vweird.f32 %v754
      %vm926 = vweird.f32 %v920
      %vm927 = vmor %vm925, %vm926
      %v928 = vsel %vm927, %v920, %v924
      %v929 = vand.u32 2147483647, %v754
      %vm930 = vcmp.eq.f32.partialorder %v929, 8.507059e+37
      %v931 = vand.u32 %v754, 2147483648
      %v932 = vor.u32 1.1754944e-38, %v931
      %v933 = vsel %vm930, %v932, %v928
      %v934 = vmul.f32 1.0, %v933
      %v935 = vrcp.pop %v755
      %v936 = vmul.f32 %v755, %v935
      %v937 = vsub.f32 1.0, %v936
      %v938 = vmul.f32 %v935, %v937
      %v939 = vadd.f32 %v935, %v938
      %vm940 = vweird.f32 %v755
      %vm941 = vweird.f32 %v935
      %vm942 = vmor %vm940, %vm941
      %v943 = vsel %vm942, %v935, %v939
      %v944 = vand.u32 2147483647, %v755
      %vm945 = vcmp.eq.f32.partialorder %v944, 8.507059e+37
      %v946 = vand.u32 %v755, 2147483648
      %v947 = vor.u32 1.1754944e-38, %v946
      %v948 = vsel %vm945, %v947, %v943
      %v949 = vmul.f32 1.0, %v948
      %v950 = vrcp.pop %v756
      %v951 = vmul.f32 %v756, %v950
      %v952 = vsub.f32 1.0, %v951
      %v953 = vmul.f32 %v950, %v952
      %v954 = vadd.f32 %v950, %v953
      %vm955 = vweird.f32 %v756
      %vm956 = vweird.f32 %v950
      %vm957 = vmor %vm955, %vm956
      %v958 = vsel %vm957, %v950, %v954
      %v959 = vand.u32 2147483647, %v756
      %vm960 = vcmp.eq.f32.partialorder %v959, 8.507059e+37
      %v961 = vand.u32 %v756, 2147483648
      %v962 = vor.u32 1.1754944e-38, %v961
      %v963 = vsel %vm960, %v962, %v958
      %v964 = vmul.f32 1.0, %v963
      %v965 = vrcp.pop %v757
      %v966 = vmul.f32 %v757, %v965
      %v967 = vsub.f32 1.0, %v966
      %v968 = vmul.f32 %v965, %v967
      %v969 = vadd.f32 %v965, %v968
      %vm970 = vweird.f32 %v757
      %vm971 = vweird.f32 %v965
      %vm972 = vmor %vm970, %vm971
      %v973 = vsel %vm972, %v965, %v969
      %v974 = vand.u32 2147483647, %v757
      %vm975 = vcmp.eq.f32.partialorder %v974, 8.507059e+37
      %v976 = vand.u32 %v757, 2147483648
      %v977 = vor.u32 1.1754944e-38, %v976
      %v978 = vsel %vm975, %v977, %v973
      %v979 = vmul.f32 1.0, %v978
      %v980 = vrcp.pop %v758
      %v981 = vmul.f32 %v758, %v980
      %v982 = vsub.f32 1.0, %v981
      %v983 = vmul.f32 %v980, %v982
      %v984 = vadd.f32 %v980, %v983
      %vm985 = vweird.f32 %v758
      %vm986 = vweird.f32 %v980
      %vm987 = vmor %vm985, %vm986
      %v988 = vsel %vm987, %v980, %v984
      %v989 = vand.u32 2147483647, %v758
      %vm990 = vcmp.eq.f32.partialorder %v989, 8.507059e+37
      %v991 = vand.u32 %v758, 2147483648
      %v992 = vor.u32 1.1754944e-38, %v991
      %v993 = vsel %vm990, %v992, %v988
      %v994 = vmul.f32 1.0, %v993
      %v995 = vrcp.pop %v759
      %v996 = vmul.f32 %v759, %v995
      %v997 = vsub.f32 1.0, %v996
      %v998 = vmul.f32 %v995, %v997
      %v999 = vadd.f32 %v995, %v998
      %vm1000 = vweird.f32 %v759
      %vm1001 = vweird.f32 %v995
      %vm1002 = vmor %vm1000, %vm1001
      %v1003 = vsel %vm1002, %v995, %v999
      %v1004 = vand.u32 2147483647, %v759
      %vm1005 = vcmp.eq.f32.partialorder %v1004, 8.507059e+37
      %v1006 = vand.u32 %v759, 2147483648
      %v1007 = vor.u32 1.1754944e-38, %v1006
      %v1008 = vsel %vm1005, %v1007, %v1003
      %v1009 = vmul.f32 1.0, %v1008
      %v1010 = vrcp.pop %v760
      %v1011 = vmul.f32 %v760, %v1010
      %v1012 = vsub.f32 1.0, %v1011
      %v1013 = vmul.f32 %v1010, %v1012
      %v1014 = vadd.f32 %v1010, %v1013
      %vm1015 = vweird.f32 %v760
      %vm1016 = vweird.f32 %v1010
      %vm1017 = vmor %vm1015, %vm1016
      %v1018 = vsel %vm1017, %v1010, %v1014
      %v1019 = vand.u32 2147483647, %v760
      %vm1020 = vcmp.eq.f32.partialorder %v1019, 8.507059e+37
      %v1021 = vand.u32 %v760, 2147483648
      %v1022 = vor.u32 1.1754944e-38, %v1021
      %v1023 = vsel %vm1020, %v1022, %v1018
      %v1024 = vmul.f32 1.0, %v1023
      %v1025 = vrcp.pop %v761
      %v1026 = vmul.f32 %v761, %v1025
      %v1027 = vsub.f32 1.0, %v1026
      %v1028 = vmul.f32 %v1025, %v1027
      %v1029 = vadd.f32 %v1025, %v1028
      %vm1030 = vweird.f32 %v761
      %vm1031 = vweird.f32 %v1025
      %vm1032 = vmor %vm1030, %vm1031
      %v1033 = vsel %vm1032, %v1025, %v1029
      %v1034 = vand.u32 2147483647, %v761
      %vm1035 = vcmp.eq.f32.partialorder %v1034, 8.507059e+37
      %v1036 = vand.u32 %v761, 2147483648
      %v1037 = vor.u32 1.1754944e-38, %v1036
      %v1038 = vsel %vm1035, %v1037, %v1033
      %v1039 = vmul.f32 1.0, %v1038
      %v1040 = vrcp.pop %v762
      %v1041 = vmul.f32 %v762, %v1040
      %v1042 = vsub.f32 1.0, %v1041
      %v1043 = vmul.f32 %v1040, %v1042
      %v1044 = vadd.f32 %v1040, %v1043
      %vm1045 = vweird.f32 %v762
      %vm1046 = vweird.f32 %v1040
      %vm1047 = vmor %vm1045, %vm1046
      %v1048 = vsel %vm1047, %v1040, %v1044
      %v1049 = vand.u32 2147483647, %v762
      %vm1050 = vcmp.eq.f32.partialorder %v1049, 8.507059e+37
      %v1051 = vand.u32 %v762, 2147483648
      %v1052 = vor.u32 1.1754944e-38, %v1051
      %v1053 = vsel %vm1050, %v1052, %v1048
      %v1054 = vmul.f32 1.0, %v1053
      %v1055 = vrcp.pop %v763
      %v1056 = vmul.f32 %v763, %v1055
      %v1057 = vsub.f32 1.0, %v1056
      %v1058 = vmul.f32 %v1055, %v1057
      %v1059 = vadd.f32 %v1055, %v1058
      %vm1060 = vweird.f32 %v763
      %vm1061 = vweird.f32 %v1055
      %vm1062 = vmor %vm1060, %vm1061
      %v1063 = vsel %vm1062, %v1055, %v1059
      %v1064 = vand.u32 2147483647, %v763
      %vm1065 = vcmp.eq.f32.partialorder %v1064, 8.507059e+37
      %v1066 = vand.u32 %v763, 2147483648
      %v1067 = vor.u32 1.1754944e-38, %v1066
      %v1068 = vsel %vm1065, %v1067, %v1063
      %v1069 = vmul.f32 1.0, %v1068
      %v1070 = vrcp.pop %v764
      %v1071 = vmul.f32 %v764, %v1070
      %v1072 = vsub.f32 1.0, %v1071
      %v1073 = vmul.f32 %v1070, %v1072
      %v1074 = vadd.f32 %v1070, %v1073
      %vm1075 = vweird.f32 %v764
      %vm1076 = vweird.f32 %v1070
      %vm1077 = vmor %vm1075, %vm1076
      %v1078 = vsel %vm1077, %v1070, %v1074
      %v1079 = vand.u32 2147483647, %v764
      %vm1080 = vcmp.eq.f32.partialorder %v1079, 8.507059e+37
      %v1081 = vand.u32 %v764, 2147483648
      %v1082 = vor.u32 1.1754944e-38, %v1081
      %v1083 = vsel %vm1080, %v1082, %v1078
      %v1084 = vmul.f32 1.0, %v1083
      %v1085 = vrcp.pop %v765
      %v1086 = vmul.f32 %v765, %v1085
      %v1087 = vsub.f32 1.0, %v1086
      %v1088 = vmul.f32 %v1085, %v1087
      %v1089 = vadd.f32 %v1085, %v1088
      %vm1090 = vweird.f32 %v765
      %vm1091 = vweird.f32 %v1085
      %vm1092 = vmor %vm1090, %vm1091
      %v1093 = vsel %vm1092, %v1085, %v1089
      %v1094 = vand.u32 2147483647, %v765
      %vm1095 = vcmp.eq.f32.partialorder %v1094, 8.507059e+37
      %v1096 = vand.u32 %v765, 2147483648
      %v1097 = vor.u32 1.1754944e-38, %v1096
      %v1098 = vsel %vm1095, %v1097, %v1093
      %v1099 = vmul.f32 1.0, %v1098
      %v1100 = vrcp.pop %v766
      %v1101 = vmul.f32 %v766, %v1100
      %v1102 = vsub.f32 1.0, %v1101
      %v1103 = vmul.f32 %v1100, %v1102
      %v1104 = vadd.f32 %v1100, %v1103
      %vm1105 = vweird.f32 %v766
      %vm1106 = vweird.f32 %v1100
      %vm1107 = vmor %vm1105, %vm1106
      %v1108 = vsel %vm1107, %v1100, %v1104
      %v1109 = vand.u32 2147483647, %v766
      %vm1110 = vcmp.eq.f32.partialorder %v1109, 8.507059e+37
      %v1111 = vand.u32 %v766, 2147483648
      %v1112 = vor.u32 1.1754944e-38, %v1111
      %v1113 = vsel %vm1110, %v1112, %v1108
      %v1114 = vmul.f32 1.0, %v1113
      %v1115 = vrcp.pop %v767
      %v1116 = vmul.f32 %v767, %v1115
      %v1117 = vsub.f32 1.0, %v1116
      %v1118 = vmul.f32 %v1115, %v1117
      %v1119 = vadd.f32 %v1115, %v1118
      %vm1120 = vweird.f32 %v767
      %vm1121 = vweird.f32 %v1115
      %vm1122 = vmor %vm1120, %vm1121
      %v1123 = vsel %vm1122, %v1115, %v1119
      %v1124 = vand.u32 2147483647, %v767
      %vm1125 = vcmp.eq.f32.partialorder %v1124, 8.507059e+37
      %v1126 = vand.u32 %v767, 2147483648
      %v1127 = vor.u32 1.1754944e-38, %v1126
      %v1128 = vsel %vm1125, %v1127, %v1123
      %v1129 = vmul.f32 1.0, %v1128
      %v1130 = vrcp.pop %v768
      %v1131 = vmul.f32 %v768, %v1130
      %v1132 = vsub.f32 1.0, %v1131
      %v1133 = vmul.f32 %v1130, %v1132
      %v1134 = vadd.f32 %v1130, %v1133
      %vm1135 = vweird.f32 %v768
      %vm1136 = vweird.f32 %v1130
      %vm1137 = vmor %vm1135, %vm1136
      %v1138 = vsel %vm1137, %v1130, %v1134
      %v1139 = vand.u32 2147483647, %v768
      %vm1140 = vcmp.eq.f32.partialorder %v1139, 8.507059e+37
      %v1141 = vand.u32 %v768, 2147483648
      %v1142 = vor.u32 1.1754944e-38, %v1141
      %v1143 = vsel %vm1140, %v1142, %v1138
      %v1144 = vmul.f32 1.0, %v1143
      %v1145 = vrcp.pop %v769
      %v1146 = vmul.f32 %v769, %v1145
      %v1147 = vsub.f32 1.0, %v1146
      %v1148 = vmul.f32 %v1145, %v1147
      %v1149 = vadd.f32 %v1145, %v1148
      %vm1150 = vweird.f32 %v769
      %vm1151 = vweird.f32 %v1145
      %vm1152 = vmor %vm1150, %vm1151
      %v1153 = vsel %vm1152, %v1145, %v1149
      %v1154 = vand.u32 2147483647, %v769
      %vm1155 = vcmp.eq.f32.partialorder %v1154, 8.507059e+37
      %v1156 = vand.u32 %v769, 2147483648
      %v1157 = vor.u32 1.1754944e-38, %v1156
      %v1158 = vsel %vm1155, %v1157, %v1153
      %v1159 = vmul.f32 1.0, %v1158
      %v1160 = vrcp.pop %v770
      %v1161 = vmul.f32 %v770, %v1160
      %v1162 = vsub.f32 1.0, %v1161
      %v1163 = vmul.f32 %v1160, %v1162
      %v1164 = vadd.f32 %v1160, %v1163
      %vm1165 = vweird.f32 %v770
      %vm1166 = vweird.f32 %v1160
      %vm1167 = vmor %vm1165, %vm1166
      %v1168 = vsel %vm1167, %v1160, %v1164
      %v1169 = vand.u32 2147483647, %v770
      %vm1170 = vcmp.eq.f32.partialorder %v1169, 8.507059e+37
      %v1171 = vand.u32 %v770, 2147483648
      %v1172 = vor.u32 1.1754944e-38, %v1171
      %v1173 = vsel %vm1170, %v1172, %v1168
      %v1174 = vmul.f32 1.0, %v1173
      %v1175 = vrcp.pop %v771
      %v1176 = vmul.f32 %v771, %v1175
      %v1177 = vsub.f32 1.0, %v1176
      %v1178 = vmul.f32 %v1175, %v1177
      %v1179 = vadd.f32 %v1175, %v1178
      %vm1180 = vweird.f32 %v771
      %vm1181 = vweird.f32 %v1175
      %vm1182 = vmor %vm1180, %vm1181
      %v1183 = vsel %vm1182, %v1175, %v1179
      %v1184 = vand.u32 2147483647, %v771
      %vm1185 = vcmp.eq.f32.partialorder %v1184, 8.507059e+37
      %v1186 = vand.u32 %v771, 2147483648
      %v1187 = vor.u32 1.1754944e-38, %v1186
      %v1188 = vsel %vm1185, %v1187, %v1183
      %v1189 = vmul.f32 1.0, %v1188
      %v1190 = vrcp.pop %v772
      %v1191 = vmul.f32 %v772, %v1190
      %v1192 = vsub.f32 1.0, %v1191
      %v1193 = vmul.f32 %v1190, %v1192
      %v1194 = vadd.f32 %v1190, %v1193
      %vm1195 = vweird.f32 %v772
      %vm1196 = vweird.f32 %v1190
      %vm1197 = vmor %vm1195, %vm1196
      %v1198 = vsel %vm1197, %v1190, %v1194
      %v1199 = vand.u32 2147483647, %v772
      %vm1200 = vcmp.eq.f32.partialorder %v1199, 8.507059e+37
      %v1201 = vand.u32 %v772, 2147483648
      %v1202 = vor.u32 1.1754944e-38, %v1201
      %v1203 = vsel %vm1200, %v1202, %v1198
      %v1204 = vmul.f32 1.0, %v1203
      %v1205 = vrcp.pop %v773
      %v1206 = vmul.f32 %v773, %v1205
      %v1207 = vsub.f32 1.0, %v1206
      %v1208 = vmul.f32 %v1205, %v1207
      %v1209 = vadd.f32 %v1205, %v1208
      %vm1210 = vweird.f32 %v773
      %vm1211 = vweird.f32 %v1205
      %vm1212 = vmor %vm1210, %vm1211
      %v1213 = vsel %vm1212, %v1205, %v1209
      %v1214 = vand.u32 2147483647, %v773
      %vm1215 = vcmp.eq.f32.partialorder %v1214, 8.507059e+37
      %v1216 = vand.u32 %v773, 2147483648
      %v1217 = vor.u32 1.1754944e-38, %v1216
      %v1218 = vsel %vm1215, %v1217, %v1213
      %v1219 = vmul.f32 1.0, %v1218
      %v1220 = vrcp.pop %v774
      %v1221 = vmul.f32 %v774, %v1220
      %v1222 = vsub.f32 1.0, %v1221
      %v1223 = vmul.f32 %v1220, %v1222
      %v1224 = vadd.f32 %v1220, %v1223
      %vm1225 = vweird.f32 %v774
      %vm1226 = vweird.f32 %v1220
      %vm1227 = vmor %vm1225, %vm1226
      %v1228 = vsel %vm1227, %v1220, %v1224
      %v1229 = vand.u32 2147483647, %v774
      %vm1230 = vcmp.eq.f32.partialorder %v1229, 8.507059e+37
      %v1231 = vand.u32 %v774, 2147483648
      %v1232 = vor.u32 1.1754944e-38, %v1231
      %v1233 = vsel %vm1230, %v1232, %v1228
      %v1234 = vmul.f32 1.0, %v1233
      %v1235 = vrcp.pop %v775
      %v1236 = vmul.f32 %v775, %v1235
      %v1237 = vsub.f32 1.0, %v1236
      %v1238 = vmul.f32 %v1235, %v1237
      %v1239 = vadd.f32 %v1235, %v1238
      %vm1240 = vweird.f32 %v775
      %vm1241 = vweird.f32 %v1235
      %vm1242 = vmor %vm1240, %vm1241
      %v1243 = vsel %vm1242, %v1235, %v1239
      %v1244 = vand.u32 2147483647, %v775
      %vm1245 = vcmp.eq.f32.partialorder %v1244, 8.507059e+37
      %v1246 = vand.u32 %v775, 2147483648
      %v1247 = vor.u32 1.1754944e-38, %v1246
      %v1248 = vsel %vm1245, %v1247, %v1243
      %v1249 = vmul.f32 1.0, %v1248
      %v1250 = vrcp.pop %v776
      %v1251 = vmul.f32 %v776, %v1250
      %v1252 = vsub.f32 1.0, %v1251
      %v1253 = vmul.f32 %v1250, %v1252
      %v1254 = vadd.f32 %v1250, %v1253
      %vm1255 = vweird.f32 %v776
      %vm1256 = vweird.f32 %v1250
      %vm1257 = vmor %vm1255, %vm1256
      %v1258 = vsel %vm1257, %v1250, %v1254
      %v1259 = vand.u32 2147483647, %v776
      %vm1260 = vcmp.eq.f32.partialorder %v1259, 8.507059e+37
      %v1261 = vand.u32 %v776, 2147483648
      %v1262 = vor.u32 1.1754944e-38, %v1261
      %v1263 = vsel %vm1260, %v1262, %v1258
      %v1264 = vmul.f32 1.0, %v1263
      %v1265 = vrcp.pop %v777
      %v1266 = vmul.f32 %v777, %v1265
      %v1267 = vsub.f32 1.0, %v1266
      %v1268 = vmul.f32 %v1265, %v1267
      %v1269 = vadd.f32 %v1265, %v1268
      %vm1270 = vweird.f32 %v777
      %vm1271 = vweird.f32 %v1265
      %vm1272 = vmor %vm1270, %vm1271
      %v1273 = vsel %vm1272, %v1265, %v1269
      %v1274 = vand.u32 2147483647, %v777
      %vm1275 = vcmp.eq.f32.partialorder %v1274, 8.507059e+37
      %v1276 = vand.u32 %v777, 2147483648
      %v1277 = vor.u32 1.1754944e-38, %v1276
      %v1278 = vsel %vm1275, %v1277, %v1273
      %v1279 = vmul.f32 1.0, %v1278
      %v1280 = vrcp.pop %v778
      %v1281 = vmul.f32 %v778, %v1280
      %v1282 = vsub.f32 1.0, %v1281
      %v1283 = vmul.f32 %v1280, %v1282
      %v1284 = vadd.f32 %v1280, %v1283
      %vm1285 = vweird.f32 %v778
      %vm1286 = vweird.f32 %v1280
      %vm1287 = vmor %vm1285, %vm1286
      %v1288 = vsel %vm1287, %v1280, %v1284
      %v1289 = vand.u32 2147483647, %v778
      %vm1290 = vcmp.eq.f32.partialorder %v1289, 8.507059e+37
      %v1291 = vand.u32 %v778, 2147483648
      %v1292 = vor.u32 1.1754944e-38, %v1291
      %v1293 = vsel %vm1290, %v1292, %v1288
      %v1294 = vmul.f32 1.0, %v1293
      %v1295 = vrcp.pop %v779
      %v1296 = vmul.f32 %v779, %v1295
      %v1297 = vsub.f32 1.0, %v1296
      %v1298 = vmul.f32 %v1295, %v1297
      %v1299 = vadd.f32 %v1295, %v1298
      %vm1300 = vweird.f32 %v779
      %vm1301 = vweird.f32 %v1295
      %vm1302 = vmor %vm1300, %vm1301
      %v1303 = vsel %vm1302, %v1295, %v1299
      %v1304 = vand.u32 2147483647, %v779
      %vm1305 = vcmp.eq.f32.partialorder %v1304, 8.507059e+37
      %v1306 = vand.u32 %v779, 2147483648
      %v1307 = vor.u32 1.1754944e-38, %v1306
      %v1308 = vsel %vm1305, %v1307, %v1303
      %v1309 = vmul.f32 1.0, %v1308
      %v1310 = vrcp.pop %v780
      %v1311 = vmul.f32 %v780, %v1310
      %v1312 = vsub.f32 1.0, %v1311
      %v1313 = vmul.f32 %v1310, %v1312
      %v1314 = vadd.f32 %v1310, %v1313
      %vm1315 = vweird.f32 %v780
      %vm1316 = vweird.f32 %v1310
      %vm1317 = vmor %vm1315, %vm1316
      %v1318 = vsel %vm1317, %v1310, %v1314
      %v1319 = vand.u32 2147483647, %v780
      %vm1320 = vcmp.eq.f32.partialorder %v1319, 8.507059e+37
      %v1321 = vand.u32 %v780, 2147483648
      %v1322 = vor.u32 1.1754944e-38, %v1321
      %v1323 = vsel %vm1320, %v1322, %v1318
      %v1324 = vmul.f32 1.0, %v1323
      %v1325 = vrcp.pop %v781
      %v1326 = vmul.f32 %v781, %v1325
      %v1327 = vsub.f32 1.0, %v1326
      %v1328 = vmul.f32 %v1325, %v1327
      %v1329 = vadd.f32 %v1325, %v1328
      %vm1330 = vweird.f32 %v781
      %vm1331 = vweird.f32 %v1325
      %vm1332 = vmor %vm1330, %vm1331
      %v1333 = vsel %vm1332, %v1325, %v1329
      %v1334 = vand.u32 2147483647, %v781
      %vm1335 = vcmp.eq.f32.partialorder %v1334, 8.507059e+37
      %v1336 = vand.u32 %v781, 2147483648
      %v1337 = vor.u32 1.1754944e-38, %v1336
      %v1338 = vsel %vm1335, %v1337, %v1333
      %v1339 = vmul.f32 1.0, %v1338
      %v1340 = vrcp.pop %v782
      %v1341 = vmul.f32 %v782, %v1340
      %v1342 = vsub.f32 1.0, %v1341
      %v1343 = vmul.f32 %v1340, %v1342
      %v1344 = vadd.f32 %v1340, %v1343
      %vm1345 = vweird.f32 %v782
      %vm1346 = vweird.f32 %v1340
      %vm1347 = vmor %vm1345, %vm1346
      %v1348 = vsel %vm1347, %v1340, %v1344
      %v1349 = vand.u32 2147483647, %v782
      %vm1350 = vcmp.eq.f32.partialorder %v1349, 8.507059e+37
      %v1351 = vand.u32 %v782, 2147483648
      %v1352 = vor.u32 1.1754944e-38, %v1351
      %v1353 = vsel %vm1350, %v1352, %v1348
      %v1354 = vmul.f32 1.0, %v1353
      %v1355 = vrcp.pop %v783
      %v1356 = vmul.f32 %v783, %v1355
      %v1357 = vsub.f32 1.0, %v1356
      %v1358 = vmul.f32 %v1355, %v1357
      %v1359 = vadd.f32 %v1355, %v1358
      %vm1360 = vweird.f32 %v783
      %vm1361 = vweird.f32 %v1355
      %vm1362 = vmor %vm1360, %vm1361
      %v1363 = vsel %vm1362, %v1355, %v1359
      %v1364 = vand.u32 2147483647, %v783
      %vm1365 = vcmp.eq.f32.partialorder %v1364, 8.507059e+37
      %v1366 = vand.u32 %v783, 2147483648
      %v1367 = vor.u32 1.1754944e-38, %v1366
      %v1368 = vsel %vm1365, %v1367, %v1363
      %v1369 = vmul.f32 1.0, %v1368
      %v1370 = vrcp.pop %v784
      %v1371 = vmul.f32 %v784, %v1370
      %v1372 = vsub.f32 1.0, %v1371
      %v1373 = vmul.f32 %v1370, %v1372
      %v1374 = vadd.f32 %v1370, %v1373
      %vm1375 = vweird.f32 %v784
      %vm1376 = vweird.f32 %v1370
      %vm1377 = vmor %vm1375, %vm1376
      %v1378 = vsel %vm1377, %v1370, %v1374
      %v1379 = vand.u32 2147483647, %v784
      %vm1380 = vcmp.eq.f32.partialorder %v1379, 8.507059e+37
      %v1381 = vand.u32 %v784, 2147483648
      %v1382 = vor.u32 1.1754944e-38, %v1381
      %v1383 = vsel %vm1380, %v1382, %v1378
      %v1384 = vmul.f32 1.0, %v1383
      %v1385 = vrcp.pop %v785
      %v1386 = vmul.f32 %v785, %v1385
      %v1387 = vsub.f32 1.0, %v1386
      %v1388 = vmul.f32 %v1385, %v1387
      %v1389 = vadd.f32 %v1385, %v1388
      %vm1390 = vweird.f32 %v785
      %vm1391 = vweird.f32 %v1385
      %vm1392 = vmor %vm1390, %vm1391
      %v1393 = vsel %vm1392, %v1385, %v1389
      %v1394 = vand.u32 2147483647, %v785
      %vm1395 = vcmp.eq.f32.partialorder %v1394, 8.507059e+37
      %v1396 = vand.u32 %v785, 2147483648
      %v1397 = vor.u32 1.1754944e-38, %v1396
      %v1398 = vsel %vm1395, %v1397, %v1393
      %v1399 = vmul.f32 1.0, %v1398
      %v1400 = vrcp.pop %v786
      %v1401 = vmul.f32 %v786, %v1400
      %v1402 = vsub.f32 1.0, %v1401
      %v1403 = vmul.f32 %v1400, %v1402
      %v1404 = vadd.f32 %v1400, %v1403
      %vm1405 = vweird.f32 %v786
      %vm1406 = vweird.f32 %v1400
      %vm1407 = vmor %vm1405, %vm1406
      %v1408 = vsel %vm1407, %v1400, %v1404
      %v1409 = vand.u32 2147483647, %v786
      %vm1410 = vcmp.eq.f32.partialorder %v1409, 8.507059e+37
      %v1411 = vand.u32 %v786, 2147483648
      %v1412 = vor.u32 1.1754944e-38, %v1411
      %v1413 = vsel %vm1410, %v1412, %v1408
      %v1414 = vmul.f32 1.0, %v1413
      %v1415 = vrcp.pop %v787
      %v1416 = vmul.f32 %v787, %v1415
      %v1417 = vsub.f32 1.0, %v1416
      %v1418 = vmul.f32 %v1415, %v1417
      %v1419 = vadd.f32 %v1415, %v1418
      %vm1420 = vweird.f32 %v787
      %vm1421 = vweird.f32 %v1415
      %vm1422 = vmor %vm1420, %vm1421
      %v1423 = vsel %vm1422, %v1415, %v1419
      %v1424 = vand.u32 2147483647, %v787
      %vm1425 = vcmp.eq.f32.partialorder %v1424, 8.507059e+37
      %v1426 = vand.u32 %v787, 2147483648
      %v1427 = vor.u32 1.1754944e-38, %v1426
      %v1428 = vsel %vm1425, %v1427, %v1423
      %v1429 = vmul.f32 1.0, %v1428
      %v1430 = vrcp.pop %v788
      %v1431 = vmul.f32 %v788, %v1430
      %v1432 = vsub.f32 1.0, %v1431
      %v1433 = vmul.f32 %v1430, %v1432
      %v1434 = vadd.f32 %v1430, %v1433
      %vm1435 = vweird.f32 %v788
      %vm1436 = vweird.f32 %v1430
      %vm1437 = vmor %vm1435, %vm1436
      %v1438 = vsel %vm1437, %v1430, %v1434
      %v1439 = vand.u32 2147483647, %v788
      %vm1440 = vcmp.eq.f32.partialorder %v1439, 8.507059e+37
      %v1441 = vand.u32 %v788, 2147483648
      %v1442 = vor.u32 1.1754944e-38, %v1441
      %v1443 = vsel %vm1440, %v1442, %v1438
      %v1444 = vmul.f32 1.0, %v1443
      %v1445 = vrcp.pop %v789
      %v1446 = vmul.f32 %v789, %v1445
      %v1447 = vsub.f32 1.0, %v1446
      %v1448 = vmul.f32 %v1445, %v1447
      %v1449 = vadd.f32 %v1445, %v1448
      %vm1450 = vweird.f32 %v789
      %vm1451 = vweird.f32 %v1445
      %vm1452 = vmor %vm1450, %vm1451
      %v1453 = vsel %vm1452, %v1445, %v1449
      %v1454 = vand.u32 2147483647, %v789
      %vm1455 = vcmp.eq.f32.partialorder %v1454, 8.507059e+37
      %v1456 = vand.u32 %v789, 2147483648
      %v1457 = vor.u32 1.1754944e-38, %v1456
      %v1458 = vsel %vm1455, %v1457, %v1453
      %v1459 = vmul.f32 1.0, %v1458
      %v1460 = vrcp.pop %v790
      %v1461 = vmul.f32 %v790, %v1460
      %v1462 = vsub.f32 1.0, %v1461
      %v1463 = vmul.f32 %v1460, %v1462
      %v1464 = vadd.f32 %v1460, %v1463
      %vm1465 = vweird.f32 %v790
      %vm1466 = vweird.f32 %v1460
      %vm1467 = vmor %vm1465, %vm1466
      %v1468 = vsel %vm1467, %v1460, %v1464
      %v1469 = vand.u32 2147483647, %v790
      %vm1470 = vcmp.eq.f32.partialorder %v1469, 8.507059e+37
      %v1471 = vand.u32 %v790, 2147483648
      %v1472 = vor.u32 1.1754944e-38, %v1471
      %v1473 = vsel %vm1470, %v1472, %v1468
      %v1474 = vmul.f32 1.0, %v1473
      %v1475 = vrcp.pop %v791
      %v1476 = vmul.f32 %v791, %v1475
      %v1477 = vsub.f32 1.0, %v1476
      %v1478 = vmul.f32 %v1475, %v1477
      %v1479 = vadd.f32 %v1475, %v1478
      %vm1480 = vweird.f32 %v791
      %vm1481 = vweird.f32 %v1475
      %vm1482 = vmor %vm1480, %vm1481
      %v1483 = vsel %vm1482, %v1475, %v1479
      %v1484 = vand.u32 2147483647, %v791
      %vm1485 = vcmp.eq.f32.partialorder %v1484, 8.507059e+37
      %v1486 = vand.u32 %v791, 2147483648
      %v1487 = vor.u32 1.1754944e-38, %v1486
      %v1488 = vsel %vm1485, %v1487, %v1483
      %v1489 = vmul.f32 1.0, %v1488
      %v1490 = vrcp.pop %v792
      %v1491 = vmul.f32 %v792, %v1490
      %v1492 = vsub.f32 1.0, %v1491
      %v1493 = vmul.f32 %v1490, %v1492
      %v1494 = vadd.f32 %v1490, %v1493
      %vm1495 = vweird.f32 %v792
      %vm1496 = vweird.f32 %v1490
      %vm1497 = vmor %vm1495, %vm1496
      %v1498 = vsel %vm1497, %v1490, %v1494
      %v1499 = vand.u32 2147483647, %v792
      %vm1500 = vcmp.eq.f32.partialorder %v1499, 8.507059e+37
      %v1501 = vand.u32 %v792, 2147483648
      %v1502 = vor.u32 1.1754944e-38, %v1501
      %v1503 = vsel %vm1500, %v1502, %v1498
      %v1504 = vmul.f32 1.0, %v1503
      %v1505 = vrcp.pop %v793
      %v1506 = vmul.f32 %v793, %v1505
      %v1507 = vsub.f32 1.0, %v1506
      %v1508 = vmul.f32 %v1505, %v1507
      %v1509 = vadd.f32 %v1505, %v1508
      %vm1510 = vweird.f32 %v793
      %vm1511 = vweird.f32 %v1505
      %vm1512 = vmor %vm1510, %vm1511
      %v1513 = vsel %vm1512, %v1505, %v1509
      %v1514 = vand.u32 2147483647, %v793
      %vm1515 = vcmp.eq.f32.partialorder %v1514, 8.507059e+37
      %v1516 = vand.u32 %v793, 2147483648
      %v1517 = vor.u32 1.1754944e-38, %v1516
      %v1518 = vsel %vm1515, %v1517, %v1513
      %v1519 = vmul.f32 1.0, %v1518
      %v1520 = vrcp.pop %v794
      %v1521 = vmul.f32 %v794, %v1520
      %v1522 = vsub.f32 1.0, %v1521
      %v1523 = vmul.f32 %v1520, %v1522
      %v1524 = vadd.f32 %v1520, %v1523
      %vm1525 = vweird.f32 %v794
      %vm1526 = vweird.f32 %v1520
      %vm1527 = vmor %vm1525, %vm1526
      %v1528 = vsel %vm1527, %v1520, %v1524
      %v1529 = vand.u32 2147483647, %v794
      %vm1530 = vcmp.eq.f32.partialorder %v1529, 8.507059e+37
      %v1531 = vand.u32 %v794, 2147483648
      %v1532 = vor.u32 1.1754944e-38, %v1531
      %v1533 = vsel %vm1530, %v1532, %v1528
      %v1534 = vmul.f32 1.0, %v1533
      %v1535 = vrcp.pop %v795
      %v1536 = vmul.f32 %v795, %v1535
      %v1537 = vsub.f32 1.0, %v1536
      %v1538 = vmul.f32 %v1535, %v1537
      %v1539 = vadd.f32 %v1535, %v1538
      %vm1540 = vweird.f32 %v795
      %vm1541 = vweird.f32 %v1535
      %vm1542 = vmor %vm1540, %vm1541
      %v1543 = vsel %vm1542, %v1535, %v1539
      %v1544 = vand.u32 2147483647, %v795
      %vm1545 = vcmp.eq.f32.partialorder %v1544, 8.507059e+37
      %v1546 = vand.u32 %v795, 2147483648
      %v1547 = vor.u32 1.1754944e-38, %v1546
      %v1548 = vsel %vm1545, %v1547, %v1543
      %v1549 = vmul.f32 1.0, %v1548
      %v1550 = vrcp.pop %v796
      %v1551 = vmul.f32 %v796, %v1550
      %v1552 = vsub.f32 1.0, %v1551
      %v1553 = vmul.f32 %v1550, %v1552
      %v1554 = vadd.f32 %v1550, %v1553
      %vm1555 = vweird.f32 %v796
      %vm1556 = vweird.f32 %v1550
      %vm1557 = vmor %vm1555, %vm1556
      %v1558 = vsel %vm1557, %v1550, %v1554
      %v1559 = vand.u32 2147483647, %v796
      %vm1560 = vcmp.eq.f32.partialorder %v1559, 8.507059e+37
      %v1561 = vand.u32 %v796, 2147483648
      %v1562 = vor.u32 1.1754944e-38, %v1561
      %v1563 = vsel %vm1560, %v1562, %v1558
      %v1564 = vmul.f32 1.0, %v1563
      %v1565 = vrcp.pop %v797
      %v1566 = vmul.f32 %v797, %v1565
      %v1567 = vsub.f32 1.0, %v1566
      %v1568 = vmul.f32 %v1565, %v1567
      %v1569 = vadd.f32 %v1565, %v1568
      %vm1570 = vweird.f32 %v797
      %vm1571 = vweird.f32 %v1565
      %vm1572 = vmor %vm1570, %vm1571
      %v1573 = vsel %vm1572, %v1565, %v1569
      %v1574 = vand.u32 2147483647, %v797
      %vm1575 = vcmp.eq.f32.partialorder %v1574, 8.507059e+37
      %v1576 = vand.u32 %v797, 2147483648
      %v1577 = vor.u32 1.1754944e-38, %v1576
      %v1578 = vsel %vm1575, %v1577, %v1573
      %v1579 = vmul.f32 1.0, %v1578
      %v1580 = vrcp.pop %v798
      %v1581 = vmul.f32 %v798, %v1580
      %v1582 = vsub.f32 1.0, %v1581
      %v1583 = vmul.f32 %v1580, %v1582
      %v1584 = vadd.f32 %v1580, %v1583
      %vm1585 = vweird.f32 %v798
      %vm1586 = vweird.f32 %v1580
      %vm1587 = vmor %vm1585, %vm1586
      %v1588 = vsel %vm1587, %v1580, %v1584
      %v1589 = vand.u32 2147483647, %v798
      %vm1590 = vcmp.eq.f32.partialorder %v1589, 8.507059e+37
      %v1591 = vand.u32 %v798, 2147483648
      %v1592 = vor.u32 1.1754944e-38, %v1591
      %v1593 = vsel %vm1590, %v1592, %v1588
      %v1594 = vmul.f32 1.0, %v1593
      %v1595 = vrcp.pop %v799
      %v1596 = vmul.f32 %v799, %v1595
      %v1597 = vsub.f32 1.0, %v1596
      %v1598 = vmul.f32 %v1595, %v1597
      %v1599 = vadd.f32 %v1595, %v1598
      %vm1600 = vweird.f32 %v799
      %vm1601 = vweird.f32 %v1595
      %vm1602 = vmor %vm1600, %vm1601
      %v1603 = vsel %vm1602, %v1595, %v1599
      %v1604 = vand.u32 2147483647, %v799
      %vm1605 = vcmp.eq.f32.partialorder %v1604, 8.507059e+37
      %v1606 = vand.u32 %v799, 2147483648
      %v1607 = vor.u32 1.1754944e-38, %v1606
      %v1608 = vsel %vm1605, %v1607, %v1603
      %v1609 = vmul.f32 1.0, %v1608
      %v1610 = vrcp.pop %v800
      %v1611 = vmul.f32 %v800, %v1610
      %v1612 = vsub.f32 1.0, %v1611
      %v1613 = vmul.f32 %v1610, %v1612
      %v1614 = vadd.f32 %v1610, %v1613
      %vm1615 = vweird.f32 %v800
      %vm1616 = vweird.f32 %v1610
      %vm1617 = vmor %vm1615, %vm1616
      %v1618 = vsel %vm1617, %v1610, %v1614
      %v1619 = vand.u32 2147483647, %v800
      %vm1620 = vcmp.eq.f32.partialorder %v1619, 8.507059e+37
      %v1621 = vand.u32 %v800, 2147483648
      %v1622 = vor.u32 1.1754944e-38, %v1621
      %v1623 = vsel %vm1620, %v1622, %v1618
      %v1624 = vmul.f32 1.0, %v1623
      %v1625 = vrcp.pop %v801
      %v1626 = vmul.f32 %v801, %v1625
      %v1627 = vsub.f32 1.0, %v1626
      %v1628 = vmul.f32 %v1625, %v1627
      %v1629 = vadd.f32 %v1625, %v1628
      %vm1630 = vweird.f32 %v801
      %vm1631 = vweird.f32 %v1625
      %vm1632 = vmor %vm1630, %vm1631
      %v1633 = vsel %vm1632, %v1625, %v1629
      %v1634 = vand.u32 2147483647, %v801
      %vm1635 = vcmp.eq.f32.partialorder %v1634, 8.507059e+37
      %v1636 = vand.u32 %v801, 2147483648
      %v1637 = vor.u32 1.1754944e-38, %v1636
      %v1638 = vsel %vm1635, %v1637, %v1633
      %v1639 = vmul.f32 1.0, %v1638
      %v1640 = vrcp.pop %v802
      %v1641 = vmul.f32 %v802, %v1640
      %v1642 = vsub.f32 1.0, %v1641
      %v1643 = vmul.f32 %v1640, %v1642
      %v1644 = vadd.f32 %v1640, %v1643
      %vm1645 = vweird.f32 %v802
      %vm1646 = vweird.f32 %v1640
      %vm1647 = vmor %vm1645, %vm1646
      %v1648 = vsel %vm1647, %v1640, %v1644
      %v1649 = vand.u32 2147483647, %v802
      %vm1650 = vcmp.eq.f32.partialorder %v1649, 8.507059e+37
      %v1651 = vand.u32 %v802, 2147483648
      %v1652 = vor.u32 1.1754944e-38, %v1651
      %v1653 = vsel %vm1650, %v1652, %v1648
      %v1654 = vmul.f32 1.0, %v1653
      %v1655 = vrcp.pop %v803
      %v1656 = vmul.f32 %v803, %v1655
      %v1657 = vsub.f32 1.0, %v1656
      %v1658 = vmul.f32 %v1655, %v1657
      %v1659 = vadd.f32 %v1655, %v1658
      %vm1660 = vweird.f32 %v803
      %vm1661 = vweird.f32 %v1655
      %vm1662 = vmor %vm1660, %vm1661
      %v1663 = vsel %vm1662, %v1655, %v1659
      %v1664 = vand.u32 2147483647, %v803
      %vm1665 = vcmp.eq.f32.partialorder %v1664, 8.507059e+37
      %v1666 = vand.u32 %v803, 2147483648
      %v1667 = vor.u32 1.1754944e-38, %v1666
      %v1668 = vsel %vm1665, %v1667, %v1663
      %v1669 = vmul.f32 1.0, %v1668
      %v1670 = vrcp.pop %v804
      %v1671 = vmul.f32 %v804, %v1670
      %v1672 = vsub.f32 1.0, %v1671
      %v1673 = vmul.f32 %v1670, %v1672
      %v1674 = vadd.f32 %v1670, %v1673
      %vm1675 = vweird.f32 %v804
      %vm1676 = vweird.f32 %v1670
      %vm1677 = vmor %vm1675, %vm1676
      %v1678 = vsel %vm1677, %v1670, %v1674
      %v1679 = vand.u32 2147483647, %v804
      %vm1680 = vcmp.eq.f32.partialorder %v1679, 8.507059e+37
      %v1681 = vand.u32 %v804, 2147483648
      %v1682 = vor.u32 1.1754944e-38, %v1681
      %v1683 = vsel %vm1680, %v1682, %v1678
      %v1684 = vmul.f32 1.0, %v1683
      %v1685 = vrcp.pop %v805
      %v1686 = vmul.f32 %v805, %v1685
      %v1687 = vsub.f32 1.0, %v1686
      %v1688 = vmul.f32 %v1685, %v1687
      %v1689 = vadd.f32 %v1685, %v1688
      %vm1690 = vweird.f32 %v805
      %vm1691 = vweird.f32 %v1685
      %vm1692 = vmor %vm1690, %vm1691
      %v1693 = vsel %vm1692, %v1685, %v1689
      %v1694 = vand.u32 2147483647, %v805
      %vm1695 = vcmp.eq.f32.partialorder %v1694, 8.507059e+37
      %v1696 = vand.u32 %v805, 2147483648
      %v1697 = vor.u32 1.1754944e-38, %v1696
      %v1698 = vsel %vm1695, %v1697, %v1693
      %v1699 = vmul.f32 1.0, %v1698
      %v1700 = vrcp.pop %v806
      %v1701 = vmul.f32 %v806, %v1700
      %v1702 = vsub.f32 1.0, %v1701
      %v1703 = vmul.f32 %v1700, %v1702
      %v1704 = vadd.f32 %v1700, %v1703
      %vm1705 = vweird.f32 %v806
      %vm1706 = vweird.f32 %v1700
      %vm1707 = vmor %vm1705, %vm1706
      %v1708 = vsel %vm1707, %v1700, %v1704
      %v1709 = vand.u32 2147483647, %v806
      %vm1710 = vcmp.eq.f32.partialorder %v1709, 8.507059e+37
      %v1711 = vand.u32 %v806, 2147483648
      %v1712 = vor.u32 1.1754944e-38, %v1711
      %v1713 = vsel %vm1710, %v1712, %v1708
      %v1714 = vmul.f32 1.0, %v1713
      %v1715 = vrcp.pop %v807
      %v1716 = vmul.f32 %v807, %v1715
      %v1717 = vsub.f32 1.0, %v1716
      %v1718 = vmul.f32 %v1715, %v1717
      %v1719 = vadd.f32 %v1715, %v1718
      %vm1720 = vweird.f32 %v807
      %vm1721 = vweird.f32 %v1715
      %vm1722 = vmor %vm1720, %vm1721
      %v1723 = vsel %vm1722, %v1715, %v1719
      %v1724 = vand.u32 2147483647, %v807
      %vm1725 = vcmp.eq.f32.partialorder %v1724, 8.507059e+37
      %v1726 = vand.u32 %v807, 2147483648
      %v1727 = vor.u32 1.1754944e-38, %v1726
      %v1728 = vsel %vm1725, %v1727, %v1723
      %v1729 = vmul.f32 1.0, %v1728
      %v1730 = vrcp.pop %v808
      %v1731 = vmul.f32 %v808, %v1730
      %v1732 = vsub.f32 1.0, %v1731
      %v1733 = vmul.f32 %v1730, %v1732
      %v1734 = vadd.f32 %v1730, %v1733
      %vm1735 = vweird.f32 %v808
      %vm1736 = vweird.f32 %v1730
      %vm1737 = vmor %vm1735, %vm1736
      %v1738 = vsel %vm1737, %v1730, %v1734
      %v1739 = vand.u32 2147483647, %v808
      %vm1740 = vcmp.eq.f32.partialorder %v1739, 8.507059e+37
      %v1741 = vand.u32 %v808, 2147483648
      %v1742 = vor.u32 1.1754944e-38, %v1741
      %v1743 = vsel %vm1740, %v1742, %v1738
      %v1744 = vmul.f32 1.0, %v1743
      %v1745 = vrcp.pop %v809
      %v1746 = vmul.f32 %v809, %v1745
      %v1747 = vsub.f32 1.0, %v1746
      %v1748 = vmul.f32 %v1745, %v1747
      %v1749 = vadd.f32 %v1745, %v1748
      %vm1750 = vweird.f32 %v809
      %vm1751 = vweird.f32 %v1745
      %vm1752 = vmor %vm1750, %vm1751
      %v1753 = vsel %vm1752, %v1745, %v1749
      %v1754 = vand.u32 2147483647, %v809
      %vm1755 = vcmp.eq.f32.partialorder %v1754, 8.507059e+37
      %v1756 = vand.u32 %v809, 2147483648
      %v1757 = vor.u32 1.1754944e-38, %v1756
      %v1758 = vsel %vm1755, %v1757, %v1753
      %v1759 = vmul.f32 1.0, %v1758
      %v1760 = vrcp.pop %v810
      %v1761 = vmul.f32 %v810, %v1760
      %v1762 = vsub.f32 1.0, %v1761
      %v1763 = vmul.f32 %v1760, %v1762
      %v1764 = vadd.f32 %v1760, %v1763
      %vm1765 = vweird.f32 %v810
      %vm1766 = vweird.f32 %v1760
      %vm1767 = vmor %vm1765, %vm1766
      %v1768 = vsel %vm1767, %v1760, %v1764
      %v1769 = vand.u32 2147483647, %v810
      %vm1770 = vcmp.eq.f32.partialorder %v1769, 8.507059e+37
      %v1771 = vand.u32 %v810, 2147483648
      %v1772 = vor.u32 1.1754944e-38, %v1771
      %v1773 = vsel %vm1770, %v1772, %v1768
      %v1774 = vmul.f32 1.0, %v1773
      %v1775 = vrcp.pop %v811
      %v1776 = vmul.f32 %v811, %v1775
      %v1777 = vsub.f32 1.0, %v1776
      %v1778 = vmul.f32 %v1775, %v1777
      %v1779 = vadd.f32 %v1775, %v1778
      %vm1780 = vweird.f32 %v811
      %vm1781 = vweird.f32 %v1775
      %vm1782 = vmor %vm1780, %vm1781
      %v1783 = vsel %vm1782, %v1775, %v1779
      %v1784 = vand.u32 2147483647, %v811
      %vm1785 = vcmp.eq.f32.partialorder %v1784, 8.507059e+37
      %v1786 = vand.u32 %v811, 2147483648
      %v1787 = vor.u32 1.1754944e-38, %v1786
      %v1788 = vsel %vm1785, %v1787, %v1783
      %v1789 = vmul.f32 1.0, %v1788
      %v1790 = vrcp.pop %v812
      %v1791 = vmul.f32 %v812, %v1790
      %v1792 = vsub.f32 1.0, %v1791
      %v1793 = vmul.f32 %v1790, %v1792
      %v1794 = vadd.f32 %v1790, %v1793
      %vm1795 = vweird.f32 %v812
      %vm1796 = vweird.f32 %v1790
      %vm1797 = vmor %vm1795, %vm1796
      %v1798 = vsel %vm1797, %v1790, %v1794
      %v1799 = vand.u32 2147483647, %v812
      %vm1800 = vcmp.eq.f32.partialorder %v1799, 8.507059e+37
      %v1801 = vand.u32 %v812, 2147483648
      %v1802 = vor.u32 1.1754944e-38, %v1801
      %v1803 = vsel %vm1800, %v1802, %v1798
      %v1804 = vmul.f32 1.0, %v1803
      %v1805 = vrcp.pop %v813
      %v1806 = vmul.f32 %v813, %v1805
      %v1807 = vsub.f32 1.0, %v1806
      %v1808 = vmul.f32 %v1805, %v1807
      %v1809 = vadd.f32 %v1805, %v1808
      %vm1810 = vweird.f32 %v813
      %vm1811 = vweird.f32 %v1805
      %vm1812 = vmor %vm1810, %vm1811
      %v1813 = vsel %vm1812, %v1805, %v1809
      %v1814 = vand.u32 2147483647, %v813
      %vm1815 = vcmp.eq.f32.partialorder %v1814, 8.507059e+37
      %v1816 = vand.u32 %v813, 2147483648
      %v1817 = vor.u32 1.1754944e-38, %v1816
      %v1818 = vsel %vm1815, %v1817, %v1813
      %v1819 = vmul.f32 1.0, %v1818
      %v1820 = vrcp.pop %v814
      %v1821 = vmul.f32 %v814, %v1820
      %v1822 = vsub.f32 1.0, %v1821
      %v1823 = vmul.f32 %v1820, %v1822
      %v1824 = vadd.f32 %v1820, %v1823
      %vm1825 = vweird.f32 %v814
      %vm1826 = vweird.f32 %v1820
      %vm1827 = vmor %vm1825, %vm1826
      %v1828 = vsel %vm1827, %v1820, %v1824
      %v1829 = vand.u32 2147483647, %v814
      %vm1830 = vcmp.eq.f32.partialorder %v1829, 8.507059e+37
      %v1831 = vand.u32 %v814, 2147483648
      %v1832 = vor.u32 1.1754944e-38, %v1831
      %v1833 = vsel %vm1830, %v1832, %v1828
      %v1834 = vmul.f32 1.0, %v1833
      %v1835 = vrcp.pop %v815
      %v1836 = vmul.f32 %v815, %v1835
      %v1837 = vsub.f32 1.0, %v1836
      %v1838 = vmul.f32 %v1835, %v1837
      %v1839 = vadd.f32 %v1835, %v1838
      %vm1840 = vweird.f32 %v815
      %vm1841 = vweird.f32 %v1835
      %vm1842 = vmor %vm1840, %vm1841
      %v1843 = vsel %vm1842, %v1835, %v1839
      %v1844 = vand.u32 2147483647, %v815
      %vm1845 = vcmp.eq.f32.partialorder %v1844, 8.507059e+37
      %v1846 = vand.u32 %v815, 2147483648
      %v1847 = vor.u32 1.1754944e-38, %v1846
      %v1848 = vsel %vm1845, %v1847, %v1843
      %v1849 = vmul.f32 1.0, %v1848
      %v1850 = vrcp.pop %v816
      %v1851 = vmul.f32 %v816, %v1850
      %v1852 = vsub.f32 1.0, %v1851
      %v1853 = vmul.f32 %v1850, %v1852
      %v1854 = vadd.f32 %v1850, %v1853
      %vm1855 = vweird.f32 %v816
      %vm1856 = vweird.f32 %v1850
      %vm1857 = vmor %vm1855, %vm1856
      %v1858 = vsel %vm1857, %v1850, %v1854
      %v1859 = vand.u32 2147483647, %v816
      %vm1860 = vcmp.eq.f32.partialorder %v1859, 8.507059e+37
      %v1861 = vand.u32 %v816, 2147483648
      %v1862 = vor.u32 1.1754944e-38, %v1861
      %v1863 = vsel %vm1860, %v1862, %v1858
      %v1864 = vmul.f32 1.0, %v1863
      %v1865 = vrcp.pop %v817
      %v1866 = vmul.f32 %v817, %v1865
      %v1867 = vsub.f32 1.0, %v1866
      %v1868 = vmul.f32 %v1865, %v1867
      %v1869 = vadd.f32 %v1865, %v1868
      %vm1870 = vweird.f32 %v817
      %vm1871 = vweird.f32 %v1865
      %vm1872 = vmor %vm1870, %vm1871
      %v1873 = vsel %vm1872, %v1865, %v1869
      %v1874 = vand.u32 2147483647, %v817
      %vm1875 = vcmp.eq.f32.partialorder %v1874, 8.507059e+37
      %v1876 = vand.u32 %v817, 2147483648
      %v1877 = vor.u32 1.1754944e-38, %v1876
      %v1878 = vsel %vm1875, %v1877, %v1873
      %v1879 = vmul.f32 1.0, %v1878
      %v1880 = vrcp.pop %v818
      %v1881 = vmul.f32 %v818, %v1880
      %v1882 = vsub.f32 1.0, %v1881
      %v1883 = vmul.f32 %v1880, %v1882
      %v1884 = vadd.f32 %v1880, %v1883
      %vm1885 = vweird.f32 %v818
      %vm1886 = vweird.f32 %v1880
      %vm1887 = vmor %vm1885, %vm1886
      %v1888 = vsel %vm1887, %v1880, %v1884
      %v1889 = vand.u32 2147483647, %v818
      %vm1890 = vcmp.eq.f32.partialorder %v1889, 8.507059e+37
      %v1891 = vand.u32 %v818, 2147483648
      %v1892 = vor.u32 1.1754944e-38, %v1891
      %v1893 = vsel %vm1890, %v1892, %v1888
      %v1894 = vmul.f32 1.0, %v1893
      %v1895 = vrcp.pop %v819
      %v1896 = vmul.f32 %v819, %v1895
      %v1897 = vsub.f32 1.0, %v1896
      %v1898 = vmul.f32 %v1895, %v1897
      %v1899 = vadd.f32 %v1895, %v1898
      %vm1900 = vweird.f32 %v819
      %vm1901 = vweird.f32 %v1895
      %vm1902 = vmor %vm1900, %vm1901
      %v1903 = vsel %vm1902, %v1895, %v1899
      %v1904 = vand.u32 2147483647, %v819
      %vm1905 = vcmp.eq.f32.partialorder %v1904, 8.507059e+37
      %v1906 = vand.u32 %v819, 2147483648
      %v1907 = vor.u32 1.1754944e-38, %v1906
      %v1908 = vsel %vm1905, %v1907, %v1903
      %v1909 = vmul.f32 1.0, %v1908
      %v1910 = vrcp.pop %v820
      %v1911 = vmul.f32 %v820, %v1910
      %v1912 = vsub.f32 1.0, %v1911
      %v1913 = vmul.f32 %v1910, %v1912
      %v1914 = vadd.f32 %v1910, %v1913
      %vm1915 = vweird.f32 %v820
      %vm1916 = vweird.f32 %v1910
      %vm1917 = vmor %vm1915, %vm1916
      %v1918 = vsel %vm1917, %v1910, %v1914
      %v1919 = vand.u32 2147483647, %v820
      %vm1920 = vcmp.eq.f32.partialorder %v1919, 8.507059e+37
      %v1921 = vand.u32 %v820, 2147483648
      %v1922 = vor.u32 1.1754944e-38, %v1921
      %v1923 = vsel %vm1920, %v1922, %v1918
      %v1924 = vmul.f32 1.0, %v1923
      %v1925 = vrcp.pop %v821
      %v1926 = vmul.f32 %v821, %v1925
      %v1927 = vsub.f32 1.0, %v1926
      %v1928 = vmul.f32 %v1925, %v1927
      %v1929 = vadd.f32 %v1925, %v1928
      %vm1930 = vweird.f32 %v821
      %vm1931 = vweird.f32 %v1925
      %vm1932 = vmor %vm1930, %vm1931
      %v1933 = vsel %vm1932, %v1925, %v1929
      %v1934 = vand.u32 2147483647, %v821
      %vm1935 = vcmp.eq.f32.partialorder %v1934, 8.507059e+37
      %v1936 = vand.u32 %v821, 2147483648
      %v1937 = vor.u32 1.1754944e-38, %v1936
      %v1938 = vsel %vm1935, %v1937, %v1933
      %v1939 = vmul.f32 1.0, %v1938
      %v1940 = vrcp.pop %v822
      %v1941 = vmul.f32 %v822, %v1940
      %v1942 = vsub.f32 1.0, %v1941
      %v1943 = vmul.f32 %v1940, %v1942
      %v1944 = vadd.f32 %v1940, %v1943
      %vm1945 = vweird.f32 %v822
      %vm1946 = vweird.f32 %v1940
      %vm1947 = vmor %vm1945, %vm1946
      %v1948 = vsel %vm1947, %v1940, %v1944
      %v1949 = vand.u32 2147483647, %v822
      %vm1950 = vcmp.eq.f32.partialorder %v1949, 8.507059e+37
      %v1951 = vand.u32 %v822, 2147483648
      %v1952 = vor.u32 1.1754944e-38, %v1951
      %v1953 = vsel %vm1950, %v1952, %v1948
      %v1954 = vmul.f32 1.0, %v1953
      %v1955 = vrcp.pop %v823
      %v1956 = vmul.f32 %v823, %v1955
      %v1957 = vsub.f32 1.0, %v1956
      %v1958 = vmul.f32 %v1955, %v1957
      %v1959 = vadd.f32 %v1955, %v1958
      %vm1960 = vweird.f32 %v823
      %vm1961 = vweird.f32 %v1955
      %vm1962 = vmor %vm1960, %vm1961
      %v1963 = vsel %vm1962, %v1955, %v1959
      %v1964 = vand.u32 2147483647, %v823
      %vm1965 = vcmp.eq.f32.partialorder %v1964, 8.507059e+37
      %v1966 = vand.u32 %v823, 2147483648
      %v1967 = vor.u32 1.1754944e-38, %v1966
      %v1968 = vsel %vm1965, %v1967, %v1963
      %v1969 = vmul.f32 1.0, %v1968
      %v1970 = vrcp.pop %v824
      %v1971 = vmul.f32 %v824, %v1970
      %v1972 = vsub.f32 1.0, %v1971
      %v1973 = vmul.f32 %v1970, %v1972
      %v1974 = vadd.f32 %v1970, %v1973
      %vm1975 = vweird.f32 %v824
      %vm1976 = vweird.f32 %v1970
      %vm1977 = vmor %vm1975, %vm1976
      %v1978 = vsel %vm1977, %v1970, %v1974
      %v1979 = vand.u32 2147483647, %v824
      %vm1980 = vcmp.eq.f32.partialorder %v1979, 8.507059e+37
      %v1981 = vand.u32 %v824, 2147483648
      %v1982 = vor.u32 1.1754944e-38, %v1981
      %v1983 = vsel %vm1980, %v1982, %v1978
      %v1984 = vmul.f32 1.0, %v1983
      %v1985 = vrcp.pop %v825
      %v1986 = vmul.f32 %v825, %v1985
      %v1987 = vsub.f32 1.0, %v1986
      %v1988 = vmul.f32 %v1985, %v1987
      %v1989 = vadd.f32 %v1985, %v1988
      %vm1990 = vweird.f32 %v825
      %vm1991 = vweird.f32 %v1985
      %vm1992 = vmor %vm1990, %vm1991
      %v1993 = vsel %vm1992, %v1985, %v1989
      %v1994 = vand.u32 2147483647, %v825
      %vm1995 = vcmp.eq.f32.partialorder %v1994, 8.507059e+37
      %v1996 = vand.u32 %v825, 2147483648
      %v1997 = vor.u32 1.1754944e-38, %v1996
      %v1998 = vsel %vm1995, %v1997, %v1993
      %v1999 = vmul.f32 1.0, %v1998
      %v2000 = vrcp.pop %v826
      %v2001 = vmul.f32 %v826, %v2000
      %v2002 = vsub.f32 1.0, %v2001
      %v2003 = vmul.f32 %v2000, %v2002
      %v2004 = vadd.f32 %v2000, %v2003
      %vm2005 = vweird.f32 %v826
      %vm2006 = vweird.f32 %v2000
      %vm2007 = vmor %vm2005, %vm2006
      %v2008 = vsel %vm2007, %v2000, %v2004
      %v2009 = vand.u32 2147483647, %v826
      %vm2010 = vcmp.eq.f32.partialorder %v2009, 8.507059e+37
      %v2011 = vand.u32 %v826, 2147483648
      %v2012 = vor.u32 1.1754944e-38, %v2011
      %v2013 = vsel %vm2010, %v2012, %v2008
      %v2014 = vmul.f32 1.0, %v2013
      %v2015 = vrcp.pop %v827
      %v2016 = vmul.f32 %v827, %v2015
      %v2017 = vsub.f32 1.0, %v2016
      %v2018 = vmul.f32 %v2015, %v2017
      %v2019 = vadd.f32 %v2015, %v2018
      %vm2020 = vweird.f32 %v827
      %vm2021 = vweird.f32 %v2015
      %vm2022 = vmor %vm2020, %vm2021
      %v2023 = vsel %vm2022, %v2015, %v2019
      %v2024 = vand.u32 2147483647, %v827
      %vm2025 = vcmp.eq.f32.partialorder %v2024, 8.507059e+37
      %v2026 = vand.u32 %v827, 2147483648
      %v2027 = vor.u32 1.1754944e-38, %v2026
      %v2028 = vsel %vm2025, %v2027, %v2023
      %v2029 = vmul.f32 1.0, %v2028
      %v2030 = vrcp.pop %v828
      %v2031 = vmul.f32 %v828, %v2030
      %v2032 = vsub.f32 1.0, %v2031
      %v2033 = vmul.f32 %v2030, %v2032
      %v2034 = vadd.f32 %v2030, %v2033
      %vm2035 = vweird.f32 %v828
      %vm2036 = vweird.f32 %v2030
      %vm2037 = vmor %vm2035, %vm2036
      %v2038 = vsel %vm2037, %v2030, %v2034
      %v2039 = vand.u32 2147483647, %v828
      %vm2040 = vcmp.eq.f32.partialorder %v2039, 8.507059e+37
      %v2041 = vand.u32 %v828, 2147483648
      %v2042 = vor.u32 1.1754944e-38, %v2041
      %v2043 = vsel %vm2040, %v2042, %v2038
      %v2044 = vmul.f32 1.0, %v2043
      %v2045 = vrcp.pop %v829
      %v2046 = vmul.f32 %v829, %v2045
      %v2047 = vsub.f32 1.0, %v2046
      %v2048 = vmul.f32 %v2045, %v2047
      %v2049 = vadd.f32 %v2045, %v2048
      %vm2050 = vweird.f32 %v829
      %vm2051 = vweird.f32 %v2045
      %vm2052 = vmor %vm2050, %vm2051
      %v2053 = vsel %vm2052, %v2045, %v2049
      %v2054 = vand.u32 2147483647, %v829
      %vm2055 = vcmp.eq.f32.partialorder %v2054, 8.507059e+37
      %v2056 = vand.u32 %v829, 2147483648
      %v2057 = vor.u32 1.1754944e-38, %v2056
      %v2058 = vsel %vm2055, %v2057, %v2053
      %v2059 = vmul.f32 1.0, %v2058
      %v2060 = vrcp.pop %v830
      %v2061 = vmul.f32 %v830, %v2060
      %v2062 = vsub.f32 1.0, %v2061
      %v2063 = vmul.f32 %v2060, %v2062
      %v2064 = vadd.f32 %v2060, %v2063
      %vm2065 = vweird.f32 %v830
      %vm2066 = vweird.f32 %v2060
      %vm2067 = vmor %vm2065, %vm2066
      %v2068 = vsel %vm2067, %v2060, %v2064
      %v2069 = vand.u32 2147483647, %v830
      %vm2070 = vcmp.eq.f32.partialorder %v2069, 8.507059e+37
      %v2071 = vand.u32 %v830, 2147483648
      %v2072 = vor.u32 1.1754944e-38, %v2071
      %v2073 = vsel %vm2070, %v2072, %v2068
      %v2074 = vmul.f32 1.0, %v2073
      %v2075 = vrcp.pop %v831
      %v2076 = vmul.f32 %v831, %v2075
      %v2077 = vsub.f32 1.0, %v2076
      %v2078 = vmul.f32 %v2075, %v2077
      %v2079 = vadd.f32 %v2075, %v2078
      %vm2080 = vweird.f32 %v831
      %vm2081 = vweird.f32 %v2075
      %vm2082 = vmor %vm2080, %vm2081
      %v2083 = vsel %vm2082, %v2075, %v2079
      %v2084 = vand.u32 2147483647, %v831
      %vm2085 = vcmp.eq.f32.partialorder %v2084, 8.507059e+37
      %v2086 = vand.u32 %v831, 2147483648
      %v2087 = vor.u32 1.1754944e-38, %v2086
      %v2088 = vsel %vm2085, %v2087, %v2083
      %v2089 = vmul.f32 1.0, %v2088
      %v2090 = vrcp.pop %v832
      %v2091 = vmul.f32 %v832, %v2090
      %v2092 = vsub.f32 1.0, %v2091
      %v2093 = vmul.f32 %v2090, %v2092
      %v2094 = vadd.f32 %v2090, %v2093
      %vm2095 = vweird.f32 %v832
      %vm2096 = vweird.f32 %v2090
      %vm2097 = vmor %vm2095, %vm2096
      %v2098 = vsel %vm2097, %v2090, %v2094
      %v2099 = vand.u32 2147483647, %v832
      %vm2100 = vcmp.eq.f32.partialorder %v2099, 8.507059e+37
      %v2101 = vand.u32 %v832, 2147483648
      %v2102 = vor.u32 1.1754944e-38, %v2101
      %v2103 = vsel %vm2100, %v2102, %v2098
      %v2104 = vmul.f32 1.0, %v2103
      %v2105 = vrcp.pop %v833
      %v2106 = vmul.f32 %v833, %v2105
      %v2107 = vsub.f32 1.0, %v2106
      %v2108 = vmul.f32 %v2105, %v2107
      %v2109 = vadd.f32 %v2105, %v2108
      %vm2110 = vweird.f32 %v833
      %vm2111 = vweird.f32 %v2105
      %vm2112 = vmor %vm2110, %vm2111
      %v2113 = vsel %vm2112, %v2105, %v2109
      %v2114 = vand.u32 2147483647, %v833
      %vm2115 = vcmp.eq.f32.partialorder %v2114, 8.507059e+37
      %v2116 = vand.u32 %v833, 2147483648
      %v2117 = vor.u32 1.1754944e-38, %v2116
      %v2118 = vsel %vm2115, %v2117, %v2113
      %v2119 = vmul.f32 1.0, %v2118
      %v2120 = vrcp.pop %v834
      %v2121 = vmul.f32 %v834, %v2120
      %v2122 = vsub.f32 1.0, %v2121
      %v2123 = vmul.f32 %v2120, %v2122
      %v2124 = vadd.f32 %v2120, %v2123
      %vm2125 = vweird.f32 %v834
      %vm2126 = vweird.f32 %v2120
      %vm2127 = vmor %vm2125, %vm2126
      %v2128 = vsel %vm2127, %v2120, %v2124
      %v2129 = vand.u32 2147483647, %v834
      %vm2130 = vcmp.eq.f32.partialorder %v2129, 8.507059e+37
      %v2131 = vand.u32 %v834, 2147483648
      %v2132 = vor.u32 1.1754944e-38, %v2131
      %v2133 = vsel %vm2130, %v2132, %v2128
      %v2134 = vmul.f32 1.0, %v2133
      %v2135 = vrcp.pop %v835
      %v2136 = vmul.f32 %v835, %v2135
      %v2137 = vsub.f32 1.0, %v2136
      %v2138 = vmul.f32 %v2135, %v2137
      %v2139 = vadd.f32 %v2135, %v2138
      %vm2140 = vweird.f32 %v835
      %vm2141 = vweird.f32 %v2135
      %vm2142 = vmor %vm2140, %vm2141
      %v2143 = vsel %vm2142, %v2135, %v2139
      %v2144 = vand.u32 2147483647, %v835
      %vm2145 = vcmp.eq.f32.partialorder %v2144, 8.507059e+37
      %v2146 = vand.u32 %v835, 2147483648
      %v2147 = vor.u32 1.1754944e-38, %v2146
      %v2148 = vsel %vm2145, %v2147, %v2143
      %v2149 = vmul.f32 1.0, %v2148
      %v2150 = vrcp.pop %v836
      %v2151 = vmul.f32 %v836, %v2150
      %v2152 = vsub.f32 1.0, %v2151
      %v2153 = vmul.f32 %v2150, %v2152
      %v2154 = vadd.f32 %v2150, %v2153
      %vm2155 = vweird.f32 %v836
      %vm2156 = vweird.f32 %v2150
      %vm2157 = vmor %vm2155, %vm2156
      %v2158 = vsel %vm2157, %v2150, %v2154
      %v2159 = vand.u32 2147483647, %v836
      %vm2160 = vcmp.eq.f32.partialorder %v2159, 8.507059e+37
      %v2161 = vand.u32 %v836, 2147483648
      %v2162 = vor.u32 1.1754944e-38, %v2161
      %v2163 = vsel %vm2160, %v2162, %v2158
      %v2164 = vmul.f32 1.0, %v2163
      %v2165 = vrcp.pop %v837
      %v2166 = vmul.f32 %v837, %v2165
      %v2167 = vsub.f32 1.0, %v2166
      %v2168 = vmul.f32 %v2165, %v2167
      %v2169 = vadd.f32 %v2165, %v2168
      %vm2170 = vweird.f32 %v837
      %vm2171 = vweird.f32 %v2165
      %vm2172 = vmor %vm2170, %vm2171
      %v2173 = vsel %vm2172, %v2165, %v2169
      %v2174 = vand.u32 2147483647, %v837
      %vm2175 = vcmp.eq.f32.partialorder %v2174, 8.507059e+37
      %v2176 = vand.u32 %v837, 2147483648
      %v2177 = vor.u32 1.1754944e-38, %v2176
      %v2178 = vsel %vm2175, %v2177, %v2173
      %v2179 = vmul.f32 1.0, %v2178
      %v2180 = vrcp.pop %v838
      %v2181 = vmul.f32 %v838, %v2180
      %v2182 = vsub.f32 1.0, %v2181
      %v2183 = vmul.f32 %v2180, %v2182
      %v2184 = vadd.f32 %v2180, %v2183
      %vm2185 = vweird.f32 %v838
      %vm2186 = vweird.f32 %v2180
      %vm2187 = vmor %vm2185, %vm2186
      %v2188 = vsel %vm2187, %v2180, %v2184
      %v2189 = vand.u32 2147483647, %v838
      %vm2190 = vcmp.eq.f32.partialorder %v2189, 8.507059e+37
      %v2191 = vand.u32 %v838, 2147483648
      %v2192 = vor.u32 1.1754944e-38, %v2191
      %v2193 = vsel %vm2190, %v2192, %v2188
      %v2194 = vmul.f32 1.0, %v2193
      %v2195 = vrcp.pop %v839
      %v2196 = vmul.f32 %v839, %v2195
      %v2197 = vsub.f32 1.0, %v2196
      %v2198 = vmul.f32 %v2195, %v2197
      %v2199 = vadd.f32 %v2195, %v2198
      %vm2200 = vweird.f32 %v839
      %vm2201 = vweird.f32 %v2195
      %vm2202 = vmor %vm2200, %vm2201
      %v2203 = vsel %vm2202, %v2195, %v2199
      %v2204 = vand.u32 2147483647, %v839
      %vm2205 = vcmp.eq.f32.partialorder %v2204, 8.507059e+37
      %v2206 = vand.u32 %v839, 2147483648
      %v2207 = vor.u32 1.1754944e-38, %v2206
      %v2208 = vsel %vm2205, %v2207, %v2203
      %v2209 = vmul.f32 1.0, %v2208
      %v2210 = vrcp.pop %v840
      %v2211 = vmul.f32 %v840, %v2210
      %v2212 = vsub.f32 1.0, %v2211
      %v2213 = vmul.f32 %v2210, %v2212
      %v2214 = vadd.f32 %v2210, %v2213
      %vm2215 = vweird.f32 %v840
      %vm2216 = vweird.f32 %v2210
      %vm2217 = vmor %vm2215, %vm2216
      %v2218 = vsel %vm2217, %v2210, %v2214
      %v2219 = vand.u32 2147483647, %v840
      %vm2220 = vcmp.eq.f32.partialorder %v2219, 8.507059e+37
      %v2221 = vand.u32 %v840, 2147483648
      %v2222 = vor.u32 1.1754944e-38, %v2221
      %v2223 = vsel %vm2220, %v2222, %v2218
      %v2224 = vmul.f32 1.0, %v2223
      %v2225 = vrcp.pop %v841
      %v2226 = vmul.f32 %v841, %v2225
      %v2227 = vsub.f32 1.0, %v2226
      %v2228 = vmul.f32 %v2225, %v2227
      %v2229 = vadd.f32 %v2225, %v2228
      %vm2230 = vweird.f32 %v841
      %vm2231 = vweird.f32 %v2225
      %vm2232 = vmor %vm2230, %vm2231
      %v2233 = vsel %vm2232, %v2225, %v2229
      %v2234 = vand.u32 2147483647, %v841
      %vm2235 = vcmp.eq.f32.partialorder %v2234, 8.507059e+37
      %v2236 = vand.u32 %v841, 2147483648
      %v2237 = vor.u32 1.1754944e-38, %v2236
      %v2238 = vsel %vm2235, %v2237, %v2233
      %v2239 = vmul.f32 1.0, %v2238
      %v2240 = vrcp.pop %v842
      %v2241 = vmul.f32 %v842, %v2240
      %v2242 = vsub.f32 1.0, %v2241
      %v2243 = vmul.f32 %v2240, %v2242
      %v2244 = vadd.f32 %v2240, %v2243
      %vm2245 = vweird.f32 %v842
      %vm2246 = vweird.f32 %v2240
      %vm2247 = vmor %vm2245, %vm2246
      %v2248 = vsel %vm2247, %v2240, %v2244
      %v2249 = vand.u32 2147483647, %v842
      %vm2250 = vcmp.eq.f32.partialorder %v2249, 8.507059e+37
      %v2251 = vand.u32 %v842, 2147483648
      %v2252 = vor.u32 1.1754944e-38, %v2251
      %v2253 = vsel %vm2250, %v2252, %v2248
      %v2254 = vmul.f32 1.0, %v2253
      %v2255 = vrcp.pop %v843
      %v2256 = vmul.f32 %v843, %v2255
      %v2257 = vsub.f32 1.0, %v2256
      %v2258 = vmul.f32 %v2255, %v2257
      %v2259 = vadd.f32 %v2255, %v2258
      %vm2260 = vweird.f32 %v843
      %vm2261 = vweird.f32 %v2255
      %vm2262 = vmor %vm2260, %vm2261
      %v2263 = vsel %vm2262, %v2255, %v2259
      %v2264 = vand.u32 2147483647, %v843
      %vm2265 = vcmp.eq.f32.partialorder %v2264, 8.507059e+37
      %v2266 = vand.u32 %v843, 2147483648
      %v2267 = vor.u32 1.1754944e-38, %v2266
      %v2268 = vsel %vm2265, %v2267, %v2263
      %v2269 = vmul.f32 1.0, %v2268
      %v2270 = vrcp.pop %v844
      %v2271 = vmul.f32 %v844, %v2270
      %v2272 = vsub.f32 1.0, %v2271
      %v2273 = vmul.f32 %v2270, %v2272
      %v2274 = vadd.f32 %v2270, %v2273
      %vm2275 = vweird.f32 %v844
      %vm2276 = vweird.f32 %v2270
      %vm2277 = vmor %vm2275, %vm2276
      %v2278 = vsel %vm2277, %v2270, %v2274
      %v2279 = vand.u32 2147483647, %v844
      %vm2280 = vcmp.eq.f32.partialorder %v2279, 8.507059e+37
      %v2281 = vand.u32 %v844, 2147483648
      %v2282 = vor.u32 1.1754944e-38, %v2281
      %v2283 = vsel %vm2280, %v2282, %v2278
      %v2284 = vmul.f32 1.0, %v2283
      %v2285 = vadd.f32 %v859, %v429
      %v2286 = vadd.f32 %v874, %v430
      %v2287 = vadd.f32 %v889, %v431
      %v2288 = vadd.f32 %v904, %v432
      %v2289 = vadd.f32 %v919, %v433
      %v2290 = vadd.f32 %v934, %v434
      %v2291 = vadd.f32 %v949, %v435
      %v2292 = vadd.f32 %v964, %v436
      %v2293 = vadd.f32 %v979, %v437
      %v2294 = vadd.f32 %v994, %v438
      %v2295 = vadd.f32 %v1009, %v439
      %v2296 = vadd.f32 %v1024, %v440
      %v2297 = vadd.f32 %v1039, %v441
      %v2298 = vadd.f32 %v1054, %v442
      %v2299 = vadd.f32 %v1069, %v443
      %v2300 = vadd.f32 %v1084, %v444
      %v2301 = vadd.f32 %v1099, %v445
      %v2302 = vadd.f32 %v1114, %v446
      %v2303 = vadd.f32 %v1129, %v447
      %v2304 = vadd.f32 %v1144, %v448
      %v2305 = vadd.f32 %v1159, %v449
      %v2306 = vadd.f32 %v1174, %v450
      %v2307 = vadd.f32 %v1189, %v451
      %v2308 = vadd.f32 %v1204, %v452
      %v2309 = vadd.f32 %v1219, %v453
      %v2310 = vadd.f32 %v1234, %v454
      %v2311 = vadd.f32 %v1249, %v455
      %v2312 = vadd.f32 %v1264, %v456
      %v2313 = vadd.f32 %v1279, %v457
      %v2314 = vadd.f32 %v1294, %v458
      %v2315 = vadd.f32 %v1309, %v459
      %v2316 = vadd.f32 %v1324, %v460
      %v2317 = vadd.f32 %v1339, %v429
      %v2318 = vadd.f32 %v1354, %v430
      %v2319 = vadd.f32 %v1369, %v431
      %v2320 = vadd.f32 %v1384, %v432
      %v2321 = vadd.f32 %v1399, %v433
      %v2322 = vadd.f32 %v1414, %v434
      %v2323 = vadd.f32 %v1429, %v435
      %v2324 = vadd.f32 %v1444, %v436
      %v2325 = vadd.f32 %v1459, %v437
      %v2326 = vadd.f32 %v1474, %v438
      %v2327 = vadd.f32 %v1489, %v439
      %v2328 = vadd.f32 %v1504, %v440
      %v2329 = vadd.f32 %v1519, %v441
      %v2330 = vadd.f32 %v1534, %v442
      %v2331 = vadd.f32 %v1549, %v443
      %v2332 = vadd.f32 %v1564, %v444
      %v2333 = vadd.f32 %v1579, %v445
      %v2334 = vadd.f32 %v1594, %v446
      %v2335 = vadd.f32 %v1609, %v447
      %v2336 = vadd.f32 %v1624, %v448
      %v2337 = vadd.f32 %v1639, %v449
      %v2338 = vadd.f32 %v1654, %v450
      %v2339 = vadd.f32 %v1669, %v451
      %v2340 = vadd.f32 %v1684, %v452
      %v2341 = vadd.f32 %v1699, %v453
      %v2342 = vadd.f32 %v1714, %v454
      %v2343 = vadd.f32 %v1729, %v455
      %v2344 = vadd.f32 %v1744, %v456
      %v2345 = vadd.f32 %v1759, %v457
      %v2346 = vadd.f32 %v1774, %v458
      %v2347 = vadd.f32 %v1789, %v459
      %v2348 = vadd.f32 %v1804, %v460
      %v2349 = vadd.f32 %v1819, %v429
      %v2350 = vadd.f32 %v1834, %v430
      %v2351 = vadd.f32 %v1849, %v431
      %v2352 = vadd.f32 %v1864, %v432
      %v2353 = vadd.f32 %v1879, %v433
      %v2354 = vadd.f32 %v1894, %v434
      %v2355 = vadd.f32 %v1909, %v435
      %v2356 = vadd.f32 %v1924, %v436
      %v2357 = vadd.f32 %v1939, %v437
      %v2358 = vadd.f32 %v1954, %v438
      %v2359 = vadd.f32 %v1969, %v439
      %v2360 = vadd.f32 %v1984, %v440
      %v2361 = vadd.f32 %v1999, %v441
      %v2362 = vadd.f32 %v2014, %v442
      %v2363 = vadd.f32 %v2029, %v443
      %v2364 = vadd.f32 %v2044, %v444
      %v2365 = vadd.f32 %v2059, %v445
      %v2366 = vadd.f32 %v2074, %v446
      %v2367 = vadd.f32 %v2089, %v447
      %v2368 = vadd.f32 %v2104, %v448
      %v2369 = vadd.f32 %v2119, %v449
      %v2370 = vadd.f32 %v2134, %v450
      %v2371 = vadd.f32 %v2149, %v451
      %v2372 = vadd.f32 %v2164, %v452
      %v2373 = vadd.f32 %v2179, %v453
      %v2374 = vadd.f32 %v2194, %v454
      %v2375 = vadd.f32 %v2209, %v455
      %v2376 = vadd.f32 %v2224, %v456
      %v2377 = vadd.f32 %v2239, %v457
      %v2378 = vadd.f32 %v2254, %v458
      %v2379 = vadd.f32 %v2269, %v459
      %v2380 = vadd.f32 %v2284, %v460
      %v2381 = vmul.f32 %v2285, 8.0
      %v2382 = vmul.f32 %v2286, 8.0
      %v2383 = vmul.f32 %v2287, 8.0
      %v2384 = vmul.f32 %v2288, 8.0
      %v2385 = vmul.f32 %v2289, 8.0
      %v2386 = vmul.f32 %v2290, 8.0
      %v2387 = vmul.f32 %v2291, 8.0
      %v2388 = vmul.f32 %v2292, 8.0
      %v2389 = vmul.f32 %v2293, 8.0
      %v2390 = vmul.f32 %v2294, 8.0
      %v2391 = vmul.f32 %v2295, 8.0
      %v2392 = vmul.f32 %v2296, 8.0
      %v2393 = vmul.f32 %v2297, 8.0
      %v2394 = vmul.f32 %v2298, 8.0
      %v2395 = vmul.f32 %v2299, 8.0
      %v2396 = vmul.f32 %v2300, 8.0
      %v2397 = vmul.f32 %v2301, 8.0
      %v2398 = vmul.f32 %v2302, 8.0
      %v2399 = vmul.f32 %v2303, 8.0
      %v2400 = vmul.f32 %v2304, 8.0
      %v2401 = vmul.f32 %v2305, 8.0
      %v2402 = vmul.f32 %v2306, 8.0
      %v2403 = vmul.f32 %v2307, 8.0
      %v2404 = vmul.f32 %v2308, 8.0
      %v2405 = vmul.f32 %v2309, 8.0
      %v2406 = vmul.f32 %v2310, 8.0
      %v2407 = vmul.f32 %v2311, 8.0
      %v2408 = vmul.f32 %v2312, 8.0
      %v2409 = vmul.f32 %v2313, 8.0
      %v2410 = vmul.f32 %v2314, 8.0
      %v2411 = vmul.f32 %v2315, 8.0
      %v2412 = vmul.f32 %v2316, 8.0
      %v2413 = vmul.f32 %v2317, 8.0
      %v2414 = vmul.f32 %v2318, 8.0
      %v2415 = vmul.f32 %v2319, 8.0
      %v2416 = vmul.f32 %v2320, 8.0
      %v2417 = vmul.f32 %v2321, 8.0
      %v2418 = vmul.f32 %v2322, 8.0
      %v2419 = vmul.f32 %v2323, 8.0
      %v2420 = vmul.f32 %v2324, 8.0
      %v2421 = vmul.f32 %v2325, 8.0
      %v2422 = vmul.f32 %v2326, 8.0
      %v2423 = vmul.f32 %v2327, 8.0
      %v2424 = vmul.f32 %v2328, 8.0
      %v2425 = vmul.f32 %v2329, 8.0
      %v2426 = vmul.f32 %v2330, 8.0
      %v2427 = vmul.f32 %v2331, 8.0
      %v2428 = vmul.f32 %v2332, 8.0
      %v2429 = vmul.f32 %v2333, 8.0
      %v2430 = vmul.f32 %v2334, 8.0
      %v2431 = vmul.f32 %v2335, 8.0
      %v2432 = vmul.f32 %v2336, 8.0
      %v2433 = vmul.f32 %v2337, 8.0
      %v2434 = vmul.f32 %v2338, 8.0
      %v2435 = vmul.f32 %v2339, 8.0
      %v2436 = vmul.f32 %v2340, 8.0
      %v2437 = vmul.f32 %v2341, 8.0
      %v2438 = vmul.f32 %v2342, 8.0
      %v2439 = vmul.f32 %v2343, 8.0
      %v2440 = vmul.f32 %v2344, 8.0
      %v2441 = vmul.f32 %v2345, 8.0
      %v2442 = vmul.f32 %v2346, 8.0
      %v2443 = vmul.f32 %v2347, 8.0
      %v2444 = vmul.f32 %v2348, 8.0
      %v2445 = vmul.f32 %v2349, 8.0
      %v2446 = vmul.f32 %v2350, 8.0
      %v2447 = vmul.f32 %v2351, 8.0
      %v2448 = vmul.f32 %v2352, 8.0
      %v2449 = vmul.f32 %v2353, 8.0
      %v2450 = vmul.f32 %v2354, 8.0
      %v2451 = vmul.f32 %v2355, 8.0
      %v2452 = vmul.f32 %v2356, 8.0
      %v2453 = vmul.f32 %v2357, 8.0
      %v2454 = vmul.f32 %v2358, 8.0
      %v2455 = vmul.f32 %v2359, 8.0
      %v2456 = vmul.f32 %v2360, 8.0
      %v2457 = vmul.f32 %v2361, 8.0
      %v2458 = vmul.f32 %v2362, 8.0
      %v2459 = vmul.f32 %v2363, 8.0
      %v2460 = vmul.f32 %v2364, 8.0
      %v2461 = vmul.f32 %v2365, 8.0
      %v2462 = vmul.f32 %v2366, 8.0
      %v2463 = vmul.f32 %v2367, 8.0
      %v2464 = vmul.f32 %v2368, 8.0
      %v2465 = vmul.f32 %v2369, 8.0
      %v2466 = vmul.f32 %v2370, 8.0
      %v2467 = vmul.f32 %v2371, 8.0
      %v2468 = vmul.f32 %v2372, 8.0
      %v2469 = vmul.f32 %v2373, 8.0
      %v2470 = vmul.f32 %v2374, 8.0
      %v2471 = vmul.f32 %v2375, 8.0
      %v2472 = vmul.f32 %v2376, 8.0
      %v2473 = vmul.f32 %v2377, 8.0
      %v2474 = vmul.f32 %v2378, 8.0
      %v2475 = vmul.f32 %v2379, 8.0
      %v2476 = vmul.f32 %v2380, 8.0
      %vm2477 = vcmask 15360
      %2478 = vst.msk [vmem:[%s170] sm:$0xff] %vm2477, %v2381
      %2479 = vst.msk [vmem:[%s170 + $0x8] sm:$0xff] %vm2477, %v2382
      %2480 = vst.msk [vmem:[%s170 + $0x10] sm:$0xff] %vm2477, %v2383
      %2481 = vst.msk [vmem:[%s170 + $0x18] sm:$0xff] %vm2477, %v2384
      %2482 = vst.msk [vmem:[%s170 + $0x20] sm:$0xff] %vm2477, %v2385
      %2483 = vst.msk [vmem:[%s170 + $0x28] sm:$0xff] %vm2477, %v2386
      %2484 = vst.msk [vmem:[%s170 + $0x30] sm:$0xff] %vm2477, %v2387
      %2485 = vst.msk [vmem:[%s170 + $0x38] sm:$0xff] %vm2477, %v2388
      %2486 = vst.msk [vmem:[%s170 + $0x40] sm:$0xff] %vm2477, %v2389
      %2487 = vst.msk [vmem:[%s170 + $0x48] sm:$0xff] %vm2477, %v2390
      %2488 = vst.msk [vmem:[%s170 + $0x50] sm:$0xff] %vm2477, %v2391
      %2489 = vst.msk [vmem:[%s170 + $0x58] sm:$0xff] %vm2477, %v2392
      %2490 = vst.msk [vmem:[%s170 + $0x60] sm:$0xff] %vm2477, %v2393
      %2491 = vst.msk [vmem:[%s170 + $0x68] sm:$0xff] %vm2477, %v2394
      %2492 = vst.msk [vmem:[%s170 + $0x70] sm:$0xff] %vm2477, %v2395
      %2493 = vst.msk [vmem:[%s170 + $0x78] sm:$0xff] %vm2477, %v2396
      %2494 = vst.msk [vmem:[%s170 + $0x80] sm:$0xff] %vm2477, %v2397
      %2495 = vst.msk [vmem:[%s170 + $0x88] sm:$0xff] %vm2477, %v2398
      %2496 = vst.msk [vmem:[%s170 + $0x90] sm:$0xff] %vm2477, %v2399
      %2497 = vst.msk [vmem:[%s170 + $0x98] sm:$0xff] %vm2477, %v2400
      %2498 = vst.msk [vmem:[%s170 + $0xa0] sm:$0xff] %vm2477, %v2401
      %2499 = vst.msk [vmem:[%s170 + $0xa8] sm:$0xff] %vm2477, %v2402
      %2500 = vst.msk [vmem:[%s170 + $0xb0] sm:$0xff] %vm2477, %v2403
      %2501 = vst.msk [vmem:[%s170 + $0xb8] sm:$0xff] %vm2477, %v2404
      %2502 = vst.msk [vmem:[%s170 + $0xc0] sm:$0xff] %vm2477, %v2405
      %2503 = vst.msk [vmem:[%s170 + $0xc8] sm:$0xff] %vm2477, %v2406
      %2504 = vst.msk [vmem:[%s170 + $0xd0] sm:$0xff] %vm2477, %v2407
      %2505 = vst.msk [vmem:[%s170 + $0xd8] sm:$0xff] %vm2477, %v2408
      %2506 = vst.msk [vmem:[%s170 + $0xe0] sm:$0xff] %vm2477, %v2409
      %2507 = vst.msk [vmem:[%s170 + $0xe8] sm:$0xff] %vm2477, %v2410
      %2508 = vst.msk [vmem:[%s170 + $0xf0] sm:$0xff] %vm2477, %v2411
      %2509 = vst.msk [vmem:[%s170 + $0xf8] sm:$0xff] %vm2477, %v2412
      %2510 = vst.msk [vmem:[%s170 + $0x100] sm:$0xff] %vm2477, %v2413
      %2511 = vst.msk [vmem:[%s170 + $0x108] sm:$0xff] %vm2477, %v2414
      %2512 = vst.msk [vmem:[%s170 + $0x110] sm:$0xff] %vm2477, %v2415
      %2513 = vst.msk [vmem:[%s170 + $0x118] sm:$0xff] %vm2477, %v2416
      %2514 = vst.msk [vmem:[%s170 + $0x120] sm:$0xff] %vm2477, %v2417
      %2515 = vst.msk [vmem:[%s170 + $0x128] sm:$0xff] %vm2477, %v2418
      %2516 = vst.msk [vmem:[%s170 + $0x130] sm:$0xff] %vm2477, %v2419
      %2517 = vst.msk [vmem:[%s170 + $0x138] sm:$0xff] %vm2477, %v2420
      %2518 = vst.msk [vmem:[%s170 + $0x140] sm:$0xff] %vm2477, %v2421
      %2519 = vst.msk [vmem:[%s170 + $0x148] sm:$0xff] %vm2477, %v2422
      %2520 = vst.msk [vmem:[%s170 + $0x150] sm:$0xff] %vm2477, %v2423
      %2521 = vst.msk [vmem:[%s170 + $0x158] sm:$0xff] %vm2477, %v2424
      %2522 = vst.msk [vmem:[%s170 + $0x160] sm:$0xff] %vm2477, %v2425
      %2523 = vst.msk [vmem:[%s170 + $0x168] sm:$0xff] %vm2477, %v2426
      %2524 = vst.msk [vmem:[%s170 + $0x170] sm:$0xff] %vm2477, %v2427
      %2525 = vst.msk [vmem:[%s170 + $0x178] sm:$0xff] %vm2477, %v2428
      %2526 = vst.msk [vmem:[%s170 + $0x180] sm:$0xff] %vm2477, %v2429
      %2527 = vst.msk [vmem:[%s170 + $0x188] sm:$0xff] %vm2477, %v2430
      %2528 = vst.msk [vmem:[%s170 + $0x190] sm:$0xff] %vm2477, %v2431
      %2529 = vst.msk [vmem:[%s170 + $0x198] sm:$0xff] %vm2477, %v2432
      %2530 = vst.msk [vmem:[%s170 + $0x1a0] sm:$0xff] %vm2477, %v2433
      %2531 = vst.msk [vmem:[%s170 + $0x1a8] sm:$0xff] %vm2477, %v2434
      %2532 = vst.msk [vmem:[%s170 + $0x1b0] sm:$0xff] %vm2477, %v2435
      %2533 = vst.msk [vmem:[%s170 + $0x1b8] sm:$0xff] %vm2477, %v2436
      %2534 = vst.msk [vmem:[%s170 + $0x1c0] sm:$0xff] %vm2477, %v2437
      %2535 = vst.msk [vmem:[%s170 + $0x1c8] sm:$0xff] %vm2477, %v2438
      %2536 = vst.msk [vmem:[%s170 + $0x1d0] sm:$0xff] %vm2477, %v2439
      %2537 = vst.msk [vmem:[%s170 + $0x1d8] sm:$0xff] %vm2477, %v2440
      %2538 = vst.msk [vmem:[%s170 + $0x1e0] sm:$0xff] %vm2477, %v2441
      %2539 = vst.msk [vmem:[%s170 + $0x1e8] sm:$0xff] %vm2477, %v2442
      %2540 = vst.msk [vmem:[%s170 + $0x1f0] sm:$0xff] %vm2477, %v2443
      %2541 = vst.msk [vmem:[%s170 + $0x1f8] sm:$0xff] %vm2477, %v2444
      %2542 = vst.msk [vmem:[%s170 + $0x200] sm:$0xff] %vm2477, %v2445
      %2543 = vst.msk [vmem:[%s170 + $0x208] sm:$0xff] %vm2477, %v2446
      %2544 = vst.msk [vmem:[%s170 + $0x210] sm:$0xff] %vm2477, %v2447
      %2545 = vst.msk [vmem:[%s170 + $0x218] sm:$0xff] %vm2477, %v2448
      %2546 = vst.msk [vmem:[%s170 + $0x220] sm:$0xff] %vm2477, %v2449
      %2547 = vst.msk [vmem:[%s170 + $0x228] sm:$0xff] %vm2477, %v2450
      %2548 = vst.msk [vmem:[%s170 + $0x230] sm:$0xff] %vm2477, %v2451
      %2549 = vst.msk [vmem:[%s170 + $0x238] sm:$0xff] %vm2477, %v2452
      %2550 = vst.msk [vmem:[%s170 + $0x240] sm:$0xff] %vm2477, %v2453
      %2551 = vst.msk [vmem:[%s170 + $0x248] sm:$0xff] %vm2477, %v2454
      %2552 = vst.msk [vmem:[%s170 + $0x250] sm:$0xff] %vm2477, %v2455
      %2553 = vst.msk [vmem:[%s170 + $0x258] sm:$0xff] %vm2477, %v2456
      %2554 = vst.msk [vmem:[%s170 + $0x260] sm:$0xff] %vm2477, %v2457
      %2555 = vst.msk [vmem:[%s170 + $0x268] sm:$0xff] %vm2477, %v2458
      %2556 = vst.msk [vmem:[%s170 + $0x270] sm:$0xff] %vm2477, %v2459
      %2557 = vst.msk [vmem:[%s170 + $0x278] sm:$0xff] %vm2477, %v2460
      %2558 = vst.msk [vmem:[%s170 + $0x280] sm:$0xff] %vm2477, %v2461
      %2559 = vst.msk [vmem:[%s170 + $0x288] sm:$0xff] %vm2477, %v2462
      %2560 = vst.msk [vmem:[%s170 + $0x290] sm:$0xff] %vm2477, %v2463
      %2561 = vst.msk [vmem:[%s170 + $0x298] sm:$0xff] %vm2477, %v2464
      %2562 = vst.msk [vmem:[%s170 + $0x2a0] sm:$0xff] %vm2477, %v2465
      %2563 = vst.msk [vmem:[%s170 + $0x2a8] sm:$0xff] %vm2477, %v2466
      %2564 = vst.msk [vmem:[%s170 + $0x2b0] sm:$0xff] %vm2477, %v2467
      %2565 = vst.msk [vmem:[%s170 + $0x2b8] sm:$0xff] %vm2477, %v2468
      %2566 = vst.msk [vmem:[%s170 + $0x2c0] sm:$0xff] %vm2477, %v2469
      %2567 = vst.msk [vmem:[%s170 + $0x2c8] sm:$0xff] %vm2477, %v2470
      %2568 = vst.msk [vmem:[%s170 + $0x2d0] sm:$0xff] %vm2477, %v2471
      %2569 = vst.msk [vmem:[%s170 + $0x2d8] sm:$0xff] %vm2477, %v2472
      %2570 = vst.msk [vmem:[%s170 + $0x2e0] sm:$0xff] %vm2477, %v2473
      %2571 = vst.msk [vmem:[%s170 + $0x2e8] sm:$0xff] %vm2477, %v2474
      %2572 = vst.msk [vmem:[%s170 + $0x2f0] sm:$0xff] %vm2477, %v2475
      %2573 = vst.msk [vmem:[%s170 + $0x2f8] sm:$0xff] %vm2477, %v2476
      %v2574 = vmul.f32 %v253, 1.442695
      %v2575 = vpow.pop %v2574
      %v2576 = vmul.f32 %v254, 1.442695
      %v2577 = vpow.pop %v2576
      %v2578 = vmul.f32 %v255, 1.442695
      %v2579 = vpow.pop %v2578
      %v2580 = vmul.f32 %v256, 1.442695
      %v2581 = vpow.pop %v2580
      %v2582 = vmul.f32 %v257, 1.442695
      %v2583 = vpow.pop %v2582
      %v2584 = vmul.f32 %v258, 1.442695
      %v2585 = vpow.pop %v2584
      %v2586 = vmul.f32 %v259, 1.442695
      %v2587 = vpow.pop %v2586
      %v2588 = vmul.f32 %v260, 1.442695
      %v2589 = vpow.pop %v2588
      %v2590 = vmul.f32 %v261, 1.442695
      %v2591 = vpow.pop %v2590
      %v2592 = vmul.f32 %v262, 1.442695
      %v2593 = vpow.pop %v2592
      %v2594 = vmul.f32 %v263, 1.442695
      %v2595 = vpow.pop %v2594
      %v2596 = vmul.f32 %v264, 1.442695
      %v2597 = vpow.pop %v2596
      %v2598 = vmul.f32 %v265, 1.442695
      %v2599 = vpow.pop %v2598
      %v2600 = vmul.f32 %v266, 1.442695
      %v2601 = vpow.pop %v2600
      %v2602 = vmul.f32 %v267, 1.442695
      %v2603 = vpow.pop %v2602
      %v2604 = vmul.f32 %v268, 1.442695
      %v2605 = vpow.pop %v2604
      %v2606 = vmul.f32 %v285, 1.442695
      %v2607 = vpow.pop %v2606
      %v2608 = vmul.f32 %v286, 1.442695
      %v2609 = vpow.pop %v2608
      %v2610 = vmul.f32 %v287, 1.442695
      %v2611 = vpow.pop %v2610
      %v2612 = vmul.f32 %v288, 1.442695
      %v2613 = vpow.pop %v2612
      %v2614 = vmul.f32 %v289, 1.442695
      %v2615 = vpow.pop %v2614
      %v2616 = vmul.f32 %v290, 1.442695
      %v2617 = vpow.pop %v2616
      %v2618 = vmul.f32 %v291, 1.442695
      %v2619 = vpow.pop %v2618
      %v2620 = vmul.f32 %v292, 1.442695
      %v2621 = vpow.pop %v2620
      %v2622 = vmul.f32 %v293, 1.442695
      %v2623 = vpow.pop %v2622
      %v2624 = vmul.f32 %v294, 1.442695
      %v2625 = vpow.pop %v2624
      %v2626 = vmul.f32 %v295, 1.442695
      %v2627 = vpow.pop %v2626
      %v2628 = vmul.f32 %v296, 1.442695
      %v2629 = vpow.pop %v2628
      %v2630 = vmul.f32 %v297, 1.442695
      %v2631 = vpow.pop %v2630
      %v2632 = vmul.f32 %v298, 1.442695
      %v2633 = vpow.pop %v2632
      %v2634 = vmul.f32 %v299, 1.442695
      %v2635 = vpow.pop %v2634
      %v2636 = vmul.f32 %v300, 1.442695
      %v2637 = vpow.pop %v2636
      %v2638 = vmul.f32 %v317, 1.442695
      %v2639 = vpow.pop %v2638
      %v2640 = vmul.f32 %v318, 1.442695
      %v2641 = vpow.pop %v2640
      %v2642 = vmul.f32 %v319, 1.442695
      %v2643 = vpow.pop %v2642
      %v2644 = vmul.f32 %v320, 1.442695
      %v2645 = vpow.pop %v2644
      %v2646 = vmul.f32 %v321, 1.442695
      %v2647 = vpow.pop %v2646
      %v2648 = vmul.f32 %v322, 1.442695
      %v2649 = vpow.pop %v2648
      %v2650 = vmul.f32 %v323, 1.442695
      %v2651 = vpow.pop %v2650
      %v2652 = vmul.f32 %v324, 1.442695
      %v2653 = vpow.pop %v2652
      %v2654 = vmul.f32 %v325, 1.442695
      %v2655 = vpow.pop %v2654
      %v2656 = vmul.f32 %v326, 1.442695
      %v2657 = vpow.pop %v2656
      %v2658 = vmul.f32 %v327, 1.442695
      %v2659 = vpow.pop %v2658
      %v2660 = vmul.f32 %v328, 1.442695
      %v2661 = vpow.pop %v2660
      %v2662 = vmul.f32 %v329, 1.442695
      %v2663 = vpow.pop %v2662
      %v2664 = vmul.f32 %v330, 1.442695
      %v2665 = vpow.pop %v2664
      %v2666 = vmul.f32 %v331, 1.442695
      %v2667 = vpow.pop %v2666
      %v2668 = vmul.f32 %v332, 1.442695
      %v2669 = vpow.pop %v2668
      %v2670 = vmul.f32 %v349, 1.442695
      %v2671 = vpow.pop %v2670
      %v2672 = vmul.f32 %v350, 1.442695
      %v2673 = vpow.pop %v2672
      %v2674 = vmul.f32 %v351, 1.442695
      %v2675 = vpow.pop %v2674
      %v2676 = vmul.f32 %v352, 1.442695
      %v2677 = vpow.pop %v2676
      %v2678 = vmul.f32 %v353, 1.442695
      %v2679 = vpow.pop %v2678
      %v2680 = vmul.f32 %v354, 1.442695
      %v2681 = vpow.pop %v2680
      %v2682 = vmul.f32 %v355, 1.442695
      %v2683 = vpow.pop %v2682
      %v2684 = vmul.f32 %v356, 1.442695
      %v2685 = vpow.pop %v2684
      %v2686 = vmul.f32 %v357, 1.442695
      %v2687 = vpow.pop %v2686
      %v2688 = vmul.f32 %v358, 1.442695
      %v2689 = vpow.pop %v2688
      %v2690 = vmul.f32 %v359, 1.442695
      %v2691 = vpow.pop %v2690
      %v2692 = vmul.f32 %v360, 1.442695
      %v2693 = vpow.pop %v2692
      %v2694 = vmul.f32 %v361, 1.442695
      %v2695 = vpow.pop %v2694
      %v2696 = vmul.f32 %v362, 1.442695
      %v2697 = vpow.pop %v2696
      %v2698 = vmul.f32 %v363, 1.442695
      %v2699 = vpow.pop %v2698
      %v2700 = vmul.f32 %v364, 1.442695
      %v2701 = vpow.pop %v2700
      %v2702 = vmul.f32 %v381, 1.442695
      %v2703 = vpow.pop %v2702
      %v2704 = vmul.f32 %v382, 1.442695
      %v2705 = vpow.pop %v2704
      %v2706 = vmul.f32 %v383, 1.442695
      %v2707 = vpow.pop %v2706
      %v2708 = vmul.f32 %v384, 1.442695
      %v2709 = vpow.pop %v2708
      %v2710 = vmul.f32 %v385, 1.442695
      %v2711 = vpow.pop %v2710
      %v2712 = vmul.f32 %v386, 1.442695
      %v2713 = vpow.pop %v2712
      %v2714 = vmul.f32 %v387, 1.442695
      %v2715 = vpow.pop %v2714
      %v2716 = vmul.f32 %v388, 1.442695
      %v2717 = vpow.pop %v2716
      %v2718 = vmul.f32 %v389, 1.442695
      %v2719 = vpow.pop %v2718
      %v2720 = vmul.f32 %v390, 1.442695
      %v2721 = vpow.pop %v2720
      %v2722 = vmul.f32 %v391, 1.442695
      %v2723 = vpow.pop %v2722
      %v2724 = vmul.f32 %v392, 1.442695
      %v2725 = vpow.pop %v2724
      %v2726 = vmul.f32 %v393, 1.442695
      %v2727 = vpow.pop %v2726
      %v2728 = vmul.f32 %v394, 1.442695
      %v2729 = vpow.pop %v2728
      %v2730 = vmul.f32 %v395, 1.442695
      %v2731 = vpow.pop %v2730
      %v2732 = vmul.f32 %v396, 1.442695
      %v2733 = vpow.pop %v2732
      %v2734 = vmul.f32 %v413, 1.442695
      %v2735 = vpow.pop %v2734
      %v2736 = vmul.f32 %v414, 1.442695
      %v2737 = vpow.pop %v2736
      %v2738 = vmul.f32 %v415, 1.442695
      %v2739 = vpow.pop %v2738
      %v2740 = vmul.f32 %v416, 1.442695
      %v2741 = vpow.pop %v2740
      %v2742 = vmul.f32 %v417, 1.442695
      %v2743 = vpow.pop %v2742
      %v2744 = vmul.f32 %v418, 1.442695
      %v2745 = vpow.pop %v2744
      %v2746 = vmul.f32 %v419, 1.442695
      %v2747 = vpow.pop %v2746
      %v2748 = vmul.f32 %v420, 1.442695
      %v2749 = vpow.pop %v2748
      %v2750 = vmul.f32 %v421, 1.442695
      %v2751 = vpow.pop %v2750
      %v2752 = vmul.f32 %v422, 1.442695
      %v2753 = vpow.pop %v2752
      %v2754 = vmul.f32 %v423, 1.442695
      %v2755 = vpow.pop %v2754
      %v2756 = vmul.f32 %v424, 1.442695
      %v2757 = vpow.pop %v2756
      %v2758 = vmul.f32 %v425, 1.442695
      %v2759 = vpow.pop %v2758
      %v2760 = vmul.f32 %v426, 1.442695
      %v2761 = vpow.pop %v2760
      %v2762 = vmul.f32 %v427, 1.442695
      %v2763 = vpow.pop %v2762
      %v2764 = vmul.f32 %v428, 1.442695
      %v2765 = vpow.pop %v2764
      %v2766 = vld [vmem:[%s1] sm:$0x1]
      %v2767 = vld [vmem:[%s1 + $0x1] sm:$0x1]
      %v2768 = vld [vmem:[%s1 + $0x2] sm:$0x1]
      %v2772 = vperm.slane %v2766, 0
      %v2773 = vperm.slane %v2767, 0
      %v2774 = vperm.slane %v2768, 0
      %2775 = vrot.lane.b32.xlu0 %v2772, 2
      %v2776 = vpop.permute.xlu0 %2775
      %2777 = vrot.lane.b32.xlu0 %v2773, 2
      %v2778 = vpop.permute.xlu0 %2777
      %2779 = vrot.lane.b32.xlu0 %v2774, 2
      %v2780 = vpop.permute.xlu0 %2779
      %v2784 = vmul.f32 %v2575, %v2776
      %v2785 = vmul.f32 %v2577, %v2776
      %v2786 = vmul.f32 %v2579, %v2776
      %v2787 = vmul.f32 %v2581, %v2776
      %v2788 = vmul.f32 %v2583, %v2776
      %v2789 = vmul.f32 %v2585, %v2776
      %v2790 = vmul.f32 %v2587, %v2776
      %v2791 = vmul.f32 %v2589, %v2776
      %v2792 = vmul.f32 %v2591, %v2776
      %v2793 = vmul.f32 %v2593, %v2776
      %v2794 = vmul.f32 %v2595, %v2776
      %v2795 = vmul.f32 %v2597, %v2776
      %v2796 = vmul.f32 %v2599, %v2776
      %v2797 = vmul.f32 %v2601, %v2776
      %v2798 = vmul.f32 %v2603, %v2776
      %v2799 = vmul.f32 %v2605, %v2776
      %v2800 = vmul.f32 %v2607, %v2776
      %v2801 = vmul.f32 %v2609, %v2776
      %v2802 = vmul.f32 %v2611, %v2776
      %v2803 = vmul.f32 %v2613, %v2776
      %v2804 = vmul.f32 %v2615, %v2776
      %v2805 = vmul.f32 %v2617, %v2776
      %v2806 = vmul.f32 %v2619, %v2776
      %v2807 = vmul.f32 %v2621, %v2776
      %v2808 = vmul.f32 %v2623, %v2776
      %v2809 = vmul.f32 %v2625, %v2776
      %v2810 = vmul.f32 %v2627, %v2776
      %v2811 = vmul.f32 %v2629, %v2776
      %v2812 = vmul.f32 %v2631, %v2776
      %v2813 = vmul.f32 %v2633, %v2776
      %v2814 = vmul.f32 %v2635, %v2776
      %v2815 = vmul.f32 %v2637, %v2776
      %v2816 = vmul.f32 %v2639, %v2778
      %v2817 = vmul.f32 %v2641, %v2778
      %v2818 = vmul.f32 %v2643, %v2778
      %v2819 = vmul.f32 %v2645, %v2778
      %v2820 = vmul.f32 %v2647, %v2778
      %v2821 = vmul.f32 %v2649, %v2778
      %v2822 = vmul.f32 %v2651, %v2778
      %v2823 = vmul.f32 %v2653, %v2778
      %v2824 = vmul.f32 %v2655, %v2778
      %v2825 = vmul.f32 %v2657, %v2778
      %v2826 = vmul.f32 %v2659, %v2778
      %v2827 = vmul.f32 %v2661, %v2778
      %v2828 = vmul.f32 %v2663, %v2778
      %v2829 = vmul.f32 %v2665, %v2778
      %v2830 = vmul.f32 %v2667, %v2778
      %v2831 = vmul.f32 %v2669, %v2778
      %v2832 = vmul.f32 %v2671, %v2778
      %v2833 = vmul.f32 %v2673, %v2778
      %v2834 = vmul.f32 %v2675, %v2778
      %v2835 = vmul.f32 %v2677, %v2778
      %v2836 = vmul.f32 %v2679, %v2778
      %v2837 = vmul.f32 %v2681, %v2778
      %v2838 = vmul.f32 %v2683, %v2778
      %v2839 = vmul.f32 %v2685, %v2778
      %v2840 = vmul.f32 %v2687, %v2778
      %v2841 = vmul.f32 %v2689, %v2778
      %v2842 = vmul.f32 %v2691, %v2778
      %v2843 = vmul.f32 %v2693, %v2778
      %v2844 = vmul.f32 %v2695, %v2778
      %v2845 = vmul.f32 %v2697, %v2778
      %v2846 = vmul.f32 %v2699, %v2778
      %v2847 = vmul.f32 %v2701, %v2778
      %v2848 = vmul.f32 %v2703, %v2780
      %v2849 = vmul.f32 %v2705, %v2780
      %v2850 = vmul.f32 %v2707, %v2780
      %v2851 = vmul.f32 %v2709, %v2780
      %v2852 = vmul.f32 %v2711, %v2780
      %v2853 = vmul.f32 %v2713, %v2780
      %v2854 = vmul.f32 %v2715, %v2780
      %v2855 = vmul.f32 %v2717, %v2780
      %v2856 = vmul.f32 %v2719, %v2780
      %v2857 = vmul.f32 %v2721, %v2780
      %v2858 = vmul.f32 %v2723, %v2780
      %v2859 = vmul.f32 %v2725, %v2780
      %v2860 = vmul.f32 %v2727, %v2780
      %v2861 = vmul.f32 %v2729, %v2780
      %v2862 = vmul.f32 %v2731, %v2780
      %v2863 = vmul.f32 %v2733, %v2780
      %v2864 = vmul.f32 %v2735, %v2780
      %v2865 = vmul.f32 %v2737, %v2780
      %v2866 = vmul.f32 %v2739, %v2780
      %v2867 = vmul.f32 %v2741, %v2780
      %v2868 = vmul.f32 %v2743, %v2780
      %v2869 = vmul.f32 %v2745, %v2780
      %v2870 = vmul.f32 %v2747, %v2780
      %v2871 = vmul.f32 %v2749, %v2780
      %v2872 = vmul.f32 %v2751, %v2780
      %v2873 = vmul.f32 %v2753, %v2780
      %v2874 = vmul.f32 %v2755, %v2780
      %v2875 = vmul.f32 %v2757, %v2780
      %v2876 = vmul.f32 %v2759, %v2780
      %v2877 = vmul.f32 %v2761, %v2780
      %v2878 = vmul.f32 %v2763, %v2780
      %v2879 = vmul.f32 %v2765, %v2780
      %vm2880 = vcmask 31760
      %2881 = vst.msk [vmem:[%s170] sm:$0xff] %vm2880, %v2784
      %2882 = vst.msk [vmem:[%s170 + $0x8] sm:$0xff] %vm2880, %v2785
      %2883 = vst.msk [vmem:[%s170 + $0x10] sm:$0xff] %vm2880, %v2786
      %2884 = vst.msk [vmem:[%s170 + $0x18] sm:$0xff] %vm2880, %v2787
      %2885 = vst.msk [vmem:[%s170 + $0x20] sm:$0xff] %vm2880, %v2788
      %2886 = vst.msk [vmem:[%s170 + $0x28] sm:$0xff] %vm2880, %v2789
      %2887 = vst.msk [vmem:[%s170 + $0x30] sm:$0xff] %vm2880, %v2790
      %2888 = vst.msk [vmem:[%s170 + $0x38] sm:$0xff] %vm2880, %v2791
      %2889 = vst.msk [vmem:[%s170 + $0x40] sm:$0xff] %vm2880, %v2792
      %2890 = vst.msk [vmem:[%s170 + $0x48] sm:$0xff] %vm2880, %v2793
      %2891 = vst.msk [vmem:[%s170 + $0x50] sm:$0xff] %vm2880, %v2794
      %2892 = vst.msk [vmem:[%s170 + $0x58] sm:$0xff] %vm2880, %v2795
      %2893 = vst.msk [vmem:[%s170 + $0x60] sm:$0xff] %vm2880, %v2796
      %2894 = vst.msk [vmem:[%s170 + $0x68] sm:$0xff] %vm2880, %v2797
      %2895 = vst.msk [vmem:[%s170 + $0x70] sm:$0xff] %vm2880, %v2798
      %2896 = vst.msk [vmem:[%s170 + $0x78] sm:$0xff] %vm2880, %v2799
      %2897 = vst.msk [vmem:[%s170 + $0x80] sm:$0xff] %vm2880, %v2800
      %2898 = vst.msk [vmem:[%s170 + $0x88] sm:$0xff] %vm2880, %v2801
      %2899 = vst.msk [vmem:[%s170 + $0x90] sm:$0xff] %vm2880, %v2802
      %2900 = vst.msk [vmem:[%s170 + $0x98] sm:$0xff] %vm2880, %v2803
      %2901 = vst.msk [vmem:[%s170 + $0xa0] sm:$0xff] %vm2880, %v2804
      %2902 = vst.msk [vmem:[%s170 + $0xa8] sm:$0xff] %vm2880, %v2805
      %2903 = vst.msk [vmem:[%s170 + $0xb0] sm:$0xff] %vm2880, %v2806
      %2904 = vst.msk [vmem:[%s170 + $0xb8] sm:$0xff] %vm2880, %v2807
      %2905 = vst.msk [vmem:[%s170 + $0xc0] sm:$0xff] %vm2880, %v2808
      %2906 = vst.msk [vmem:[%s170 + $0xc8] sm:$0xff] %vm2880, %v2809
      %2907 = vst.msk [vmem:[%s170 + $0xd0] sm:$0xff] %vm2880, %v2810
      %2908 = vst.msk [vmem:[%s170 + $0xd8] sm:$0xff] %vm2880, %v2811
      %2909 = vst.msk [vmem:[%s170 + $0xe0] sm:$0xff] %vm2880, %v2812
      %2910 = vst.msk [vmem:[%s170 + $0xe8] sm:$0xff] %vm2880, %v2813
      %2911 = vst.msk [vmem:[%s170 + $0xf0] sm:$0xff] %vm2880, %v2814
      %2912 = vst.msk [vmem:[%s170 + $0xf8] sm:$0xff] %vm2880, %v2815
      %2913 = vst.msk [vmem:[%s170 + $0x100] sm:$0xff] %vm2880, %v2816
      %2914 = vst.msk [vmem:[%s170 + $0x108] sm:$0xff] %vm2880, %v2817
      %2915 = vst.msk [vmem:[%s170 + $0x110] sm:$0xff] %vm2880, %v2818
      %2916 = vst.msk [vmem:[%s170 + $0x118] sm:$0xff] %vm2880, %v2819
      %2917 = vst.msk [vmem:[%s170 + $0x120] sm:$0xff] %vm2880, %v2820
      %2918 = vst.msk [vmem:[%s170 + $0x128] sm:$0xff] %vm2880, %v2821
      %2919 = vst.msk [vmem:[%s170 + $0x130] sm:$0xff] %vm2880, %v2822
      %2920 = vst.msk [vmem:[%s170 + $0x138] sm:$0xff] %vm2880, %v2823
      %2921 = vst.msk [vmem:[%s170 + $0x140] sm:$0xff] %vm2880, %v2824
      %2922 = vst.msk [vmem:[%s170 + $0x148] sm:$0xff] %vm2880, %v2825
      %2923 = vst.msk [vmem:[%s170 + $0x150] sm:$0xff] %vm2880, %v2826
      %2924 = vst.msk [vmem:[%s170 + $0x158] sm:$0xff] %vm2880, %v2827
      %2925 = vst.msk [vmem:[%s170 + $0x160] sm:$0xff] %vm2880, %v2828
      %2926 = vst.msk [vmem:[%s170 + $0x168] sm:$0xff] %vm2880, %v2829
      %2927 = vst.msk [vmem:[%s170 + $0x170] sm:$0xff] %vm2880, %v2830
      %2928 = vst.msk [vmem:[%s170 + $0x178] sm:$0xff] %vm2880, %v2831
      %2929 = vst.msk [vmem:[%s170 + $0x180] sm:$0xff] %vm2880, %v2832
      %2930 = vst.msk [vmem:[%s170 + $0x188] sm:$0xff] %vm2880, %v2833
      %2931 = vst.msk [vmem:[%s170 + $0x190] sm:$0xff] %vm2880, %v2834
      %2932 = vst.msk [vmem:[%s170 + $0x198] sm:$0xff] %vm2880, %v2835
      %2933 = vst.msk [vmem:[%s170 + $0x1a0] sm:$0xff] %vm2880, %v2836
      %2934 = vst.msk [vmem:[%s170 + $0x1a8] sm:$0xff] %vm2880, %v2837
      %2935 = vst.msk [vmem:[%s170 + $0x1b0] sm:$0xff] %vm2880, %v2838
      %2936 = vst.msk [vmem:[%s170 + $0x1b8] sm:$0xff] %vm2880, %v2839
      %2937 = vst.msk [vmem:[%s170 + $0x1c0] sm:$0xff] %vm2880, %v2840
      %2938 = vst.msk [vmem:[%s170 + $0x1c8] sm:$0xff] %vm2880, %v2841
      %2939 = vst.msk [vmem:[%s170 + $0x1d0] sm:$0xff] %vm2880, %v2842
      %2940 = vst.msk [vmem:[%s170 + $0x1d8] sm:$0xff] %vm2880, %v2843
      %2941 = vst.msk [vmem:[%s170 + $0x1e0] sm:$0xff] %vm2880, %v2844
      %2942 = vst.msk [vmem:[%s170 + $0x1e8] sm:$0xff] %vm2880, %v2845
      %2943 = vst.msk [vmem:[%s170 + $0x1f0] sm:$0xff] %vm2880, %v2846
      %2944 = vst.msk [vmem:[%s170 + $0x1f8] sm:$0xff] %vm2880, %v2847
      %2945 = vst.msk [vmem:[%s170 + $0x200] sm:$0xff] %vm2880, %v2848
      %2946 = vst.msk [vmem:[%s170 + $0x208] sm:$0xff] %vm2880, %v2849
      %2947 = vst.msk [vmem:[%s170 + $0x210] sm:$0xff] %vm2880, %v2850
      %2948 = vst.msk [vmem:[%s170 + $0x218] sm:$0xff] %vm2880, %v2851
      %2949 = vst.msk [vmem:[%s170 + $0x220] sm:$0xff] %vm2880, %v2852
      %2950 = vst.msk [vmem:[%s170 + $0x228] sm:$0xff] %vm2880, %v2853
      %2951 = vst.msk [vmem:[%s170 + $0x230] sm:$0xff] %vm2880, %v2854
      %2952 = vst.msk [vmem:[%s170 + $0x238] sm:$0xff] %vm2880, %v2855
      %2953 = vst.msk [vmem:[%s170 + $0x240] sm:$0xff] %vm2880, %v2856
      %2954 = vst.msk [vmem:[%s170 + $0x248] sm:$0xff] %vm2880, %v2857
      %2955 = vst.msk [vmem:[%s170 + $0x250] sm:$0xff] %vm2880, %v2858
      %2956 = vst.msk [vmem:[%s170 + $0x258] sm:$0xff] %vm2880, %v2859
      %2957 = vst.msk [vmem:[%s170 + $0x260] sm:$0xff] %vm2880, %v2860
      %2958 = vst.msk [vmem:[%s170 + $0x268] sm:$0xff] %vm2880, %v2861
      %2959 = vst.msk [vmem:[%s170 + $0x270] sm:$0xff] %vm2880, %v2862
      %2960 = vst.msk [vmem:[%s170 + $0x278] sm:$0xff] %vm2880, %v2863
      %2961 = vst.msk [vmem:[%s170 + $0x280] sm:$0xff] %vm2880, %v2864
      %2962 = vst.msk [vmem:[%s170 + $0x288] sm:$0xff] %vm2880, %v2865
      %2963 = vst.msk [vmem:[%s170 + $0x290] sm:$0xff] %vm2880, %v2866
      %2964 = vst.msk [vmem:[%s170 + $0x298] sm:$0xff] %vm2880, %v2867
      %2965 = vst.msk [vmem:[%s170 + $0x2a0] sm:$0xff] %vm2880, %v2868
      %2966 = vst.msk [vmem:[%s170 + $0x2a8] sm:$0xff] %vm2880, %v2869
      %2967 = vst.msk [vmem:[%s170 + $0x2b0] sm:$0xff] %vm2880, %v2870
      %2968 = vst.msk [vmem:[%s170 + $0x2b8] sm:$0xff] %vm2880, %v2871
      %2969 = vst.msk [vmem:[%s170 + $0x2c0] sm:$0xff] %vm2880, %v2872
      %2970 = vst.msk [vmem:[%s170 + $0x2c8] sm:$0xff] %vm2880, %v2873
      %2971 = vst.msk [vmem:[%s170 + $0x2d0] sm:$0xff] %vm2880, %v2874
      %2972 = vst.msk [vmem:[%s170 + $0x2d8] sm:$0xff] %vm2880, %v2875
      %2973 = vst.msk [vmem:[%s170 + $0x2e0] sm:$0xff] %vm2880, %v2876
      %2974 = vst.msk [vmem:[%s170 + $0x2e8] sm:$0xff] %vm2880, %v2877
      %2975 = vst.msk [vmem:[%s170 + $0x2f0] sm:$0xff] %vm2880, %v2878
      %2976 = vst.msk [vmem:[%s170 + $0x2f8] sm:$0xff] %vm2880, %v2879
      %vm2977 = vcmask 695328
      %2978 = vst.msk [vmem:[%s170] sm:$0xff] %vm2977, %v859
      %2979 = vst.msk [vmem:[%s170 + $0x8] sm:$0xff] %vm2977, %v874
      %2980 = vst.msk [vmem:[%s170 + $0x10] sm:$0xff] %vm2977, %v889
      %2981 = vst.msk [vmem:[%s170 + $0x18] sm:$0xff] %vm2977, %v904
      %2982 = vst.msk [vmem:[%s170 + $0x20] sm:$0xff] %vm2977, %v919
      %2983 = vst.msk [vmem:[%s170 + $0x28] sm:$0xff] %vm2977, %v934
      %2984 = vst.msk [vmem:[%s170 + $0x30] sm:$0xff] %vm2977, %v949
      %2985 = vst.msk [vmem:[%s170 + $0x38] sm:$0xff] %vm2977, %v964
      %2986 = vst.msk [vmem:[%s170 + $0x40] sm:$0xff] %vm2977, %v979
      %2987 = vst.msk [vmem:[%s170 + $0x48] sm:$0xff] %vm2977, %v994
      %2988 = vst.msk [vmem:[%s170 + $0x50] sm:$0xff] %vm2977, %v1009
      %2989 = vst.msk [vmem:[%s170 + $0x58] sm:$0xff] %vm2977, %v1024
      %2990 = vst.msk [vmem:[%s170 + $0x60] sm:$0xff] %vm2977, %v1039
      %2991 = vst.msk [vmem:[%s170 + $0x68] sm:$0xff] %vm2977, %v1054
      %2992 = vst.msk [vmem:[%s170 + $0x70] sm:$0xff] %vm2977, %v1069
      %2993 = vst.msk [vmem:[%s170 + $0x78] sm:$0xff] %vm2977, %v1084
      %2994 = vst.msk [vmem:[%s170 + $0x80] sm:$0xff] %vm2977, %v1099
      %2995 = vst.msk [vmem:[%s170 + $0x88] sm:$0xff] %vm2977, %v1114
      %2996 = vst.msk [vmem:[%s170 + $0x90] sm:$0xff] %vm2977, %v1129
      %2997 = vst.msk [vmem:[%s170 + $0x98] sm:$0xff] %vm2977, %v1144
      %2998 = vst.msk [vmem:[%s170 + $0xa0] sm:$0xff] %vm2977, %v1159
      %2999 = vst.msk [vmem:[%s170 + $0xa8] sm:$0xff] %vm2977, %v1174
      %3000 = vst.msk [vmem:[%s170 + $0xb0] sm:$0xff] %vm2977, %v1189
      %3001 = vst.msk [vmem:[%s170 + $0xb8] sm:$0xff] %vm2977, %v1204
      %3002 = vst.msk [vmem:[%s170 + $0xc0] sm:$0xff] %vm2977, %v1219
      %3003 = vst.msk [vmem:[%s170 + $0xc8] sm:$0xff] %vm2977, %v1234
      %3004 = vst.msk [vmem:[%s170 + $0xd0] sm:$0xff] %vm2977, %v1249
      %3005 = vst.msk [vmem:[%s170 + $0xd8] sm:$0xff] %vm2977, %v1264
      %3006 = vst.msk [vmem:[%s170 + $0xe0] sm:$0xff] %vm2977, %v1279
      %3007 = vst.msk [vmem:[%s170 + $0xe8] sm:$0xff] %vm2977, %v1294
      %3008 = vst.msk [vmem:[%s170 + $0xf0] sm:$0xff] %vm2977, %v1309
      %3009 = vst.msk [vmem:[%s170 + $0xf8] sm:$0xff] %vm2977, %v1324
      %3010 = vst.msk [vmem:[%s170 + $0x100] sm:$0xff] %vm2977, %v1339
      %3011 = vst.msk [vmem:[%s170 + $0x108] sm:$0xff] %vm2977, %v1354
      %3012 = vst.msk [vmem:[%s170 + $0x110] sm:$0xff] %vm2977, %v1369
      %3013 = vst.msk [vmem:[%s170 + $0x118] sm:$0xff] %vm2977, %v1384
      %3014 = vst.msk [vmem:[%s170 + $0x120] sm:$0xff] %vm2977, %v1399
      %3015 = vst.msk [vmem:[%s170 + $0x128] sm:$0xff] %vm2977, %v1414
      %3016 = vst.msk [vmem:[%s170 + $0x130] sm:$0xff] %vm2977, %v1429
      %3017 = vst.msk [vmem:[%s170 + $0x138] sm:$0xff] %vm2977, %v1444
      %3018 = vst.msk [vmem:[%s170 + $0x140] sm:$0xff] %vm2977, %v1459
      %3019 = vst.msk [vmem:[%s170 + $0x148] sm:$0xff] %vm2977, %v1474
      %3020 = vst.msk [vmem:[%s170 + $0x150] sm:$0xff] %vm2977, %v1489
      %3021 = vst.msk [vmem:[%s170 + $0x158] sm:$0xff] %vm2977, %v1504
      %3022 = vst.msk [vmem:[%s170 + $0x160] sm:$0xff] %vm2977, %v1519
      %3023 = vst.msk [vmem:[%s170 + $0x168] sm:$0xff] %vm2977, %v1534
      %3024 = vst.msk [vmem:[%s170 + $0x170] sm:$0xff] %vm2977, %v1549
      %3025 = vst.msk [vmem:[%s170 + $0x178] sm:$0xff] %vm2977, %v1564
      %3026 = vst.msk [vmem:[%s170 + $0x180] sm:$0xff] %vm2977, %v1579
      %3027 = vst.msk [vmem:[%s170 + $0x188] sm:$0xff] %vm2977, %v1594
      %3028 = vst.msk [vmem:[%s170 + $0x190] sm:$0xff] %vm2977, %v1609
      %3029 = vst.msk [vmem:[%s170 + $0x198] sm:$0xff] %vm2977, %v1624
      %3030 = vst.msk [vmem:[%s170 + $0x1a0] sm:$0xff] %vm2977, %v1639
      %3031 = vst.msk [vmem:[%s170 + $0x1a8] sm:$0xff] %vm2977, %v1654
      %3032 = vst.msk [vmem:[%s170 + $0x1b0] sm:$0xff] %vm2977, %v1669
      %3033 = vst.msk [vmem:[%s170 + $0x1b8] sm:$0xff] %vm2977, %v1684
      %3034 = vst.msk [vmem:[%s170 + $0x1c0] sm:$0xff] %vm2977, %v1699
      %3035 = vst.msk [vmem:[%s170 + $0x1c8] sm:$0xff] %vm2977, %v1714
      %3036 = vst.msk [vmem:[%s170 + $0x1d0] sm:$0xff] %vm2977, %v1729
      %3037 = vst.msk [vmem:[%s170 + $0x1d8] sm:$0xff] %vm2977, %v1744
      %3038 = vst.msk [vmem:[%s170 + $0x1e0] sm:$0xff] %vm2977, %v1759
      %3039 = vst.msk [vmem:[%s170 + $0x1e8] sm:$0xff] %vm2977, %v1774
      %3040 = vst.msk [vmem:[%s170 + $0x1f0] sm:$0xff] %vm2977, %v1789
      %3041 = vst.msk [vmem:[%s170 + $0x1f8] sm:$0xff] %vm2977, %v1804
      %3042 = vst.msk [vmem:[%s170 + $0x200] sm:$0xff] %vm2977, %v1819
      %3043 = vst.msk [vmem:[%s170 + $0x208] sm:$0xff] %vm2977, %v1834
      %3044 = vst.msk [vmem:[%s170 + $0x210] sm:$0xff] %vm2977, %v1849
      %3045 = vst.msk [vmem:[%s170 + $0x218] sm:$0xff] %vm2977, %v1864
      %3046 = vst.msk [vmem:[%s170 + $0x220] sm:$0xff] %vm2977, %v1879
      %3047 = vst.msk [vmem:[%s170 + $0x228] sm:$0xff] %vm2977, %v1894
      %3048 = vst.msk [vmem:[%s170 + $0x230] sm:$0xff] %vm2977, %v1909
      %3049 = vst.msk [vmem:[%s170 + $0x238] sm:$0xff] %vm2977, %v1924
      %3050 = vst.msk [vmem:[%s170 + $0x240] sm:$0xff] %vm2977, %v1939
      %3051 = vst.msk [vmem:[%s170 + $0x248] sm:$0xff] %vm2977, %v1954
      %3052 = vst.msk [vmem:[%s170 + $0x250] sm:$0xff] %vm2977, %v1969
      %3053 = vst.msk [vmem:[%s170 + $0x258] sm:$0xff] %vm2977, %v1984
      %3054 = vst.msk [vmem:[%s170 + $0x260] sm:$0xff] %vm2977, %v1999
      %3055 = vst.msk [vmem:[%s170 + $0x268] sm:$0xff] %vm2977, %v2014
      %3056 = vst.msk [vmem:[%s170 + $0x270] sm:$0xff] %vm2977, %v2029
      %3057 = vst.msk [vmem:[%s170 + $0x278] sm:$0xff] %vm2977, %v2044
      %3058 = vst.msk [vmem:[%s170 + $0x280] sm:$0xff] %vm2977, %v2059
      %3059 = vst.msk [vmem:[%s170 + $0x288] sm:$0xff] %vm2977, %v2074
      %3060 = vst.msk [vmem:[%s170 + $0x290] sm:$0xff] %vm2977, %v2089
      %3061 = vst.msk [vmem:[%s170 + $0x298] sm:$0xff] %vm2977, %v2104
      %3062 = vst.msk [vmem:[%s170 + $0x2a0] sm:$0xff] %vm2977, %v2119
      %3063 = vst.msk [vmem:[%s170 + $0x2a8] sm:$0xff] %vm2977, %v2134
      %3064 = vst.msk [vmem:[%s170 + $0x2b0] sm:$0xff] %vm2977, %v2149
      %3065 = vst.msk [vmem:[%s170 + $0x2b8] sm:$0xff] %vm2977, %v2164
      %3066 = vst.msk [vmem:[%s170 + $0x2c0] sm:$0xff] %vm2977, %v2179
      %3067 = vst.msk [vmem:[%s170 + $0x2c8] sm:$0xff] %vm2977, %v2194
      %3068 = vst.msk [vmem:[%s170 + $0x2d0] sm:$0xff] %vm2977, %v2209
      %3069 = vst.msk [vmem:[%s170 + $0x2d8] sm:$0xff] %vm2977, %v2224
      %3070 = vst.msk [vmem:[%s170 + $0x2e0] sm:$0xff] %vm2977, %v2239
      %3071 = vst.msk [vmem:[%s170 + $0x2e8] sm:$0xff] %vm2977, %v2254
      %3072 = vst.msk [vmem:[%s170 + $0x2f0] sm:$0xff] %vm2977, %v2269
      %3073 = vst.msk [vmem:[%s170 + $0x2f8] sm:$0xff] %vm2977, %v2284
      %p3074 = scmp.lt.s32.totalorder %s14, 1
      %s3075 = scalar_select %p3074, %s14, 1
      %s3076 = smul.addr %s3075, 96
      %s3077 = smul.addr %s3076, 8
      %s3078 = scalar_lea.vmem %s3, %s3077
      // Predicated region
      $region33: #{tpu_custom_call.1} parent=31 // pred_check
        %p3079 = pneg %p100
      $region34: #{tpu_custom_call.1} parent=31 // pred_check_branch
        %3081 = sbr.rel (%p3079) target = $region36
      $region35: #{tpu_custom_call.1} parent=31 // pred_region
        _
      $region36: #{tpu_custom_call.1} parent=31 // pred_fallthru
        _
    $region32: #{tpu_custom_call.1} parent=5 // pred_fallthru
      _
    %p3082 = scmp.le.s32.totalorder 2, %s9
    // Predicated region
    $region37: #{tpu_custom_call.1} parent=5 // pred_check
      %p3083 = pneg %p3082
    $region38: #{tpu_custom_call.1} parent=5 // pred_check_branch
      %3085 = sbr.rel (%p3083) target = $region40
    $region39: #{tpu_custom_call.1} parent=5 // pred_region
      %s3086 = ssub.s32 %s9, 2
      // Predicated region
      $region41: #{tpu_custom_call.1} parent=39 // pred_check
        %p3087 = pneg %p106
      $region42: #{tpu_custom_call.1} parent=39 // pred_check_branch
        %3089 = sbr.rel (%p3087) target = $region44
      $region43: #{tpu_custom_call.1} parent=39 // pred_region
        %p3090 = scmp.lt.s32.totalorder %s15, 1
        %s3091 = scalar_select %p3090, %s15, 1
        %s3092 = smul.addr %s3091, 96
        %s3093 = smul.addr %s3092, 8
        %s3094 = scalar_lea.vmem %s3, %s3093
      $region44: #{tpu_custom_call.1} parent=39 // pred_fallthru
        _
    $region40: #{tpu_custom_call.1} parent=5 // pred_fallthru
      _
  $region6: #{tpu_custom_call.1} parent=0 // loop_footer
    %s13 = sadd.s32 1, %s9
  $region7: #{tpu_custom_call.1} parent=0 // loop_footer_branch
    %8 = sbr.rel target = $region3
  $region8: #{tpu_custom_call.1} parent=0 // loop_exit
    _

// kernel: tpu_custom_call.1
$region0: #{tpu_custom_call.1}
  #allocation0 [shape = 'u32[]', space=smem, size = 0x4, offset = 0x4, fixed_abs, tag = 'smem constant byte address 0x4 - core index']
  #allocation1 [shape = 'u32[72,128]{1,0:T(1,128)}', space=vmem, size = 0x9000, scoped, tag = 'internal scratch']
  %s0 = inlined_call_operand.vmem [shape: f32[2,256], index: 0, kind: input, shape index: {}]
  %s1 = inlined_call_operand.vmem [shape: f32[1,3,2,1], index: 1, kind: input, shape index: {}]
  %s2 = inlined_call_operand.vmem [shape: f32[2,3,85,256], index: 2, kind: input, shape index: {}]
  %s3 = inlined_call_operand.vmem [shape: f32[2,3,85,256], index: 3, kind: output, shape index: {}]
  %s4 = sld [smem:[#allocation0]]
  $region45: #{tpu_custom_call.1} parent=0
    _
  %s6 = ssub.s32 1, %s4
  %s7 = scalar_select 0, %s6, %s4
  loop: start=0, step=1, limit=4
  $region2: #{tpu_custom_call.1} parent=0 // loop_pre_header
    _
  $region3: #{tpu_custom_call.1} parent=0 // loop_header
    %s9 = sphi 0, %s13
    %p10 = scmp.ge.s32.totalorder %s9, 4
    %s17 = sphi 0, %s17
    %s19 = sphi 0, %s17
    %s20 = sphi 0, %s19
    %s34 = sphi 0, %s20
    %s38 = sphi 0, %s38
    %s40 = sphi 0, %s38
    %s41 = sphi 0, %s40
    %s55 = sphi 0, %s41
    %s61 = sphi 0, %s63
    %s64 = sphi 0, %s61
    %s65 = sphi 0, %s64
    %s81 = sphi 0, %s65
    %s87 = sphi 0, %s89
    %s90 = sphi 0, %s87
    %s91 = sphi 0, %s90
    %s107 = sphi 0, %s91
  $region4: #{tpu_custom_call.1} parent=0 // loop_header_branch
    %12 = sbr.rel (%p10) target = $region8
  $region5: #{tpu_custom_call.1} parent=0 // loop_body
    %s14 = ssub.s32 %s9, 1
    %s15 = ssub.s32 %s9, 2
    %s16 = sadd.s32 %s9, 1
    %s18 = sadd.s32 %s17, 1
    %p21 = scmp.eq.s32.totalorder %s9, 1
    %p22 = scmp.ne.s32.totalorder %s17, %s19
    %p23 = scmp.eq.s32.totalorder %s9, 0
    %p24 = por %p22, %p23
    %p25 = scmp.ne.s32.totalorder %s17, %s19
    %p26 = scmp.eq.s32.totalorder %s14, 1
    %p27 = por %p25, %p26
    %p28 = scmp.ne.s32.totalorder %s19, %s20
    %p29 = scmp.eq.s32.totalorder %s14, 0
    %p30 = por %p28, %p29
    %p31 = scmp.ne.s32.totalorder %s19, %s20
    %p32 = scmp.eq.s32.totalorder %s15, 1
    %p33 = por %p31, %p32
    %p35 = scmp.ne.s32.totalorder %s20, %s34
    %p36 = scmp.eq.s32.totalorder %s15, 0
    %p37 = por %p35, %p36
    %s39 = sadd.s32 %s38, 1
    %p42 = scmp.eq.s32.totalorder %s9, 1
    %p43 = scmp.ne.s32.totalorder %s38, %s40
    %p44 = scmp.eq.s32.totalorder %s9, 0
    %p45 = por %p43, %p44
    %p46 = scmp.ne.s32.totalorder %s38, %s40
    %p47 = scmp.eq.s32.totalorder %s14, 1
    %p48 = por %p46, %p47
    %p49 = scmp.ne.s32.totalorder %s40, %s41
    %p50 = scmp.eq.s32.totalorder %s14, 0
    %p51 = por %p49, %p50
    %p52 = scmp.ne.s32.totalorder %s40, %s41
    %p53 = scmp.eq.s32.totalorder %s15, 1
    %p54 = por %p52, %p53
    %p56 = scmp.ne.s32.totalorder %s41, %s55
    %p57 = scmp.eq.s32.totalorder %s15, 0
    %p58 = por %p56, %p57
    %s59 = ssub.s32 %s9, %s16
    %p60 = scmp.eq.s32.totalorder %s59, 0
    %s62 = sadd.s32 %s61, 1
    %s63 = scalar_select %p60, %s61, %s62
    %p66 = pneg %p60
    %p67 = scmp.eq.s32.totalorder %s9, 1
    %p68 = por %p66, %p67
    %p69 = scmp.ne.s32.totalorder %s61, %s64
    %p70 = scmp.eq.s32.totalorder %s9, 0
    %p71 = por %p69, %p70
    %p72 = scmp.ne.s32.totalorder %s61, %s64
    %p73 = scmp.eq.s32.totalorder %s14, 1
    %p74 = por %p72, %p73
    %p75 = scmp.ne.s32.totalorder %s64, %s65
    %p76 = scmp.eq.s32.totalorder %s14, 0
    %p77 = por %p75, %p76
    %p78 = scmp.ne.s32.totalorder %s64, %s65
    %p79 = scmp.eq.s32.totalorder %s15, 1
    %p80 = por %p78, %p79
    %p82 = scmp.ne.s32.totalorder %s65, %s81
    %p83 = scmp.eq.s32.totalorder %s15, 0
    %p84 = por %p82, %p83
    %s85 = ssub.s32 %s9, %s16
    %p86 = scmp.eq.s32.totalorder %s85, 0
    %s88 = sadd.s32 %s87, 1
    %s89 = scalar_select %p86, %s87, %s88
    %p92 = pneg %p86
    %p93 = scmp.eq.s32.totalorder %s9, 1
    %p94 = por %p92, %p93
    %p95 = scmp.ne.s32.totalorder %s87, %s90
    %p96 = scmp.eq.s32.totalorder %s9, 0
    %p97 = por %p95, %p96
    %p98 = scmp.ne.s32.totalorder %s87, %s90
    %p99 = scmp.eq.s32.totalorder %s14, 1
    %p100 = por %p98, %p99
    %p101 = scmp.ne.s32.totalorder %s90, %s91
    %p102 = scmp.eq.s32.totalorder %s14, 0
    %p103 = por %p101, %p102
    %p104 = scmp.ne.s32.totalorder %s90, %s91
    %p105 = scmp.eq.s32.totalorder %s15, 1
    %p106 = por %p104, %p105
    %p108 = scmp.ne.s32.totalorder %s91, %s107
    %p109 = scmp.eq.s32.totalorder %s15, 0
    %p110 = por %p108, %p109
    %p111 = scmp.le.s32.totalorder 1, %s9
    %p112 = scmp.lt.s32.totalorder %s9, 3
    %p113 = pnand %p111, %p112
    %p114 = pneg %p113
    // Predicated region
    $region9: #{tpu_custom_call.1} parent=5 // pred_check
      _
    $region10: #{tpu_custom_call.1} parent=5 // pred_check_branch
      %116 = sbr.rel (%p113) target = $region12
    $region11: #{tpu_custom_call.1} parent=5 // pred_region
      %s117 = ssub.s32 %s9, 1
      // Predicated region
      $region13: #{tpu_custom_call.1} parent=11 // pred_check
        %p118 = pneg %p30
      $region14: #{tpu_custom_call.1} parent=11 // pred_check_branch
        %120 = sbr.rel (%p118) target = $region16
      $region15: #{tpu_custom_call.1} parent=11 // pred_region
        _
      $region16: #{tpu_custom_call.1} parent=11 // pred_fallthru
        _
      // Predicated region
      $region17: #{tpu_custom_call.1} parent=11 // pred_check
        %p121 = pneg %p51
      $region18: #{tpu_custom_call.1} parent=11 // pred_check_branch
        %123 = sbr.rel (%p121) target = $region20
      $region19: #{tpu_custom_call.1} parent=11 // pred_region
        _
      $region20: #{tpu_custom_call.1} parent=11 // pred_fallthru
        _
    $region12: #{tpu_custom_call.1} parent=5 // pred_fallthru
      _
    %p124 = scmp.lt.s32.totalorder %s9, 2
    // Predicated region
    $region21: #{tpu_custom_call.1} parent=5 // pred_check
      %p125 = pneg %p124
    $region22: #{tpu_custom_call.1} parent=5 // pred_check_branch
      %127 = sbr.rel (%p125) target = $region24
    $region23: #{tpu_custom_call.1} parent=5 // pred_region
      // Predicated region
      $region25: #{tpu_custom_call.1} parent=23 // pred_check
        %p128 = pneg %p71
      $region26: #{tpu_custom_call.1} parent=23 // pred_check_branch
        %130 = sbr.rel (%p128) target = $region28
      $region27: #{tpu_custom_call.1} parent=23 // pred_region
        %p131 = scmp.lt.s32.totalorder %s9, 1
        %s132 = scalar_select %p131, %s9, 1
        %s133 = smul.addr %s132, 66
        %s134 = smul.addr %s133, 8
        %s135 = scalar_lea.vmem %s2, %s134
      $region28: #{tpu_custom_call.1} parent=23 // pred_fallthru
        _
    $region24: #{tpu_custom_call.1} parent=5 // pred_fallthru
      _
    %p136 = scmp.le.s32.totalorder 1, %s9
    %p137 = scmp.lt.s32.totalorder %s9, 3
    %p138 = pnand %p136, %p137
    %p139 = pneg %p138
    // Predicated region
    $region29: #{tpu_custom_call.1} parent=5 // pred_check
      _
    $region30: #{tpu_custom_call.1} parent=5 // pred_check_branch
      %141 = sbr.rel (%p138) target = $region32
    $region31: #{tpu_custom_call.1} parent=5 // pred_region
      %s142 = ssub.s32 %s9, 1
      %p143 = pneg %p30
      %p144 = pneg %p27
      %p145 = pneg %p51
      %p146 = pneg %p48
      %p147 = scmp.lt.s32.totalorder %s14, 1
      %s148 = scalar_select %p147, %s14, 1
      %s149 = smul.addr %s148, 66
      %s150 = smul.addr %s149, 8
      %s151 = scalar_lea.vmem %s2, %s150
      %p152 = pneg %p77
      %p153 = pneg %p74
      %p154 = pneg %p103
      %p155 = pneg %p100
      %p156 = scmp.lt.s32.totalorder %s14, 1
      %s157 = scalar_select %p156, %s14, 1
      %s158 = smul.addr %s157, 66
      %s159 = smul.addr %s158, 8
      %s160 = scalar_lea.vmem %s3, %s159
      %p161 = scmp.lt.s32.totalorder %s14, 1
      %s162 = scalar_select %p161, %s14, 1
      %s163 = smul.addr %s162, 66
      %s164 = smul.addr %s163, 8
      %s165 = scalar_lea.vmem %s2, %s164
      %p166 = scmp.lt.s32.totalorder %s14, 1
      %s167 = scalar_select %p166, %s14, 1
      %s168 = smul.addr %s167, 66
      %s169 = smul.addr %s168, 8
      %s170 = scalar_lea.vmem %s3, %s169
      %v171 = vld [vmem:[%s0] sm:$0xf]
      %v172 = vld [vmem:[%s165] sm:$0x3]
      %v173 = vld [vmem:[%s165 + $0x8] sm:$0x3]
      %v174 = vld [vmem:[%s165 + $0xb0] sm:$0x3]
      %v175 = vld [vmem:[%s165 + $0xb8] sm:$0x3]
      %v176 = vld [vmem:[%s165 + $0x160] sm:$0x3]
      %v177 = vld [vmem:[%s165 + $0x168] sm:$0x3]
      %v178 = vxor.u32 %v172, 2147483648
      %v179 = vxor.u32 %v173, 2147483648
      %v180 = vxor.u32 %v174, 2147483648
      %v181 = vxor.u32 %v175, 2147483648
      %v182 = vxor.u32 %v176, 2147483648
      %v183 = vxor.u32 %v177, 2147483648
      %v184 = vmul.f32 %v178, 1.442695
      %v185 = vpow.pop %v184
      %v186 = vmul.f32 %v179, 1.442695
      %v187 = vpow.pop %v186
      %v188 = vmul.f32 %v180, 1.442695
      %v189 = vpow.pop %v188
      %v190 = vmul.f32 %v181, 1.442695
      %v191 = vpow.pop %v190
      %v192 = vmul.f32 %v182, 1.442695
      %v193 = vpow.pop %v192
      %v194 = vmul.f32 %v183, 1.442695
      %v195 = vpow.pop %v194
      %v196 = vadd.f32 %v185, 1.0
      %v197 = vadd.f32 %v187, 1.0
      %v198 = vadd.f32 %v189, 1.0
      %v199 = vadd.f32 %v191, 1.0
      %v200 = vadd.f32 %v193, 1.0
      %v201 = vadd.f32 %v195, 1.0
      %v202 = vrcp.pop %v196
      %v203 = vmul.f32 %v196, %v202
      %v204 = vsub.f32 1.0, %v203
      %v205 = vmul.f32 %v202, %v204
      %v206 = vadd.f32 %v202, %v205
      %vm207 = vweird.f32 %v196
      %vm208 = vweird.f32 %v202
      %vm209 = vmor %vm207, %vm208
      %v210 = vsel %vm209, %v202, %v206
      %v211 = vand.u32 2147483647, %v196
      %vm212 = vcmp.eq.f32.partialorder %v211, 8.507059e+37
      %v213 = vand.u32 %v196, 2147483648
      %v214 = vor.u32 1.1754944e-38, %v213
      %v215 = vsel %vm212, %v214, %v210
      %v216 = vmul.f32 1.0, %v215
      %v217 = vrcp.pop %v197
      %v218 = vmul.f32 %v197, %v217
      %v219 = vsub.f32 1.0, %v218
      %v220 = vmul.f32 %v217, %v219
      %v221 = vadd.f32 %v217, %v220
      %vm222 = vweird.f32 %v197
      %vm223 = vweird.f32 %v217
      %vm224 = vmor %vm222, %vm223
      %v225 = vsel %vm224, %v217, %v221
      %v226 = vand.u32 2147483647, %v197
      %vm227 = vcmp.eq.f32.partialorder %v226, 8.507059e+37
      %v228 = vand.u32 %v197, 2147483648
      %v229 = vor.u32 1.1754944e-38, %v228
      %v230 = vsel %vm227, %v229, %v225
      %v231 = vmul.f32 1.0, %v230
      %v232 = vrcp.pop %v198
      %v233 = vmul.f32 %v198, %v232
      %v234 = vsub.f32 1.0, %v233
      %v235 = vmul.f32 %v232, %v234
      %v236 = vadd.f32 %v232, %v235
      %vm237 = vweird.f32 %v198
      %vm238 = vweird.f32 %v232
      %vm239 = vmor %vm237, %vm238
      %v240 = vsel %vm239, %v232, %v236
      %v241 = vand.u32 2147483647, %v198
      %vm242 = vcmp.eq.f32.partialorder %v241, 8.507059e+37
      %v243 = vand.u32 %v198, 2147483648
      %v244 = vor.u32 1.1754944e-38, %v243
      %v245 = vsel %vm242, %v244, %v240
      %v246 = vmul.f32 1.0, %v245
      %v247 = vrcp.pop %v199
      %v248 = vmul.f32 %v199, %v247
      %v249 = vsub.f32 1.0, %v248
      %v250 = vmul.f32 %v247, %v249
      %v251 = vadd.f32 %v247, %v250
      %vm252 = vweird.f32 %v199
      %vm253 = vweird.f32 %v247
      %vm254 = vmor %vm252, %vm253
      %v255 = vsel %vm254, %v247, %v251
      %v256 = vand.u32 2147483647, %v199
      %vm257 = vcmp.eq.f32.partialorder %v256, 8.507059e+37
      %v258 = vand.u32 %v199, 2147483648
      %v259 = vor.u32 1.1754944e-38, %v258
      %v260 = vsel %vm257, %v259, %v255
      %v261 = vmul.f32 1.0, %v260
      %v262 = vrcp.pop %v200
      %v263 = vmul.f32 %v200, %v262
      %v264 = vsub.f32 1.0, %v263
      %v265 = vmul.f32 %v262, %v264
      %v266 = vadd.f32 %v262, %v265
      %vm267 = vweird.f32 %v200
      %vm268 = vweird.f32 %v262
      %vm269 = vmor %vm267, %vm268
      %v270 = vsel %vm269, %v262, %v266
      %v271 = vand.u32 2147483647, %v200
      %vm272 = vcmp.eq.f32.partialorder %v271, 8.507059e+37
      %v273 = vand.u32 %v200, 2147483648
      %v274 = vor.u32 1.1754944e-38, %v273
      %v275 = vsel %vm272, %v274, %v270
      %v276 = vmul.f32 1.0, %v275
      %v277 = vrcp.pop %v201
      %v278 = vmul.f32 %v201, %v277
      %v279 = vsub.f32 1.0, %v278
      %v280 = vmul.f32 %v277, %v279
      %v281 = vadd.f32 %v277, %v280
      %vm282 = vweird.f32 %v201
      %vm283 = vweird.f32 %v277
      %vm284 = vmor %vm282, %vm283
      %v285 = vsel %vm284, %v277, %v281
      %v286 = vand.u32 2147483647, %v201
      %vm287 = vcmp.eq.f32.partialorder %v286, 8.507059e+37
      %v288 = vand.u32 %v201, 2147483648
      %v289 = vor.u32 1.1754944e-38, %v288
      %v290 = vsel %vm287, %v289, %v285
      %v291 = vmul.f32 1.0, %v290
      %293 = vst [vmem:[#allocation1] ss:$4 sm:$0xff] %v171
      %v294 = vld.sshfl [vmem:[#allocation1] sm:$0xff pattern:$0x73625140]
      %v295 = vld.sshfl [vmem:[#allocation1 + $0x8] sm:$0xff pattern:$0x73625140]
      %s296 = scalar_lea.vmem [#allocation1], 32
      %297 = vst [vmem:[%s296] ss:$4 sm:$0xff] %v171
      %v298 = vld.sshfl [vmem:[#allocation1 + $0x20] sm:$0xff pattern:$0x73625140]
      %v299 = vld.sshfl [vmem:[#allocation1 + $0x28] sm:$0xff pattern:$0x73625140]
      %300 = vst [vmem:[#allocation1] ss:$4 sm:$0xff] %v171
      %v301 = vld.sshfl [vmem:[#allocation1] sm:$0xff pattern:$0x73625140]
      %v302 = vld.sshfl [vmem:[#allocation1 + $0x8] sm:$0xff pattern:$0x73625140]
      %v309 = vadd.f32 %v216, %v294
      %v310 = vadd.f32 %v231, %v295
      %v311 = vadd.f32 %v246, %v298
      %v312 = vadd.f32 %v261, %v299
      %v313 = vadd.f32 %v276, %v301
      %v314 = vadd.f32 %v291, %v302
      %v315 = vmul.f32 %v309, 8.0
      %v316 = vmul.f32 %v310, 8.0
      %v317 = vmul.f32 %v311, 8.0
      %v318 = vmul.f32 %v312, 8.0
      %v319 = vmul.f32 %v313, 8.0
      %v320 = vmul.f32 %v314, 8.0
      %321 = vst [vmem:[%s170] sm:$0x3] %v315
      %322 = vst [vmem:[%s170 + $0x8] sm:$0x3] %v316
      %323 = vst [vmem:[%s170 + $0xb0] sm:$0x3] %v317
      %324 = vst [vmem:[%s170 + $0xb8] sm:$0x3] %v318
      %325 = vst [vmem:[%s170 + $0x160] sm:$0x3] %v319
      %326 = vst [vmem:[%s170 + $0x168] sm:$0x3] %v320
      %v327 = vld [vmem:[%s165] sm:$0xc]
      %v328 = vld [vmem:[%s165 + $0x8] sm:$0xc]
      %v329 = vld [vmem:[%s165 + $0xb0] sm:$0xc]
      %v330 = vld [vmem:[%s165 + $0xb8] sm:$0xc]
      %v331 = vld [vmem:[%s165 + $0x160] sm:$0xc]
      %v332 = vld [vmem:[%s165 + $0x168] sm:$0xc]
      %v333 = vmul.f32 %v327, 1.442695
      %v334 = vpow.pop %v333
      %v335 = vmul.f32 %v328, 1.442695
      %v336 = vpow.pop %v335
      %v337 = vmul.f32 %v329, 1.442695
      %v338 = vpow.pop %v337
      %v339 = vmul.f32 %v330, 1.442695
      %v340 = vpow.pop %v339
      %v341 = vmul.f32 %v331, 1.442695
      %v342 = vpow.pop %v341
      %v343 = vmul.f32 %v332, 1.442695
      %v344 = vpow.pop %v343
      %v345 = vld [vmem:[%s1] sm:$0x3]
      %v346 = vld [vmem:[%s1 + $0x2] sm:$0x3]
      %v347 = vld [vmem:[%s1 + $0x4] sm:$0x3]
      %349 = vset.pattern.permute.xlu0 0
      %350 = vperm.xlu0 %349, %v345
      %v351 = vpop.permute.xlu0 %350
      %353 = vset.pattern.permute.xlu0 0
      %354 = vperm.xlu0 %353, %v346
      %v355 = vpop.permute.xlu0 %354
      %357 = vset.pattern.permute.xlu0 0
      %358 = vperm.xlu0 %357, %v347
      %v359 = vpop.permute.xlu0 %358
      %v360 = vrot.slane %v351, 6
      %v361 = vrot.slane %v355, 6
      %v362 = vrot.slane %v359, 6
      %v366 = vmul.f32 %v334, %v360
      %v367 = vmul.f32 %v336, %v360
      %v368 = vmul.f32 %v338, %v361
      %v369 = vmul.f32 %v340, %v361
      %v370 = vmul.f32 %v342, %v362
      %v371 = vmul.f32 %v344, %v362
      %372 = vst [vmem:[%s170] sm:$0xc] %v366
      %373 = vst [vmem:[%s170 + $0x8] sm:$0xc] %v367
      %374 = vst [vmem:[%s170 + $0xb0] sm:$0xc] %v368
      %375 = vst [vmem:[%s170 + $0xb8] sm:$0xc] %v369
      %376 = vst [vmem:[%s170 + $0x160] sm:$0xc] %v370
      %377 = vst [vmem:[%s170 + $0x168] sm:$0xc] %v371
      %v378 = vld [vmem:[%s165] sm:$0xf0]
      %v379 = vld [vmem:[%s165 + $0x8] sm:$0xf0]
      %v380 = vld [vmem:[%s165 + $0x10] sm:$0xff]
      %v381 = vld [vmem:[%s165 + $0x18] sm:$0xff]
      %v382 = vld [vmem:[%s165 + $0x20] sm:$0xff]
      %v383 = vld [vmem:[%s165 + $0x28] sm:$0xff]
      %v384 = vld [vmem:[%s165 + $0x30] sm:$0xff]
      %v385 = vld [vmem:[%s165 + $0x38] sm:$0xff]
      %v386 = vld [vmem:[%s165 + $0x40] sm:$0xff]
      %v387 = vld [vmem:[%s165 + $0x48] sm:$0xff]
      %v388 = vld [vmem:[%s165 + $0x50] sm:$0xff]
      %v389 = vld [vmem:[%s165 + $0x58] sm:$0xff]
      %v390 = vld [vmem:[%s165 + $0x60] sm:$0xff]
      %v391 = vld [vmem:[%s165 + $0x68] sm:$0xff]
      %v392 = vld [vmem:[%s165 + $0x70] sm:$0xff]
      %v393 = vld [vmem:[%s165 + $0x78] sm:$0xff]
      %v394 = vld [vmem:[%s165 + $0x80] sm:$0xff]
      %v395 = vld [vmem:[%s165 + $0x88] sm:$0xff]
      %v396 = vld [vmem:[%s165 + $0x90] sm:$0xff]
      %v397 = vld [vmem:[%s165 + $0x98] sm:$0xff]
      %v398 = vld [vmem:[%s165 + $0xa0] sm:$0x1f]
      %v399 = vld [vmem:[%s165 + $0xa8] sm:$0x1f]
      %v400 = vld [vmem:[%s165 + $0xb0] sm:$0xf0]
      %v401 = vld [vmem:[%s165 + $0xb8] sm:$0xf0]
      %v402 = vld [vmem:[%s165 + $0xc0] sm:$0xff]
      %v403 = vld [vmem:[%s165 + $0xc8] sm:$0xff]
      %v404 = vld [vmem:[%s165 + $0xd0] sm:$0xff]
      %v405 = vld [vmem:[%s165 + $0xd8] sm:$0xff]
      %v406 = vld [vmem:[%s165 + $0xe0] sm:$0xff]
      %v407 = vld [vmem:[%s165 + $0xe8] sm:$0xff]
      %v408 = vld [vmem:[%s165 + $0xf0] sm:$0xff]
      %v409 = vld [vmem:[%s165 + $0xf8] sm:$0xff]
      %v410 = vld [vmem:[%s165 + $0x100] sm:$0xff]
      %v411 = vld [vmem:[%s165 + $0x108] sm:$0xff]
      %v412 = vld [vmem:[%s165 + $0x110] sm:$0xff]
      %v413 = vld [vmem:[%s165 + $0x118] sm:$0xff]
      %v414 = vld [vmem:[%s165 + $0x120] sm:$0xff]
      %v415 = vld [vmem:[%s165 + $0x128] sm:$0xff]
      %v416 = vld [vmem:[%s165 + $0x130] sm:$0xff]
      %v417 = vld [vmem:[%s165 + $0x138] sm:$0xff]
      %v418 = vld [vmem:[%s165 + $0x140] sm:$0xff]
      %v419 = vld [vmem:[%s165 + $0x148] sm:$0xff]
      %v420 = vld [vmem:[%s165 + $0x150] sm:$0x1f]
      %v421 = vld [vmem:[%s165 + $0x158] sm:$0x1f]
      %v422 = vld [vmem:[%s165 + $0x160] sm:$0xf0]
      %v423 = vld [vmem:[%s165 + $0x168] sm:$0xf0]
      %v424 = vld [vmem:[%s165 + $0x170] sm:$0xff]
      %v425 = vld [vmem:[%s165 + $0x178] sm:$0xff]
      %v426 = vld [vmem:[%s165 + $0x180] sm:$0xff]
      %v427 = vld [vmem:[%s165 + $0x188] sm:$0xff]
      %v428 = vld [vmem:[%s165 + $0x190] sm:$0xff]
      %v429 = vld [vmem:[%s165 + $0x198] sm:$0xff]
      %v430 = vld [vmem:[%s165 + $0x1a0] sm:$0xff]
      %v431 = vld [vmem:[%s165 + $0x1a8] sm:$0xff]
      %v432 = vld [vmem:[%s165 + $0x1b0] sm:$0xff]
      %v433 = vld [vmem:[%s165 + $0x1b8] sm:$0xff]
      %v434 = vld [vmem:[%s165 + $0x1c0] sm:$0xff]
      %v435 = vld [vmem:[%s165 + $0x1c8] sm:$0xff]
      %v436 = vld [vmem:[%s165 + $0x1d0] sm:$0xff]
      %v437 = vld [vmem:[%s165 + $0x1d8] sm:$0xff]
      %v438 = vld [vmem:[%s165 + $0x1e0] sm:$0xff]
      %v439 = vld [vmem:[%s165 + $0x1e8] sm:$0xff]
      %v440 = vld [vmem:[%s165 + $0x1f0] sm:$0xff]
      %v441 = vld [vmem:[%s165 + $0x1f8] sm:$0xff]
      %v442 = vld [vmem:[%s165 + $0x200] sm:$0x1f]
      %v443 = vld [vmem:[%s165 + $0x208] sm:$0x1f]
      %v444 = vxor.u32 %v378, 2147483648
      %v445 = vxor.u32 %v379, 2147483648
      %v446 = vxor.u32 %v380, 2147483648
      %v447 = vxor.u32 %v381, 2147483648
      %v448 = vxor.u32 %v382, 2147483648
      %v449 = vxor.u32 %v383, 2147483648
      %v450 = vxor.u32 %v384, 2147483648
      %v451 = vxor.u32 %v385, 2147483648
      %v452 = vxor.u32 %v386, 2147483648
      %v453 = vxor.u32 %v387, 2147483648
      %v454 = vxor.u32 %v388, 2147483648
      %v455 = vxor.u32 %v389, 2147483648
      %v456 = vxor.u32 %v390, 2147483648
      %v457 = vxor.u32 %v391, 2147483648
      %v458 = vxor.u32 %v392, 2147483648
      %v459 = vxor.u32 %v393, 2147483648
      %v460 = vxor.u32 %v394, 2147483648
      %v461 = vxor.u32 %v395, 2147483648
      %v462 = vxor.u32 %v396, 2147483648
      %v463 = vxor.u32 %v397, 2147483648
      %v464 = vxor.u32 %v398, 2147483648
      %v465 = vxor.u32 %v399, 2147483648
      %v466 = vxor.u32 %v400, 2147483648
      %v467 = vxor.u32 %v401, 2147483648
      %v468 = vxor.u32 %v402, 2147483648
      %v469 = vxor.u32 %v403, 2147483648
      %v470 = vxor.u32 %v404, 2147483648
      %v471 = vxor.u32 %v405, 2147483648
      %v472 = vxor.u32 %v406, 2147483648
      %v473 = vxor.u32 %v407, 2147483648
      %v474 = vxor.u32 %v408, 2147483648
      %v475 = vxor.u32 %v409, 2147483648
      %v476 = vxor.u32 %v410, 2147483648
      %v477 = vxor.u32 %v411, 2147483648
      %v478 = vxor.u32 %v412, 2147483648
      %v479 = vxor.u32 %v413, 2147483648
      %v480 = vxor.u32 %v414, 2147483648
      %v481 = vxor.u32 %v415, 2147483648
      %v482 = vxor.u32 %v416, 2147483648
      %v483 = vxor.u32 %v417, 2147483648
      %v484 = vxor.u32 %v418, 2147483648
      %v485 = vxor.u32 %v419, 2147483648
      %v486 = vxor.u32 %v420, 2147483648
      %v487 = vxor.u32 %v421, 2147483648
      %v488 = vxor.u32 %v422, 2147483648
      %v489 = vxor.u32 %v423, 2147483648
      %v490 = vxor.u32 %v424, 2147483648
      %v491 = vxor.u32 %v425, 2147483648
      %v492 = vxor.u32 %v426, 2147483648
      %v493 = vxor.u32 %v427, 2147483648
      %v494 = vxor.u32 %v428, 2147483648
      %v495 = vxor.u32 %v429, 2147483648
      %v496 = vxor.u32 %v430, 2147483648
      %v497 = vxor.u32 %v431, 2147483648
      %v498 = vxor.u32 %v432, 2147483648
      %v499 = vxor.u32 %v433, 2147483648
      %v500 = vxor.u32 %v434, 2147483648
      %v501 = vxor.u32 %v435, 2147483648
      %v502 = vxor.u32 %v436, 2147483648
      %v503 = vxor.u32 %v437, 2147483648
      %v504 = vxor.u32 %v438, 2147483648
      %v505 = vxor.u32 %v439, 2147483648
      %v506 = vxor.u32 %v440, 2147483648
      %v507 = vxor.u32 %v441, 2147483648
      %v508 = vxor.u32 %v442, 2147483648
      %v509 = vxor.u32 %v443, 2147483648
      %v510 = vmul.f32 %v444, 1.442695
      %v511 = vpow.pop %v510
      %v512 = vmul.f32 %v445, 1.442695
      %v513 = vpow.pop %v512
      %v514 = vmul.f32 %v446, 1.442695
      %v515 = vpow.pop %v514
      %v516 = vmul.f32 %v447, 1.442695
      %v517 = vpow.pop %v516
      %v518 = vmul.f32 %v448, 1.442695
      %v519 = vpow.pop %v518
      %v520 = vmul.f32 %v449, 1.442695
      %v521 = vpow.pop %v520
      %v522 = vmul.f32 %v450, 1.442695
      %v523 = vpow.pop %v522
      %v524 = vmul.f32 %v451, 1.442695
      %v525 = vpow.pop %v524
      %v526 = vmul.f32 %v452, 1.442695
      %v527 = vpow.pop %v526
      %v528 = vmul.f32 %v453, 1.442695
      %v529 = vpow.pop %v528
      %v530 = vmul.f32 %v454, 1.442695
      %v531 = vpow.pop %v530
      %v532 = vmul.f32 %v455, 1.442695
      %v533 = vpow.pop %v532
      %v534 = vmul.f32 %v456, 1.442695
      %v535 = vpow.pop %v534
      %v536 = vmul.f32 %v457, 1.442695
      %v537 = vpow.pop %v536
      %v538 = vmul.f32 %v458, 1.442695
      %v539 = vpow.pop %v538
      %v540 = vmul.f32 %v459, 1.442695
      %v541 = vpow.pop %v540
      %v542 = vmul.f32 %v460, 1.442695
      %v543 = vpow.pop %v542
      %v544 = vmul.f32 %v461, 1.442695
      %v545 = vpow.pop %v544
      %v546 = vmul.f32 %v462, 1.442695
      %v547 = vpow.pop %v546
      %v548 = vmul.f32 %v463, 1.442695
      %v549 = vpow.pop %v548
      %v550 = vmul.f32 %v464, 1.442695
      %v551 = vpow.pop %v550
      %v552 = vmul.f32 %v465, 1.442695
      %v553 = vpow.pop %v552
      %v554 = vmul.f32 %v466, 1.442695
      %v555 = vpow.pop %v554
      %v556 = vmul.f32 %v467, 1.442695
      %v557 = vpow.pop %v556
      %v558 = vmul.f32 %v468, 1.442695
      %v559 = vpow.pop %v558
      %v560 = vmul.f32 %v469, 1.442695
      %v561 = vpow.pop %v560
      %v562 = vmul.f32 %v470, 1.442695
      %v563 = vpow.pop %v562
      %v564 = vmul.f32 %v471, 1.442695
      %v565 = vpow.pop %v564
      %v566 = vmul.f32 %v472, 1.442695
      %v567 = vpow.pop %v566
      %v568 = vmul.f32 %v473, 1.442695
      %v569 = vpow.pop %v568
      %v570 = vmul.f32 %v474, 1.442695
      %v571 = vpow.pop %v570
      %v572 = vmul.f32 %v475, 1.442695
      %v573 = vpow.pop %v572
      %v574 = vmul.f32 %v476, 1.442695
      %v575 = vpow.pop %v574
      %v576 = vmul.f32 %v477, 1.442695
      %v577 = vpow.pop %v576
      %v578 = vmul.f32 %v478, 1.442695
      %v579 = vpow.pop %v578
      %v580 = vmul.f32 %v479, 1.442695
      %v581 = vpow.pop %v580
      %v582 = vmul.f32 %v480, 1.442695
      %v583 = vpow.pop %v582
      %v584 = vmul.f32 %v481, 1.442695
      %v585 = vpow.pop %v584
      %v586 = vmul.f32 %v482, 1.442695
      %v587 = vpow.pop %v586
      %v588 = vmul.f32 %v483, 1.442695
      %v589 = vpow.pop %v588
      %v590 = vmul.f32 %v484, 1.442695
      %v591 = vpow.pop %v590
      %v592 = vmul.f32 %v485, 1.442695
      %v593 = vpow.pop %v592
      %v594 = vmul.f32 %v486, 1.442695
      %v595 = vpow.pop %v594
      %v596 = vmul.f32 %v487, 1.442695
      %v597 = vpow.pop %v596
      %v598 = vmul.f32 %v488, 1.442695
      %v599 = vpow.pop %v598
      %v600 = vmul.f32 %v489, 1.442695
      %v601 = vpow.pop %v600
      %v602 = vmul.f32 %v490, 1.442695
      %v603 = vpow.pop %v602
      %v604 = vmul.f32 %v491, 1.442695
      %v605 = vpow.pop %v604
      %v606 = vmul.f32 %v492, 1.442695
      %v607 = vpow.pop %v606
      %v608 = vmul.f32 %v493, 1.442695
      %v609 = vpow.pop %v608
      %v610 = vmul.f32 %v494, 1.442695
      %v611 = vpow.pop %v610
      %v612 = vmul.f32 %v495, 1.442695
      %v613 = vpow.pop %v612
      %v614 = vmul.f32 %v496, 1.442695
      %v615 = vpow.pop %v614
      %v616 = vmul.f32 %v497, 1.442695
      %v617 = vpow.pop %v616
      %v618 = vmul.f32 %v498, 1.442695
      %v619 = vpow.pop %v618
      %v620 = vmul.f32 %v499, 1.442695
      %v621 = vpow.pop %v620
      %v622 = vmul.f32 %v500, 1.442695
      %v623 = vpow.pop %v622
      %v624 = vmul.f32 %v501, 1.442695
      %v625 = vpow.pop %v624
      %v626 = vmul.f32 %v502, 1.442695
      %v627 = vpow.pop %v626
      %v628 = vmul.f32 %v503, 1.442695
      %v629 = vpow.pop %v628
      %v630 = vmul.f32 %v504, 1.442695
      %v631 = vpow.pop %v630
      %v632 = vmul.f32 %v505, 1.442695
      %v633 = vpow.pop %v632
      %v634 = vmul.f32 %v506, 1.442695
      %v635 = vpow.pop %v634
      %v636 = vmul.f32 %v507, 1.442695
      %v637 = vpow.pop %v636
      %v638 = vmul.f32 %v508, 1.442695
      %v639 = vpow.pop %v638
      %v640 = vmul.f32 %v509, 1.442695
      %v641 = vpow.pop %v640
      %v642 = vadd.f32 %v511, 1.0
      %v643 = vadd.f32 %v513, 1.0
      %v644 = vadd.f32 %v515, 1.0
      %v645 = vadd.f32 %v517, 1.0
      %v646 = vadd.f32 %v519, 1.0
      %v647 = vadd.f32 %v521, 1.0
      %v648 = vadd.f32 %v523, 1.0
      %v649 = vadd.f32 %v525, 1.0
      %v650 = vadd.f32 %v527, 1.0
      %v651 = vadd.f32 %v529, 1.0
      %v652 = vadd.f32 %v531, 1.0
      %v653 = vadd.f32 %v533, 1.0
      %v654 = vadd.f32 %v535, 1.0
      %v655 = vadd.f32 %v537, 1.0
      %v656 = vadd.f32 %v539, 1.0
      %v657 = vadd.f32 %v541, 1.0
      %v658 = vadd.f32 %v543, 1.0
      %v659 = vadd.f32 %v545, 1.0
      %v660 = vadd.f32 %v547, 1.0
      %v661 = vadd.f32 %v549, 1.0
      %v662 = vadd.f32 %v551, 1.0
      %v663 = vadd.f32 %v553, 1.0
      %v664 = vadd.f32 %v555, 1.0
      %v665 = vadd.f32 %v557, 1.0
      %v666 = vadd.f32 %v559, 1.0
      %v667 = vadd.f32 %v561, 1.0
      %v668 = vadd.f32 %v563, 1.0
      %v669 = vadd.f32 %v565, 1.0
      %v670 = vadd.f32 %v567, 1.0
      %v671 = vadd.f32 %v569, 1.0
      %v672 = vadd.f32 %v571, 1.0
      %v673 = vadd.f32 %v573, 1.0
      %v674 = vadd.f32 %v575, 1.0
      %v675 = vadd.f32 %v577, 1.0
      %v676 = vadd.f32 %v579, 1.0
      %v677 = vadd.f32 %v581, 1.0
      %v678 = vadd.f32 %v583, 1.0
      %v679 = vadd.f32 %v585, 1.0
      %v680 = vadd.f32 %v587, 1.0
      %v681 = vadd.f32 %v589, 1.0
      %v682 = vadd.f32 %v591, 1.0
      %v683 = vadd.f32 %v593, 1.0
      %v684 = vadd.f32 %v595, 1.0
      %v685 = vadd.f32 %v597, 1.0
      %v686 = vadd.f32 %v599, 1.0
      %v687 = vadd.f32 %v601, 1.0
      %v688 = vadd.f32 %v603, 1.0
      %v689 = vadd.f32 %v605, 1.0
      %v690 = vadd.f32 %v607, 1.0
      %v691 = vadd.f32 %v609, 1.0
      %v692 = vadd.f32 %v611, 1.0
      %v693 = vadd.f32 %v613, 1.0
      %v694 = vadd.f32 %v615, 1.0
      %v695 = vadd.f32 %v617, 1.0
      %v696 = vadd.f32 %v619, 1.0
      %v697 = vadd.f32 %v621, 1.0
      %v698 = vadd.f32 %v623, 1.0
      %v699 = vadd.f32 %v625, 1.0
      %v700 = vadd.f32 %v627, 1.0
      %v701 = vadd.f32 %v629, 1.0
      %v702 = vadd.f32 %v631, 1.0
      %v703 = vadd.f32 %v633, 1.0
      %v704 = vadd.f32 %v635, 1.0
      %v705 = vadd.f32 %v637, 1.0
      %v706 = vadd.f32 %v639, 1.0
      %v707 = vadd.f32 %v641, 1.0
      %v708 = vrcp.pop %v642
      %v709 = vmul.f32 %v642, %v708
      %v710 = vsub.f32 1.0, %v709
      %v711 = vmul.f32 %v708, %v710
      %v712 = vadd.f32 %v708, %v711
      %vm713 = vweird.f32 %v642
      %vm714 = vweird.f32 %v708
      %vm715 = vmor %vm713, %vm714
      %v716 = vsel %vm715, %v708, %v712
      %v717 = vand.u32 2147483647, %v642
      %vm718 = vcmp.eq.f32.partialorder %v717, 8.507059e+37
      %v719 = vand.u32 %v642, 2147483648
      %v720 = vor.u32 1.1754944e-38, %v719
      %v721 = vsel %vm718, %v720, %v716
      %v722 = vmul.f32 1.0, %v721
      %v723 = vrcp.pop %v643
      %v724 = vmul.f32 %v643, %v723
      %v725 = vsub.f32 1.0, %v724
      %v726 = vmul.f32 %v723, %v725
      %v727 = vadd.f32 %v723, %v726
      %vm728 = vweird.f32 %v643
      %vm729 = vweird.f32 %v723
      %vm730 = vmor %vm728, %vm729
      %v731 = vsel %vm730, %v723, %v727
      %v732 = vand.u32 2147483647, %v643
      %vm733 = vcmp.eq.f32.partialorder %v732, 8.507059e+37
      %v734 = vand.u32 %v643, 2147483648
      %v735 = vor.u32 1.1754944e-38, %v734
      %v736 = vsel %vm733, %v735, %v731
      %v737 = vmul.f32 1.0, %v736
      %v738 = vrcp.pop %v644
      %v739 = vmul.f32 %v644, %v738
      %v740 = vsub.f32 1.0, %v739
      %v741 = vmul.f32 %v738, %v740
      %v742 = vadd.f32 %v738, %v741
      %vm743 = vweird.f32 %v644
      %vm744 = vweird.f32 %v738
      %vm745 = vmor %vm743, %vm744
      %v746 = vsel %vm745, %v738, %v742
      %v747 = vand.u32 2147483647, %v644
      %vm748 = vcmp.eq.f32.partialorder %v747, 8.507059e+37
      %v749 = vand.u32 %v644, 2147483648
      %v750 = vor.u32 1.1754944e-38, %v749
      %v751 = vsel %vm748, %v750, %v746
      %v752 = vmul.f32 1.0, %v751
      %v753 = vrcp.pop %v645
      %v754 = vmul.f32 %v645, %v753
      %v755 = vsub.f32 1.0, %v754
      %v756 = vmul.f32 %v753, %v755
      %v757 = vadd.f32 %v753, %v756
      %vm758 = vweird.f32 %v645
      %vm759 = vweird.f32 %v753
      %vm760 = vmor %vm758, %vm759
      %v761 = vsel %vm760, %v753, %v757
      %v762 = vand.u32 2147483647, %v645
      %vm763 = vcmp.eq.f32.partialorder %v762, 8.507059e+37
      %v764 = vand.u32 %v645, 2147483648
      %v765 = vor.u32 1.1754944e-38, %v764
      %v766 = vsel %vm763, %v765, %v761
      %v767 = vmul.f32 1.0, %v766
      %v768 = vrcp.pop %v646
      %v769 = vmul.f32 %v646, %v768
      %v770 = vsub.f32 1.0, %v769
      %v771 = vmul.f32 %v768, %v770
      %v772 = vadd.f32 %v768, %v771
      %vm773 = vweird.f32 %v646
      %vm774 = vweird.f32 %v768
      %vm775 = vmor %vm773, %vm774
      %v776 = vsel %vm775, %v768, %v772
      %v777 = vand.u32 2147483647, %v646
      %vm778 = vcmp.eq.f32.partialorder %v777, 8.507059e+37
      %v779 = vand.u32 %v646, 2147483648
      %v780 = vor.u32 1.1754944e-38, %v779
      %v781 = vsel %vm778, %v780, %v776
      %v782 = vmul.f32 1.0, %v781
      %v783 = vrcp.pop %v647
      %v784 = vmul.f32 %v647, %v783
      %v785 = vsub.f32 1.0, %v784
      %v786 = vmul.f32 %v783, %v785
      %v787 = vadd.f32 %v783, %v786
      %vm788 = vweird.f32 %v647
      %vm789 = vweird.f32 %v783
      %vm790 = vmor %vm788, %vm789
      %v791 = vsel %vm790, %v783, %v787
      %v792 = vand.u32 2147483647, %v647
      %vm793 = vcmp.eq.f32.partialorder %v792, 8.507059e+37
      %v794 = vand.u32 %v647, 2147483648
      %v795 = vor.u32 1.1754944e-38, %v794
      %v796 = vsel %vm793, %v795, %v791
      %v797 = vmul.f32 1.0, %v796
      %v798 = vrcp.pop %v648
      %v799 = vmul.f32 %v648, %v798
      %v800 = vsub.f32 1.0, %v799
      %v801 = vmul.f32 %v798, %v800
      %v802 = vadd.f32 %v798, %v801
      %vm803 = vweird.f32 %v648
      %vm804 = vweird.f32 %v798
      %vm805 = vmor %vm803, %vm804
      %v806 = vsel %vm805, %v798, %v802
      %v807 = vand.u32 2147483647, %v648
      %vm808 = vcmp.eq.f32.partialorder %v807, 8.507059e+37
      %v809 = vand.u32 %v648, 2147483648
      %v810 = vor.u32 1.1754944e-38, %v809
      %v811 = vsel %vm808, %v810, %v806
      %v812 = vmul.f32 1.0, %v811
      %v813 = vrcp.pop %v649
      %v814 = vmul.f32 %v649, %v813
      %v815 = vsub.f32 1.0, %v814
      %v816 = vmul.f32 %v813, %v815
      %v817 = vadd.f32 %v813, %v816
      %vm818 = vweird.f32 %v649
      %vm819 = vweird.f32 %v813
      %vm820 = vmor %vm818, %vm819
      %v821 = vsel %vm820, %v813, %v817
      %v822 = vand.u32 2147483647, %v649
      %vm823 = vcmp.eq.f32.partialorder %v822, 8.507059e+37
      %v824 = vand.u32 %v649, 2147483648
      %v825 = vor.u32 1.1754944e-38, %v824
      %v826 = vsel %vm823, %v825, %v821
      %v827 = vmul.f32 1.0, %v826
      %v828 = vrcp.pop %v650
      %v829 = vmul.f32 %v650, %v828
      %v830 = vsub.f32 1.0, %v829
      %v831 = vmul.f32 %v828, %v830
      %v832 = vadd.f32 %v828, %v831
      %vm833 = vweird.f32 %v650
      %vm834 = vweird.f32 %v828
      %vm835 = vmor %vm833, %vm834
      %v836 = vsel %vm835, %v828, %v832
      %v837 = vand.u32 2147483647, %v650
      %vm838 = vcmp.eq.f32.partialorder %v837, 8.507059e+37
      %v839 = vand.u32 %v650, 2147483648
      %v840 = vor.u32 1.1754944e-38, %v839
      %v841 = vsel %vm838, %v840, %v836
      %v842 = vmul.f32 1.0, %v841
      %v843 = vrcp.pop %v651
      %v844 = vmul.f32 %v651, %v843
      %v845 = vsub.f32 1.0, %v844
      %v846 = vmul.f32 %v843, %v845
      %v847 = vadd.f32 %v843, %v846
      %vm848 = vweird.f32 %v651
      %vm849 = vweird.f32 %v843
      %vm850 = vmor %vm848, %vm849
      %v851 = vsel %vm850, %v843, %v847
      %v852 = vand.u32 2147483647, %v651
      %vm853 = vcmp.eq.f32.partialorder %v852, 8.507059e+37
      %v854 = vand.u32 %v651, 2147483648
      %v855 = vor.u32 1.1754944e-38, %v854
      %v856 = vsel %vm853, %v855, %v851
      %v857 = vmul.f32 1.0, %v856
      %v858 = vrcp.pop %v652
      %v859 = vmul.f32 %v652, %v858
      %v860 = vsub.f32 1.0, %v859
      %v861 = vmul.f32 %v858, %v860
      %v862 = vadd.f32 %v858, %v861
      %vm863 = vweird.f32 %v652
      %vm864 = vweird.f32 %v858
      %vm865 = vmor %vm863, %vm864
      %v866 = vsel %vm865, %v858, %v862
      %v867 = vand.u32 2147483647, %v652
      %vm868 = vcmp.eq.f32.partialorder %v867, 8.507059e+37
      %v869 = vand.u32 %v652, 2147483648
      %v870 = vor.u32 1.1754944e-38, %v869
      %v871 = vsel %vm868, %v870, %v866
      %v872 = vmul.f32 1.0, %v871
      %v873 = vrcp.pop %v653
      %v874 = vmul.f32 %v653, %v873
      %v875 = vsub.f32 1.0, %v874
      %v876 = vmul.f32 %v873, %v875
      %v877 = vadd.f32 %v873, %v876
      %vm878 = vweird.f32 %v653
      %vm879 = vweird.f32 %v873
      %vm880 = vmor %vm878, %vm879
      %v881 = vsel %vm880, %v873, %v877
      %v882 = vand.u32 2147483647, %v653
      %vm883 = vcmp.eq.f32.partialorder %v882, 8.507059e+37
      %v884 = vand.u32 %v653, 2147483648
      %v885 = vor.u32 1.1754944e-38, %v884
      %v886 = vsel %vm883, %v885, %v881
      %v887 = vmul.f32 1.0, %v886
      %v888 = vrcp.pop %v654
      %v889 = vmul.f32 %v654, %v888
      %v890 = vsub.f32 1.0, %v889
      %v891 = vmul.f32 %v888, %v890
      %v892 = vadd.f32 %v888, %v891
      %vm893 = vweird.f32 %v654
      %vm894 = vweird.f32 %v888
      %vm895 = vmor %vm893, %vm894
      %v896 = vsel %vm895, %v888, %v892
      %v897 = vand.u32 2147483647, %v654
      %vm898 = vcmp.eq.f32.partialorder %v897, 8.507059e+37
      %v899 = vand.u32 %v654, 2147483648
      %v900 = vor.u32 1.1754944e-38, %v899
      %v901 = vsel %vm898, %v900, %v896
      %v902 = vmul.f32 1.0, %v901
      %v903 = vrcp.pop %v655
      %v904 = vmul.f32 %v655, %v903
      %v905 = vsub.f32 1.0, %v904
      %v906 = vmul.f32 %v903, %v905
      %v907 = vadd.f32 %v903, %v906
      %vm908 = vweird.f32 %v655
      %vm909 = vweird.f32 %v903
      %vm910 = vmor %vm908, %vm909
      %v911 = vsel %vm910, %v903, %v907
      %v912 = vand.u32 2147483647, %v655
      %vm913 = vcmp.eq.f32.partialorder %v912, 8.507059e+37
      %v914 = vand.u32 %v655, 2147483648
      %v915 = vor.u32 1.1754944e-38, %v914
      %v916 = vsel %vm913, %v915, %v911
      %v917 = vmul.f32 1.0, %v916
      %v918 = vrcp.pop %v656
      %v919 = vmul.f32 %v656, %v918
      %v920 = vsub.f32 1.0, %v919
      %v921 = vmul.f32 %v918, %v920
      %v922 = vadd.f32 %v918, %v921
      %vm923 = vweird.f32 %v656
      %vm924 = vweird.f32 %v918
      %vm925 = vmor %vm923, %vm924
      %v926 = vsel %vm925, %v918, %v922
      %v927 = vand.u32 2147483647, %v656
      %vm928 = vcmp.eq.f32.partialorder %v927, 8.507059e+37
      %v929 = vand.u32 %v656, 2147483648
      %v930 = vor.u32 1.1754944e-38, %v929
      %v931 = vsel %vm928, %v930, %v926
      %v932 = vmul.f32 1.0, %v931
      %v933 = vrcp.pop %v657
      %v934 = vmul.f32 %v657, %v933
      %v935 = vsub.f32 1.0, %v934
      %v936 = vmul.f32 %v933, %v935
      %v937 = vadd.f32 %v933, %v936
      %vm938 = vweird.f32 %v657
      %vm939 = vweird.f32 %v933
      %vm940 = vmor %vm938, %vm939
      %v941 = vsel %vm940, %v933, %v937
      %v942 = vand.u32 2147483647, %v657
      %vm943 = vcmp.eq.f32.partialorder %v942, 8.507059e+37
      %v944 = vand.u32 %v657, 2147483648
      %v945 = vor.u32 1.1754944e-38, %v944
      %v946 = vsel %vm943, %v945, %v941
      %v947 = vmul.f32 1.0, %v946
      %v948 = vrcp.pop %v658
      %v949 = vmul.f32 %v658, %v948
      %v950 = vsub.f32 1.0, %v949
      %v951 = vmul.f32 %v948, %v950
      %v952 = vadd.f32 %v948, %v951
      %vm953 = vweird.f32 %v658
      %vm954 = vweird.f32 %v948
      %vm955 = vmor %vm953, %vm954
      %v956 = vsel %vm955, %v948, %v952
      %v957 = vand.u32 2147483647, %v658
      %vm958 = vcmp.eq.f32.partialorder %v957, 8.507059e+37
      %v959 = vand.u32 %v658, 2147483648
      %v960 = vor.u32 1.1754944e-38, %v959
      %v961 = vsel %vm958, %v960, %v956
      %v962 = vmul.f32 1.0, %v961
      %v963 = vrcp.pop %v659
      %v964 = vmul.f32 %v659, %v963
      %v965 = vsub.f32 1.0, %v964
      %v966 = vmul.f32 %v963, %v965
      %v967 = vadd.f32 %v963, %v966
      %vm968 = vweird.f32 %v659
      %vm969 = vweird.f32 %v963
      %vm970 = vmor %vm968, %vm969
      %v971 = vsel %vm970, %v963, %v967
      %v972 = vand.u32 2147483647, %v659
      %vm973 = vcmp.eq.f32.partialorder %v972, 8.507059e+37
      %v974 = vand.u32 %v659, 2147483648
      %v975 = vor.u32 1.1754944e-38, %v974
      %v976 = vsel %vm973, %v975, %v971
      %v977 = vmul.f32 1.0, %v976
      %v978 = vrcp.pop %v660
      %v979 = vmul.f32 %v660, %v978
      %v980 = vsub.f32 1.0, %v979
      %v981 = vmul.f32 %v978, %v980
      %v982 = vadd.f32 %v978, %v981
      %vm983 = vweird.f32 %v660
      %vm984 = vweird.f32 %v978
      %vm985 = vmor %vm983, %vm984
      %v986 = vsel %vm985, %v978, %v982
      %v987 = vand.u32 2147483647, %v660
      %vm988 = vcmp.eq.f32.partialorder %v987, 8.507059e+37
      %v989 = vand.u32 %v660, 2147483648
      %v990 = vor.u32 1.1754944e-38, %v989
      %v991 = vsel %vm988, %v990, %v986
      %v992 = vmul.f32 1.0, %v991
      %v993 = vrcp.pop %v661
      %v994 = vmul.f32 %v661, %v993
      %v995 = vsub.f32 1.0, %v994
      %v996 = vmul.f32 %v993, %v995
      %v997 = vadd.f32 %v993, %v996
      %vm998 = vweird.f32 %v661
      %vm999 = vweird.f32 %v993
      %vm1000 = vmor %vm998, %vm999
      %v1001 = vsel %vm1000, %v993, %v997
      %v1002 = vand.u32 2147483647, %v661
      %vm1003 = vcmp.eq.f32.partialorder %v1002, 8.507059e+37
      %v1004 = vand.u32 %v661, 2147483648
      %v1005 = vor.u32 1.1754944e-38, %v1004
      %v1006 = vsel %vm1003, %v1005, %v1001
      %v1007 = vmul.f32 1.0, %v1006
      %v1008 = vrcp.pop %v662
      %v1009 = vmul.f32 %v662, %v1008
      %v1010 = vsub.f32 1.0, %v1009
      %v1011 = vmul.f32 %v1008, %v1010
      %v1012 = vadd.f32 %v1008, %v1011
      %vm1013 = vweird.f32 %v662
      %vm1014 = vweird.f32 %v1008
      %vm1015 = vmor %vm1013, %vm1014
      %v1016 = vsel %vm1015, %v1008, %v1012
      %v1017 = vand.u32 2147483647, %v662
      %vm1018 = vcmp.eq.f32.partialorder %v1017, 8.507059e+37
      %v1019 = vand.u32 %v662, 2147483648
      %v1020 = vor.u32 1.1754944e-38, %v1019
      %v1021 = vsel %vm1018, %v1020, %v1016
      %v1022 = vmul.f32 1.0, %v1021
      %v1023 = vrcp.pop %v663
      %v1024 = vmul.f32 %v663, %v1023
      %v1025 = vsub.f32 1.0, %v1024
      %v1026 = vmul.f32 %v1023, %v1025
      %v1027 = vadd.f32 %v1023, %v1026
      %vm1028 = vweird.f32 %v663
      %vm1029 = vweird.f32 %v1023
      %vm1030 = vmor %vm1028, %vm1029
      %v1031 = vsel %vm1030, %v1023, %v1027
      %v1032 = vand.u32 2147483647, %v663
      %vm1033 = vcmp.eq.f32.partialorder %v1032, 8.507059e+37
      %v1034 = vand.u32 %v663, 2147483648
      %v1035 = vor.u32 1.1754944e-38, %v1034
      %v1036 = vsel %vm1033, %v1035, %v1031
      %v1037 = vmul.f32 1.0, %v1036
      %v1038 = vrcp.pop %v664
      %v1039 = vmul.f32 %v664, %v1038
      %v1040 = vsub.f32 1.0, %v1039
      %v1041 = vmul.f32 %v1038, %v1040
      %v1042 = vadd.f32 %v1038, %v1041
      %vm1043 = vweird.f32 %v664
      %vm1044 = vweird.f32 %v1038
      %vm1045 = vmor %vm1043, %vm1044
      %v1046 = vsel %vm1045, %v1038, %v1042
      %v1047 = vand.u32 2147483647, %v664
      %vm1048 = vcmp.eq.f32.partialorder %v1047, 8.507059e+37
      %v1049 = vand.u32 %v664, 2147483648
      %v1050 = vor.u32 1.1754944e-38, %v1049
      %v1051 = vsel %vm1048, %v1050, %v1046
      %v1052 = vmul.f32 1.0, %v1051
      %v1053 = vrcp.pop %v665
      %v1054 = vmul.f32 %v665, %v1053
      %v1055 = vsub.f32 1.0, %v1054
      %v1056 = vmul.f32 %v1053, %v1055
      %v1057 = vadd.f32 %v1053, %v1056
      %vm1058 = vweird.f32 %v665
      %vm1059 = vweird.f32 %v1053
      %vm1060 = vmor %vm1058, %vm1059
      %v1061 = vsel %vm1060, %v1053, %v1057
      %v1062 = vand.u32 2147483647, %v665
      %vm1063 = vcmp.eq.f32.partialorder %v1062, 8.507059e+37
      %v1064 = vand.u32 %v665, 2147483648
      %v1065 = vor.u32 1.1754944e-38, %v1064
      %v1066 = vsel %vm1063, %v1065, %v1061
      %v1067 = vmul.f32 1.0, %v1066
      %v1068 = vrcp.pop %v666
      %v1069 = vmul.f32 %v666, %v1068
      %v1070 = vsub.f32 1.0, %v1069
      %v1071 = vmul.f32 %v1068, %v1070
      %v1072 = vadd.f32 %v1068, %v1071
      %vm1073 = vweird.f32 %v666
      %vm1074 = vweird.f32 %v1068
      %vm1075 = vmor %vm1073, %vm1074
      %v1076 = vsel %vm1075, %v1068, %v1072
      %v1077 = vand.u32 2147483647, %v666
      %vm1078 = vcmp.eq.f32.partialorder %v1077, 8.507059e+37
      %v1079 = vand.u32 %v666, 2147483648
      %v1080 = vor.u32 1.1754944e-38, %v1079
      %v1081 = vsel %vm1078, %v1080, %v1076
      %v1082 = vmul.f32 1.0, %v1081
      %v1083 = vrcp.pop %v667
      %v1084 = vmul.f32 %v667, %v1083
      %v1085 = vsub.f32 1.0, %v1084
      %v1086 = vmul.f32 %v1083, %v1085
      %v1087 = vadd.f32 %v1083, %v1086
      %vm1088 = vweird.f32 %v667
      %vm1089 = vweird.f32 %v1083
      %vm1090 = vmor %vm1088, %vm1089
      %v1091 = vsel %vm1090, %v1083, %v1087
      %v1092 = vand.u32 2147483647, %v667
      %vm1093 = vcmp.eq.f32.partialorder %v1092, 8.507059e+37
      %v1094 = vand.u32 %v667, 2147483648
      %v1095 = vor.u32 1.1754944e-38, %v1094
      %v1096 = vsel %vm1093, %v1095, %v1091
      %v1097 = vmul.f32 1.0, %v1096
      %v1098 = vrcp.pop %v668
      %v1099 = vmul.f32 %v668, %v1098
      %v1100 = vsub.f32 1.0, %v1099
      %v1101 = vmul.f32 %v1098, %v1100
      %v1102 = vadd.f32 %v1098, %v1101
      %vm1103 = vweird.f32 %v668
      %vm1104 = vweird.f32 %v1098
      %vm1105 = vmor %vm1103, %vm1104
      %v1106 = vsel %vm1105, %v1098, %v1102
      %v1107 = vand.u32 2147483647, %v668
      %vm1108 = vcmp.eq.f32.partialorder %v1107, 8.507059e+37
      %v1109 = vand.u32 %v668, 2147483648
      %v1110 = vor.u32 1.1754944e-38, %v1109
      %v1111 = vsel %vm1108, %v1110, %v1106
      %v1112 = vmul.f32 1.0, %v1111
      %v1113 = vrcp.pop %v669
      %v1114 = vmul.f32 %v669, %v1113
      %v1115 = vsub.f32 1.0, %v1114
      %v1116 = vmul.f32 %v1113, %v1115
      %v1117 = vadd.f32 %v1113, %v1116
      %vm1118 = vweird.f32 %v669
      %vm1119 = vweird.f32 %v1113
      %vm1120 = vmor %vm1118, %vm1119
      %v1121 = vsel %vm1120, %v1113, %v1117
      %v1122 = vand.u32 2147483647, %v669
      %vm1123 = vcmp.eq.f32.partialorder %v1122, 8.507059e+37
      %v1124 = vand.u32 %v669, 2147483648
      %v1125 = vor.u32 1.1754944e-38, %v1124
      %v1126 = vsel %vm1123, %v1125, %v1121
      %v1127 = vmul.f32 1.0, %v1126
      %v1128 = vrcp.pop %v670
      %v1129 = vmul.f32 %v670, %v1128
      %v1130 = vsub.f32 1.0, %v1129
      %v1131 = vmul.f32 %v1128, %v1130
      %v1132 = vadd.f32 %v1128, %v1131
      %vm1133 = vweird.f32 %v670
      %vm1134 = vweird.f32 %v1128
      %vm1135 = vmor %vm1133, %vm1134
      %v1136 = vsel %vm1135, %v1128, %v1132
      %v1137 = vand.u32 2147483647, %v670
      %vm1138 = vcmp.eq.f32.partialorder %v1137, 8.507059e+37
      %v1139 = vand.u32 %v670, 2147483648
      %v1140 = vor.u32 1.1754944e-38, %v1139
      %v1141 = vsel %vm1138, %v1140, %v1136
      %v1142 = vmul.f32 1.0, %v1141
      %v1143 = vrcp.pop %v671
      %v1144 = vmul.f32 %v671, %v1143
      %v1145 = vsub.f32 1.0, %v1144
      %v1146 = vmul.f32 %v1143, %v1145
      %v1147 = vadd.f32 %v1143, %v1146
      %vm1148 = vweird.f32 %v671
      %vm1149 = vweird.f32 %v1143
      %vm1150 = vmor %vm1148, %vm1149
      %v1151 = vsel %vm1150, %v1143, %v1147
      %v1152 = vand.u32 2147483647, %v671
      %vm1153 = vcmp.eq.f32.partialorder %v1152, 8.507059e+37
      %v1154 = vand.u32 %v671, 2147483648
      %v1155 = vor.u32 1.1754944e-38, %v1154
      %v1156 = vsel %vm1153, %v1155, %v1151
      %v1157 = vmul.f32 1.0, %v1156
      %v1158 = vrcp.pop %v672
      %v1159 = vmul.f32 %v672, %v1158
      %v1160 = vsub.f32 1.0, %v1159
      %v1161 = vmul.f32 %v1158, %v1160
      %v1162 = vadd.f32 %v1158, %v1161
      %vm1163 = vweird.f32 %v672
      %vm1164 = vweird.f32 %v1158
      %vm1165 = vmor %vm1163, %vm1164
      %v1166 = vsel %vm1165, %v1158, %v1162
      %v1167 = vand.u32 2147483647, %v672
      %vm1168 = vcmp.eq.f32.partialorder %v1167, 8.507059e+37
      %v1169 = vand.u32 %v672, 2147483648
      %v1170 = vor.u32 1.1754944e-38, %v1169
      %v1171 = vsel %vm1168, %v1170, %v1166
      %v1172 = vmul.f32 1.0, %v1171
      %v1173 = vrcp.pop %v673
      %v1174 = vmul.f32 %v673, %v1173
      %v1175 = vsub.f32 1.0, %v1174
      %v1176 = vmul.f32 %v1173, %v1175
      %v1177 = vadd.f32 %v1173, %v1176
      %vm1178 = vweird.f32 %v673
      %vm1179 = vweird.f32 %v1173
      %vm1180 = vmor %vm1178, %vm1179
      %v1181 = vsel %vm1180, %v1173, %v1177
      %v1182 = vand.u32 2147483647, %v673
      %vm1183 = vcmp.eq.f32.partialorder %v1182, 8.507059e+37
      %v1184 = vand.u32 %v673, 2147483648
      %v1185 = vor.u32 1.1754944e-38, %v1184
      %v1186 = vsel %vm1183, %v1185, %v1181
      %v1187 = vmul.f32 1.0, %v1186
      %v1188 = vrcp.pop %v674
      %v1189 = vmul.f32 %v674, %v1188
      %v1190 = vsub.f32 1.0, %v1189
      %v1191 = vmul.f32 %v1188, %v1190
      %v1192 = vadd.f32 %v1188, %v1191
      %vm1193 = vweird.f32 %v674
      %vm1194 = vweird.f32 %v1188
      %vm1195 = vmor %vm1193, %vm1194
      %v1196 = vsel %vm1195, %v1188, %v1192
      %v1197 = vand.u32 2147483647, %v674
      %vm1198 = vcmp.eq.f32.partialorder %v1197, 8.507059e+37
      %v1199 = vand.u32 %v674, 2147483648
      %v1200 = vor.u32 1.1754944e-38, %v1199
      %v1201 = vsel %vm1198, %v1200, %v1196
      %v1202 = vmul.f32 1.0, %v1201
      %v1203 = vrcp.pop %v675
      %v1204 = vmul.f32 %v675, %v1203
      %v1205 = vsub.f32 1.0, %v1204
      %v1206 = vmul.f32 %v1203, %v1205
      %v1207 = vadd.f32 %v1203, %v1206
      %vm1208 = vweird.f32 %v675
      %vm1209 = vweird.f32 %v1203
      %vm1210 = vmor %vm1208, %vm1209
      %v1211 = vsel %vm1210, %v1203, %v1207
      %v1212 = vand.u32 2147483647, %v675
      %vm1213 = vcmp.eq.f32.partialorder %v1212, 8.507059e+37
      %v1214 = vand.u32 %v675, 2147483648
      %v1215 = vor.u32 1.1754944e-38, %v1214
      %v1216 = vsel %vm1213, %v1215, %v1211
      %v1217 = vmul.f32 1.0, %v1216
      %v1218 = vrcp.pop %v676
      %v1219 = vmul.f32 %v676, %v1218
      %v1220 = vsub.f32 1.0, %v1219
      %v1221 = vmul.f32 %v1218, %v1220
      %v1222 = vadd.f32 %v1218, %v1221
      %vm1223 = vweird.f32 %v676
      %vm1224 = vweird.f32 %v1218
      %vm1225 = vmor %vm1223, %vm1224
      %v1226 = vsel %vm1225, %v1218, %v1222
      %v1227 = vand.u32 2147483647, %v676
      %vm1228 = vcmp.eq.f32.partialorder %v1227, 8.507059e+37
      %v1229 = vand.u32 %v676, 2147483648
      %v1230 = vor.u32 1.1754944e-38, %v1229
      %v1231 = vsel %vm1228, %v1230, %v1226
      %v1232 = vmul.f32 1.0, %v1231
      %v1233 = vrcp.pop %v677
      %v1234 = vmul.f32 %v677, %v1233
      %v1235 = vsub.f32 1.0, %v1234
      %v1236 = vmul.f32 %v1233, %v1235
      %v1237 = vadd.f32 %v1233, %v1236
      %vm1238 = vweird.f32 %v677
      %vm1239 = vweird.f32 %v1233
      %vm1240 = vmor %vm1238, %vm1239
      %v1241 = vsel %vm1240, %v1233, %v1237
      %v1242 = vand.u32 2147483647, %v677
      %vm1243 = vcmp.eq.f32.partialorder %v1242, 8.507059e+37
      %v1244 = vand.u32 %v677, 2147483648
      %v1245 = vor.u32 1.1754944e-38, %v1244
      %v1246 = vsel %vm1243, %v1245, %v1241
      %v1247 = vmul.f32 1.0, %v1246
      %v1248 = vrcp.pop %v678
      %v1249 = vmul.f32 %v678, %v1248
      %v1250 = vsub.f32 1.0, %v1249
      %v1251 = vmul.f32 %v1248, %v1250
      %v1252 = vadd.f32 %v1248, %v1251
      %vm1253 = vweird.f32 %v678
      %vm1254 = vweird.f32 %v1248
      %vm1255 = vmor %vm1253, %vm1254
      %v1256 = vsel %vm1255, %v1248, %v1252
      %v1257 = vand.u32 2147483647, %v678
      %vm1258 = vcmp.eq.f32.partialorder %v1257, 8.507059e+37
      %v1259 = vand.u32 %v678, 2147483648
      %v1260 = vor.u32 1.1754944e-38, %v1259
      %v1261 = vsel %vm1258, %v1260, %v1256
      %v1262 = vmul.f32 1.0, %v1261
      %v1263 = vrcp.pop %v679
      %v1264 = vmul.f32 %v679, %v1263
      %v1265 = vsub.f32 1.0, %v1264
      %v1266 = vmul.f32 %v1263, %v1265
      %v1267 = vadd.f32 %v1263, %v1266
      %vm1268 = vweird.f32 %v679
      %vm1269 = vweird.f32 %v1263
      %vm1270 = vmor %vm1268, %vm1269
      %v1271 = vsel %vm1270, %v1263, %v1267
      %v1272 = vand.u32 2147483647, %v679
      %vm1273 = vcmp.eq.f32.partialorder %v1272, 8.507059e+37
      %v1274 = vand.u32 %v679, 2147483648
      %v1275 = vor.u32 1.1754944e-38, %v1274
      %v1276 = vsel %vm1273, %v1275, %v1271
      %v1277 = vmul.f32 1.0, %v1276
      %v1278 = vrcp.pop %v680
      %v1279 = vmul.f32 %v680, %v1278
      %v1280 = vsub.f32 1.0, %v1279
      %v1281 = vmul.f32 %v1278, %v1280
      %v1282 = vadd.f32 %v1278, %v1281
      %vm1283 = vweird.f32 %v680
      %vm1284 = vweird.f32 %v1278
      %vm1285 = vmor %vm1283, %vm1284
      %v1286 = vsel %vm1285, %v1278, %v1282
      %v1287 = vand.u32 2147483647, %v680
      %vm1288 = vcmp.eq.f32.partialorder %v1287, 8.507059e+37
      %v1289 = vand.u32 %v680, 2147483648
      %v1290 = vor.u32 1.1754944e-38, %v1289
      %v1291 = vsel %vm1288, %v1290, %v1286
      %v1292 = vmul.f32 1.0, %v1291
      %v1293 = vrcp.pop %v681
      %v1294 = vmul.f32 %v681, %v1293
      %v1295 = vsub.f32 1.0, %v1294
      %v1296 = vmul.f32 %v1293, %v1295
      %v1297 = vadd.f32 %v1293, %v1296
      %vm1298 = vweird.f32 %v681
      %vm1299 = vweird.f32 %v1293
      %vm1300 = vmor %vm1298, %vm1299
      %v1301 = vsel %vm1300, %v1293, %v1297
      %v1302 = vand.u32 2147483647, %v681
      %vm1303 = vcmp.eq.f32.partialorder %v1302, 8.507059e+37
      %v1304 = vand.u32 %v681, 2147483648
      %v1305 = vor.u32 1.1754944e-38, %v1304
      %v1306 = vsel %vm1303, %v1305, %v1301
      %v1307 = vmul.f32 1.0, %v1306
      %v1308 = vrcp.pop %v682
      %v1309 = vmul.f32 %v682, %v1308
      %v1310 = vsub.f32 1.0, %v1309
      %v1311 = vmul.f32 %v1308, %v1310
      %v1312 = vadd.f32 %v1308, %v1311
      %vm1313 = vweird.f32 %v682
      %vm1314 = vweird.f32 %v1308
      %vm1315 = vmor %vm1313, %vm1314
      %v1316 = vsel %vm1315, %v1308, %v1312
      %v1317 = vand.u32 2147483647, %v682
      %vm1318 = vcmp.eq.f32.partialorder %v1317, 8.507059e+37
      %v1319 = vand.u32 %v682, 2147483648
      %v1320 = vor.u32 1.1754944e-38, %v1319
      %v1321 = vsel %vm1318, %v1320, %v1316
      %v1322 = vmul.f32 1.0, %v1321
      %v1323 = vrcp.pop %v683
      %v1324 = vmul.f32 %v683, %v1323
      %v1325 = vsub.f32 1.0, %v1324
      %v1326 = vmul.f32 %v1323, %v1325
      %v1327 = vadd.f32 %v1323, %v1326
      %vm1328 = vweird.f32 %v683
      %vm1329 = vweird.f32 %v1323
      %vm1330 = vmor %vm1328, %vm1329
      %v1331 = vsel %vm1330, %v1323, %v1327
      %v1332 = vand.u32 2147483647, %v683
      %vm1333 = vcmp.eq.f32.partialorder %v1332, 8.507059e+37
      %v1334 = vand.u32 %v683, 2147483648
      %v1335 = vor.u32 1.1754944e-38, %v1334
      %v1336 = vsel %vm1333, %v1335, %v1331
      %v1337 = vmul.f32 1.0, %v1336
      %v1338 = vrcp.pop %v684
      %v1339 = vmul.f32 %v684, %v1338
      %v1340 = vsub.f32 1.0, %v1339
      %v1341 = vmul.f32 %v1338, %v1340
      %v1342 = vadd.f32 %v1338, %v1341
      %vm1343 = vweird.f32 %v684
      %vm1344 = vweird.f32 %v1338
      %vm1345 = vmor %vm1343, %vm1344
      %v1346 = vsel %vm1345, %v1338, %v1342
      %v1347 = vand.u32 2147483647, %v684
      %vm1348 = vcmp.eq.f32.partialorder %v1347, 8.507059e+37
      %v1349 = vand.u32 %v684, 2147483648
      %v1350 = vor.u32 1.1754944e-38, %v1349
      %v1351 = vsel %vm1348, %v1350, %v1346
      %v1352 = vmul.f32 1.0, %v1351
      %v1353 = vrcp.pop %v685
      %v1354 = vmul.f32 %v685, %v1353
      %v1355 = vsub.f32 1.0, %v1354
      %v1356 = vmul.f32 %v1353, %v1355
      %v1357 = vadd.f32 %v1353, %v1356
      %vm1358 = vweird.f32 %v685
      %vm1359 = vweird.f32 %v1353
      %vm1360 = vmor %vm1358, %vm1359
      %v1361 = vsel %vm1360, %v1353, %v1357
      %v1362 = vand.u32 2147483647, %v685
      %vm1363 = vcmp.eq.f32.partialorder %v1362, 8.507059e+37
      %v1364 = vand.u32 %v685, 2147483648
      %v1365 = vor.u32 1.1754944e-38, %v1364
      %v1366 = vsel %vm1363, %v1365, %v1361
      %v1367 = vmul.f32 1.0, %v1366
      %v1368 = vrcp.pop %v686
      %v1369 = vmul.f32 %v686, %v1368
      %v1370 = vsub.f32 1.0, %v1369
      %v1371 = vmul.f32 %v1368, %v1370
      %v1372 = vadd.f32 %v1368, %v1371
      %vm1373 = vweird.f32 %v686
      %vm1374 = vweird.f32 %v1368
      %vm1375 = vmor %vm1373, %vm1374
      %v1376 = vsel %vm1375, %v1368, %v1372
      %v1377 = vand.u32 2147483647, %v686
      %vm1378 = vcmp.eq.f32.partialorder %v1377, 8.507059e+37
      %v1379 = vand.u32 %v686, 2147483648
      %v1380 = vor.u32 1.1754944e-38, %v1379
      %v1381 = vsel %vm1378, %v1380, %v1376
      %v1382 = vmul.f32 1.0, %v1381
      %v1383 = vrcp.pop %v687
      %v1384 = vmul.f32 %v687, %v1383
      %v1385 = vsub.f32 1.0, %v1384
      %v1386 = vmul.f32 %v1383, %v1385
      %v1387 = vadd.f32 %v1383, %v1386
      %vm1388 = vweird.f32 %v687
      %vm1389 = vweird.f32 %v1383
      %vm1390 = vmor %vm1388, %vm1389
      %v1391 = vsel %vm1390, %v1383, %v1387
      %v1392 = vand.u32 2147483647, %v687
      %vm1393 = vcmp.eq.f32.partialorder %v1392, 8.507059e+37
      %v1394 = vand.u32 %v687, 2147483648
      %v1395 = vor.u32 1.1754944e-38, %v1394
      %v1396 = vsel %vm1393, %v1395, %v1391
      %v1397 = vmul.f32 1.0, %v1396
      %v1398 = vrcp.pop %v688
      %v1399 = vmul.f32 %v688, %v1398
      %v1400 = vsub.f32 1.0, %v1399
      %v1401 = vmul.f32 %v1398, %v1400
      %v1402 = vadd.f32 %v1398, %v1401
      %vm1403 = vweird.f32 %v688
      %vm1404 = vweird.f32 %v1398
      %vm1405 = vmor %vm1403, %vm1404
      %v1406 = vsel %vm1405, %v1398, %v1402
      %v1407 = vand.u32 2147483647, %v688
      %vm1408 = vcmp.eq.f32.partialorder %v1407, 8.507059e+37
      %v1409 = vand.u32 %v688, 2147483648
      %v1410 = vor.u32 1.1754944e-38, %v1409
      %v1411 = vsel %vm1408, %v1410, %v1406
      %v1412 = vmul.f32 1.0, %v1411
      %v1413 = vrcp.pop %v689
      %v1414 = vmul.f32 %v689, %v1413
      %v1415 = vsub.f32 1.0, %v1414
      %v1416 = vmul.f32 %v1413, %v1415
      %v1417 = vadd.f32 %v1413, %v1416
      %vm1418 = vweird.f32 %v689
      %vm1419 = vweird.f32 %v1413
      %vm1420 = vmor %vm1418, %vm1419
      %v1421 = vsel %vm1420, %v1413, %v1417
      %v1422 = vand.u32 2147483647, %v689
      %vm1423 = vcmp.eq.f32.partialorder %v1422, 8.507059e+37
      %v1424 = vand.u32 %v689, 2147483648
      %v1425 = vor.u32 1.1754944e-38, %v1424
      %v1426 = vsel %vm1423, %v1425, %v1421
      %v1427 = vmul.f32 1.0, %v1426
      %v1428 = vrcp.pop %v690
      %v1429 = vmul.f32 %v690, %v1428
      %v1430 = vsub.f32 1.0, %v1429
      %v1431 = vmul.f32 %v1428, %v1430
      %v1432 = vadd.f32 %v1428, %v1431
      %vm1433 = vweird.f32 %v690
      %vm1434 = vweird.f32 %v1428
      %vm1435 = vmor %vm1433, %vm1434
      %v1436 = vsel %vm1435, %v1428, %v1432
      %v1437 = vand.u32 2147483647, %v690
      %vm1438 = vcmp.eq.f32.partialorder %v1437, 8.507059e+37
      %v1439 = vand.u32 %v690, 2147483648
      %v1440 = vor.u32 1.1754944e-38, %v1439
      %v1441 = vsel %vm1438, %v1440, %v1436
      %v1442 = vmul.f32 1.0, %v1441
      %v1443 = vrcp.pop %v691
      %v1444 = vmul.f32 %v691, %v1443
      %v1445 = vsub.f32 1.0, %v1444
      %v1446 = vmul.f32 %v1443, %v1445
      %v1447 = vadd.f32 %v1443, %v1446
      %vm1448 = vweird.f32 %v691
      %vm1449 = vweird.f32 %v1443
      %vm1450 = vmor %vm1448, %vm1449
      %v1451 = vsel %vm1450, %v1443, %v1447
      %v1452 = vand.u32 2147483647, %v691
      %vm1453 = vcmp.eq.f32.partialorder %v1452, 8.507059e+37
      %v1454 = vand.u32 %v691, 2147483648
      %v1455 = vor.u32 1.1754944e-38, %v1454
      %v1456 = vsel %vm1453, %v1455, %v1451
      %v1457 = vmul.f32 1.0, %v1456
      %v1458 = vrcp.pop %v692
      %v1459 = vmul.f32 %v692, %v1458
      %v1460 = vsub.f32 1.0, %v1459
      %v1461 = vmul.f32 %v1458, %v1460
      %v1462 = vadd.f32 %v1458, %v1461
      %vm1463 = vweird.f32 %v692
      %vm1464 = vweird.f32 %v1458
      %vm1465 = vmor %vm1463, %vm1464
      %v1466 = vsel %vm1465, %v1458, %v1462
      %v1467 = vand.u32 2147483647, %v692
      %vm1468 = vcmp.eq.f32.partialorder %v1467, 8.507059e+37
      %v1469 = vand.u32 %v692, 2147483648
      %v1470 = vor.u32 1.1754944e-38, %v1469
      %v1471 = vsel %vm1468, %v1470, %v1466
      %v1472 = vmul.f32 1.0, %v1471
      %v1473 = vrcp.pop %v693
      %v1474 = vmul.f32 %v693, %v1473
      %v1475 = vsub.f32 1.0, %v1474
      %v1476 = vmul.f32 %v1473, %v1475
      %v1477 = vadd.f32 %v1473, %v1476
      %vm1478 = vweird.f32 %v693
      %vm1479 = vweird.f32 %v1473
      %vm1480 = vmor %vm1478, %vm1479
      %v1481 = vsel %vm1480, %v1473, %v1477
      %v1482 = vand.u32 2147483647, %v693
      %vm1483 = vcmp.eq.f32.partialorder %v1482, 8.507059e+37
      %v1484 = vand.u32 %v693, 2147483648
      %v1485 = vor.u32 1.1754944e-38, %v1484
      %v1486 = vsel %vm1483, %v1485, %v1481
      %v1487 = vmul.f32 1.0, %v1486
      %v1488 = vrcp.pop %v694
      %v1489 = vmul.f32 %v694, %v1488
      %v1490 = vsub.f32 1.0, %v1489
      %v1491 = vmul.f32 %v1488, %v1490
      %v1492 = vadd.f32 %v1488, %v1491
      %vm1493 = vweird.f32 %v694
      %vm1494 = vweird.f32 %v1488
      %vm1495 = vmor %vm1493, %vm1494
      %v1496 = vsel %vm1495, %v1488, %v1492
      %v1497 = vand.u32 2147483647, %v694
      %vm1498 = vcmp.eq.f32.partialorder %v1497, 8.507059e+37
      %v1499 = vand.u32 %v694, 2147483648
      %v1500 = vor.u32 1.1754944e-38, %v1499
      %v1501 = vsel %vm1498, %v1500, %v1496
      %v1502 = vmul.f32 1.0, %v1501
      %v1503 = vrcp.pop %v695
      %v1504 = vmul.f32 %v695, %v1503
      %v1505 = vsub.f32 1.0, %v1504
      %v1506 = vmul.f32 %v1503, %v1505
      %v1507 = vadd.f32 %v1503, %v1506
      %vm1508 = vweird.f32 %v695
      %vm1509 = vweird.f32 %v1503
      %vm1510 = vmor %vm1508, %vm1509
      %v1511 = vsel %vm1510, %v1503, %v1507
      %v1512 = vand.u32 2147483647, %v695
      %vm1513 = vcmp.eq.f32.partialorder %v1512, 8.507059e+37
      %v1514 = vand.u32 %v695, 2147483648
      %v1515 = vor.u32 1.1754944e-38, %v1514
      %v1516 = vsel %vm1513, %v1515, %v1511
      %v1517 = vmul.f32 1.0, %v1516
      %v1518 = vrcp.pop %v696
      %v1519 = vmul.f32 %v696, %v1518
      %v1520 = vsub.f32 1.0, %v1519
      %v1521 = vmul.f32 %v1518, %v1520
      %v1522 = vadd.f32 %v1518, %v1521
      %vm1523 = vweird.f32 %v696
      %vm1524 = vweird.f32 %v1518
      %vm1525 = vmor %vm1523, %vm1524
      %v1526 = vsel %vm1525, %v1518, %v1522
      %v1527 = vand.u32 2147483647, %v696
      %vm1528 = vcmp.eq.f32.partialorder %v1527, 8.507059e+37
      %v1529 = vand.u32 %v696, 2147483648
      %v1530 = vor.u32 1.1754944e-38, %v1529
      %v1531 = vsel %vm1528, %v1530, %v1526
      %v1532 = vmul.f32 1.0, %v1531
      %v1533 = vrcp.pop %v697
      %v1534 = vmul.f32 %v697, %v1533
      %v1535 = vsub.f32 1.0, %v1534
      %v1536 = vmul.f32 %v1533, %v1535
      %v1537 = vadd.f32 %v1533, %v1536
      %vm1538 = vweird.f32 %v697
      %vm1539 = vweird.f32 %v1533
      %vm1540 = vmor %vm1538, %vm1539
      %v1541 = vsel %vm1540, %v1533, %v1537
      %v1542 = vand.u32 2147483647, %v697
      %vm1543 = vcmp.eq.f32.partialorder %v1542, 8.507059e+37
      %v1544 = vand.u32 %v697, 2147483648
      %v1545 = vor.u32 1.1754944e-38, %v1544
      %v1546 = vsel %vm1543, %v1545, %v1541
      %v1547 = vmul.f32 1.0, %v1546
      %v1548 = vrcp.pop %v698
      %v1549 = vmul.f32 %v698, %v1548
      %v1550 = vsub.f32 1.0, %v1549
      %v1551 = vmul.f32 %v1548, %v1550
      %v1552 = vadd.f32 %v1548, %v1551
      %vm1553 = vweird.f32 %v698
      %vm1554 = vweird.f32 %v1548
      %vm1555 = vmor %vm1553, %vm1554
      %v1556 = vsel %vm1555, %v1548, %v1552
      %v1557 = vand.u32 2147483647, %v698
      %vm1558 = vcmp.eq.f32.partialorder %v1557, 8.507059e+37
      %v1559 = vand.u32 %v698, 2147483648
      %v1560 = vor.u32 1.1754944e-38, %v1559
      %v1561 = vsel %vm1558, %v1560, %v1556
      %v1562 = vmul.f32 1.0, %v1561
      %v1563 = vrcp.pop %v699
      %v1564 = vmul.f32 %v699, %v1563
      %v1565 = vsub.f32 1.0, %v1564
      %v1566 = vmul.f32 %v1563, %v1565
      %v1567 = vadd.f32 %v1563, %v1566
      %vm1568 = vweird.f32 %v699
      %vm1569 = vweird.f32 %v1563
      %vm1570 = vmor %vm1568, %vm1569
      %v1571 = vsel %vm1570, %v1563, %v1567
      %v1572 = vand.u32 2147483647, %v699
      %vm1573 = vcmp.eq.f32.partialorder %v1572, 8.507059e+37
      %v1574 = vand.u32 %v699, 2147483648
      %v1575 = vor.u32 1.1754944e-38, %v1574
      %v1576 = vsel %vm1573, %v1575, %v1571
      %v1577 = vmul.f32 1.0, %v1576
      %v1578 = vrcp.pop %v700
      %v1579 = vmul.f32 %v700, %v1578
      %v1580 = vsub.f32 1.0, %v1579
      %v1581 = vmul.f32 %v1578, %v1580
      %v1582 = vadd.f32 %v1578, %v1581
      %vm1583 = vweird.f32 %v700
      %vm1584 = vweird.f32 %v1578
      %vm1585 = vmor %vm1583, %vm1584
      %v1586 = vsel %vm1585, %v1578, %v1582
      %v1587 = vand.u32 2147483647, %v700
      %vm1588 = vcmp.eq.f32.partialorder %v1587, 8.507059e+37
      %v1589 = vand.u32 %v700, 2147483648
      %v1590 = vor.u32 1.1754944e-38, %v1589
      %v1591 = vsel %vm1588, %v1590, %v1586
      %v1592 = vmul.f32 1.0, %v1591
      %v1593 = vrcp.pop %v701
      %v1594 = vmul.f32 %v701, %v1593
      %v1595 = vsub.f32 1.0, %v1594
      %v1596 = vmul.f32 %v1593, %v1595
      %v1597 = vadd.f32 %v1593, %v1596
      %vm1598 = vweird.f32 %v701
      %vm1599 = vweird.f32 %v1593
      %vm1600 = vmor %vm1598, %vm1599
      %v1601 = vsel %vm1600, %v1593, %v1597
      %v1602 = vand.u32 2147483647, %v701
      %vm1603 = vcmp.eq.f32.partialorder %v1602, 8.507059e+37
      %v1604 = vand.u32 %v701, 2147483648
      %v1605 = vor.u32 1.1754944e-38, %v1604
      %v1606 = vsel %vm1603, %v1605, %v1601
      %v1607 = vmul.f32 1.0, %v1606
      %v1608 = vrcp.pop %v702
      %v1609 = vmul.f32 %v702, %v1608
      %v1610 = vsub.f32 1.0, %v1609
      %v1611 = vmul.f32 %v1608, %v1610
      %v1612 = vadd.f32 %v1608, %v1611
      %vm1613 = vweird.f32 %v702
      %vm1614 = vweird.f32 %v1608
      %vm1615 = vmor %vm1613, %vm1614
      %v1616 = vsel %vm1615, %v1608, %v1612
      %v1617 = vand.u32 2147483647, %v702
      %vm1618 = vcmp.eq.f32.partialorder %v1617, 8.507059e+37
      %v1619 = vand.u32 %v702, 2147483648
      %v1620 = vor.u32 1.1754944e-38, %v1619
      %v1621 = vsel %vm1618, %v1620, %v1616
      %v1622 = vmul.f32 1.0, %v1621
      %v1623 = vrcp.pop %v703
      %v1624 = vmul.f32 %v703, %v1623
      %v1625 = vsub.f32 1.0, %v1624
      %v1626 = vmul.f32 %v1623, %v1625
      %v1627 = vadd.f32 %v1623, %v1626
      %vm1628 = vweird.f32 %v703
      %vm1629 = vweird.f32 %v1623
      %vm1630 = vmor %vm1628, %vm1629
      %v1631 = vsel %vm1630, %v1623, %v1627
      %v1632 = vand.u32 2147483647, %v703
      %vm1633 = vcmp.eq.f32.partialorder %v1632, 8.507059e+37
      %v1634 = vand.u32 %v703, 2147483648
      %v1635 = vor.u32 1.1754944e-38, %v1634
      %v1636 = vsel %vm1633, %v1635, %v1631
      %v1637 = vmul.f32 1.0, %v1636
      %v1638 = vrcp.pop %v704
      %v1639 = vmul.f32 %v704, %v1638
      %v1640 = vsub.f32 1.0, %v1639
      %v1641 = vmul.f32 %v1638, %v1640
      %v1642 = vadd.f32 %v1638, %v1641
      %vm1643 = vweird.f32 %v704
      %vm1644 = vweird.f32 %v1638
      %vm1645 = vmor %vm1643, %vm1644
      %v1646 = vsel %vm1645, %v1638, %v1642
      %v1647 = vand.u32 2147483647, %v704
      %vm1648 = vcmp.eq.f32.partialorder %v1647, 8.507059e+37
      %v1649 = vand.u32 %v704, 2147483648
      %v1650 = vor.u32 1.1754944e-38, %v1649
      %v1651 = vsel %vm1648, %v1650, %v1646
      %v1652 = vmul.f32 1.0, %v1651
      %v1653 = vrcp.pop %v705
      %v1654 = vmul.f32 %v705, %v1653
      %v1655 = vsub.f32 1.0, %v1654
      %v1656 = vmul.f32 %v1653, %v1655
      %v1657 = vadd.f32 %v1653, %v1656
      %vm1658 = vweird.f32 %v705
      %vm1659 = vweird.f32 %v1653
      %vm1660 = vmor %vm1658, %vm1659
      %v1661 = vsel %vm1660, %v1653, %v1657
      %v1662 = vand.u32 2147483647, %v705
      %vm1663 = vcmp.eq.f32.partialorder %v1662, 8.507059e+37
      %v1664 = vand.u32 %v705, 2147483648
      %v1665 = vor.u32 1.1754944e-38, %v1664
      %v1666 = vsel %vm1663, %v1665, %v1661
      %v1667 = vmul.f32 1.0, %v1666
      %v1668 = vrcp.pop %v706
      %v1669 = vmul.f32 %v706, %v1668
      %v1670 = vsub.f32 1.0, %v1669
      %v1671 = vmul.f32 %v1668, %v1670
      %v1672 = vadd.f32 %v1668, %v1671
      %vm1673 = vweird.f32 %v706
      %vm1674 = vweird.f32 %v1668
      %vm1675 = vmor %vm1673, %vm1674
      %v1676 = vsel %vm1675, %v1668, %v1672
      %v1677 = vand.u32 2147483647, %v706
      %vm1678 = vcmp.eq.f32.partialorder %v1677, 8.507059e+37
      %v1679 = vand.u32 %v706, 2147483648
      %v1680 = vor.u32 1.1754944e-38, %v1679
      %v1681 = vsel %vm1678, %v1680, %v1676
      %v1682 = vmul.f32 1.0, %v1681
      %v1683 = vrcp.pop %v707
      %v1684 = vmul.f32 %v707, %v1683
      %v1685 = vsub.f32 1.0, %v1684
      %v1686 = vmul.f32 %v1683, %v1685
      %v1687 = vadd.f32 %v1683, %v1686
      %vm1688 = vweird.f32 %v707
      %vm1689 = vweird.f32 %v1683
      %vm1690 = vmor %vm1688, %vm1689
      %v1691 = vsel %vm1690, %v1683, %v1687
      %v1692 = vand.u32 2147483647, %v707
      %vm1693 = vcmp.eq.f32.partialorder %v1692, 8.507059e+37
      %v1694 = vand.u32 %v707, 2147483648
      %v1695 = vor.u32 1.1754944e-38, %v1694
      %v1696 = vsel %vm1693, %v1695, %v1691
      %v1697 = vmul.f32 1.0, %v1696
      %1698 = vst [vmem:[%s170] sm:$0xf0] %v722
      %1699 = vst [vmem:[%s170 + $0x8] sm:$0xf0] %v737
      %1700 = vst [vmem:[%s170 + $0x10] sm:$0xff] %v752
      %1701 = vst [vmem:[%s170 + $0x18] sm:$0xff] %v767
      %1702 = vst [vmem:[%s170 + $0x20] sm:$0xff] %v782
      %1703 = vst [vmem:[%s170 + $0x28] sm:$0xff] %v797
      %1704 = vst [vmem:[%s170 + $0x30] sm:$0xff] %v812
      %1705 = vst [vmem:[%s170 + $0x38] sm:$0xff] %v827
      %1706 = vst [vmem:[%s170 + $0x40] sm:$0xff] %v842
      %1707 = vst [vmem:[%s170 + $0x48] sm:$0xff] %v857
      %1708 = vst [vmem:[%s170 + $0x50] sm:$0xff] %v872
      %1709 = vst [vmem:[%s170 + $0x58] sm:$0xff] %v887
      %1710 = vst [vmem:[%s170 + $0x60] sm:$0xff] %v902
      %1711 = vst [vmem:[%s170 + $0x68] sm:$0xff] %v917
      %1712 = vst [vmem:[%s170 + $0x70] sm:$0xff] %v932
      %1713 = vst [vmem:[%s170 + $0x78] sm:$0xff] %v947
      %1714 = vst [vmem:[%s170 + $0x80] sm:$0xff] %v962
      %1715 = vst [vmem:[%s170 + $0x88] sm:$0xff] %v977
      %1716 = vst [vmem:[%s170 + $0x90] sm:$0xff] %v992
      %1717 = vst [vmem:[%s170 + $0x98] sm:$0xff] %v1007
      %1718 = vst [vmem:[%s170 + $0xa0] sm:$0x1f] %v1022
      %1719 = vst [vmem:[%s170 + $0xa8] sm:$0x1f] %v1037
      %1720 = vst [vmem:[%s170 + $0xb0] sm:$0xf0] %v1052
      %1721 = vst [vmem:[%s170 + $0xb8] sm:$0xf0] %v1067
      %1722 = vst [vmem:[%s170 + $0xc0] sm:$0xff] %v1082
      %1723 = vst [vmem:[%s170 + $0xc8] sm:$0xff] %v1097
      %1724 = vst [vmem:[%s170 + $0xd0] sm:$0xff] %v1112
      %1725 = vst [vmem:[%s170 + $0xd8] sm:$0xff] %v1127
      %1726 = vst [vmem:[%s170 + $0xe0] sm:$0xff] %v1142
      %1727 = vst [vmem:[%s170 + $0xe8] sm:$0xff] %v1157
      %1728 = vst [vmem:[%s170 + $0xf0] sm:$0xff] %v1172
      %1729 = vst [vmem:[%s170 + $0xf8] sm:$0xff] %v1187
      %1730 = vst [vmem:[%s170 + $0x100] sm:$0xff] %v1202
      %1731 = vst [vmem:[%s170 + $0x108] sm:$0xff] %v1217
      %1732 = vst [vmem:[%s170 + $0x110] sm:$0xff] %v1232
      %1733 = vst [vmem:[%s170 + $0x118] sm:$0xff] %v1247
      %1734 = vst [vmem:[%s170 + $0x120] sm:$0xff] %v1262
      %1735 = vst [vmem:[%s170 + $0x128] sm:$0xff] %v1277
      %1736 = vst [vmem:[%s170 + $0x130] sm:$0xff] %v1292
      %1737 = vst [vmem:[%s170 + $0x138] sm:$0xff] %v1307
      %1738 = vst [vmem:[%s170 + $0x140] sm:$0xff] %v1322
      %1739 = vst [vmem:[%s170 + $0x148] sm:$0xff] %v1337
      %1740 = vst [vmem:[%s170 + $0x150] sm:$0x1f] %v1352
      %1741 = vst [vmem:[%s170 + $0x158] sm:$0x1f] %v1367
      %1742 = vst [vmem:[%s170 + $0x160] sm:$0xf0] %v1382
      %1743 = vst [vmem:[%s170 + $0x168] sm:$0xf0] %v1397
      %1744 = vst [vmem:[%s170 + $0x170] sm:$0xff] %v1412
      %1745 = vst [vmem:[%s170 + $0x178] sm:$0xff] %v1427
      %1746 = vst [vmem:[%s170 + $0x180] sm:$0xff] %v1442
      %1747 = vst [vmem:[%s170 + $0x188] sm:$0xff] %v1457
      %1748 = vst [vmem:[%s170 + $0x190] sm:$0xff] %v1472
      %1749 = vst [vmem:[%s170 + $0x198] sm:$0xff] %v1487
      %1750 = vst [vmem:[%s170 + $0x1a0] sm:$0xff] %v1502
      %1751 = vst [vmem:[%s170 + $0x1a8] sm:$0xff] %v1517
      %1752 = vst [vmem:[%s170 + $0x1b0] sm:$0xff] %v1532
      %1753 = vst [vmem:[%s170 + $0x1b8] sm:$0xff] %v1547
      %1754 = vst [vmem:[%s170 + $0x1c0] sm:$0xff] %v1562
      %1755 = vst [vmem:[%s170 + $0x1c8] sm:$0xff] %v1577
      %1756 = vst [vmem:[%s170 + $0x1d0] sm:$0xff] %v1592
      %1757 = vst [vmem:[%s170 + $0x1d8] sm:$0xff] %v1607
      %1758 = vst [vmem:[%s170 + $0x1e0] sm:$0xff] %v1622
      %1759 = vst [vmem:[%s170 + $0x1e8] sm:$0xff] %v1637
      %1760 = vst [vmem:[%s170 + $0x1f0] sm:$0xff] %v1652
      %1761 = vst [vmem:[%s170 + $0x1f8] sm:$0xff] %v1667
      %1762 = vst [vmem:[%s170 + $0x200] sm:$0x1f] %v1682
      %1763 = vst [vmem:[%s170 + $0x208] sm:$0x1f] %v1697
      %p1764 = scmp.lt.s32.totalorder %s14, 1
      %s1765 = scalar_select %p1764, %s14, 1
      %s1766 = smul.addr %s1765, 66
      %s1767 = smul.addr %s1766, 8
      %s1768 = scalar_lea.vmem %s3, %s1767
      // Predicated region
      $region33: #{tpu_custom_call.1} parent=31 // pred_check
        %p1769 = pneg %p100
      $region34: #{tpu_custom_call.1} parent=31 // pred_check_branch
        %1771 = sbr.rel (%p1769) target = $region36
      $region35: #{tpu_custom_call.1} parent=31 // pred_region
        _
      $region36: #{tpu_custom_call.1} parent=31 // pred_fallthru
        _
    $region32: #{tpu_custom_call.1} parent=5 // pred_fallthru
      _
    %p1772 = scmp.le.s32.totalorder 2, %s9
    // Predicated region
    $region37: #{tpu_custom_call.1} parent=5 // pred_check
      %p1773 = pneg %p1772
    $region38: #{tpu_custom_call.1} parent=5 // pred_check_branch
      %1775 = sbr.rel (%p1773) target = $region40
    $region39: #{tpu_custom_call.1} parent=5 // pred_region
      %s1776 = ssub.s32 %s9, 2
      // Predicated region
      $region41: #{tpu_custom_call.1} parent=39 // pred_check
        %p1777 = pneg %p106
      $region42: #{tpu_custom_call.1} parent=39 // pred_check_branch
        %1779 = sbr.rel (%p1777) target = $region44
      $region43: #{tpu_custom_call.1} parent=39 // pred_region
        %p1780 = scmp.lt.s32.totalorder %s15, 1
        %s1781 = scalar_select %p1780, %s15, 1
        %s1782 = smul.addr %s1781, 66
        %s1783 = smul.addr %s1782, 8
        %s1784 = scalar_lea.vmem %s3, %s1783
      $region44: #{tpu_custom_call.1} parent=39 // pred_fallthru
        _
    $region40: #{tpu_custom_call.1} parent=5 // pred_fallthru
      _
  $region6: #{tpu_custom_call.1} parent=0 // loop_footer
    %s13 = sadd.s32 1, %s9
  $region7: #{tpu_custom_call.1} parent=0 // loop_footer_branch
    %8 = sbr.rel target = $region3
  $region8: #{tpu_custom_call.1} parent=0 // loop_exit
    _

</llo_original>
